<compile_context>
chip_gen: v7x
topology: tpu7x:2x2x1
jax: 0.10.0
libtpu: 0.0.40
codegen_flags: <defaults>
</compile_context>

<pallas_src>
import functools

import jax
import jax.numpy as jnp
from jax.experimental import pallas as pl
from jax.experimental.pallas import tpu as pltpu

_LANE = 128
# 40 MiB leaves headroom on v7x's 64 MiB/TC and is far below v5e/v6e's 128 MiB.
_VMEM_LIMIT = 40 * 1024 * 1024

# Small compat shim (newer JAX: CompilerParams; older JAX: TPUCompilerParams).
_CompilerParams = getattr(pltpu, "CompilerParams", None)
if _CompilerParams is None:  # pragma: no cover
    _CompilerParams = pltpu.TPUCompilerParams


def _round_up(x, m):
    return (x + m - 1) // m * m


def _pad_to(a, shape):
    pads = [(0, t - s) for s, t in zip(a.shape, shape)]
    if all(p == (0, 0) for p in pads):
        return a
    return jnp.pad(a, pads)


# ----------------------------------------------------------------------------
# Stage A: conv1 (1x1) + BN1 + ReLU  fused with  conv2 (3x3) + BN2 + ReLU
# ----------------------------------------------------------------------------
def _stage_a_kernel(x_ref, w1_ref, s1_ref, b1_ref, w2_ref, s2_ref, b2_ref,
                    o_ref, mid_ref, *, stride):
    """One image per grid step.

    x_ref  : (1, H, W, Cin_p)   bf16   channel-padded input image
    w1_ref : (Cin_p, P_p)       bf16
    s1/b1  : (1, P_p)           f32    folded BN1
    w2_ref : (3, 3*P_p, P_p)    bf16   ky major; (kx, cin) folded into K
    s2/b2  : (1, P_p)           f32    folded BN2
    o_ref  : (1, Ho, Wo, P_p)   bf16   strided conv2 output
    mid_ref: (H+2, W, 3*P_p)    bf16   VMEM scratch: 3 column-shifted conv1
                                       outputs (kx = 0/1/2) + zero halo rows
    """
    _, h, w, cin = x_ref.shape
    kpp = w2_ref.shape[1]
    pp = w2_ref.shape[2]

    # conv1 (1x1) + BN1 + ReLU — kept entirely in registers, cast to bf16 once.
    x2d = x_ref[...].reshape(h * w, cin)
    y = jnp.dot(x2d, w1_ref[...], preferred_element_type=jnp.float32)
    y = jnp.maximum(y * s1_ref[...] + b1_ref[...], 0.0)
    y3 = y.reshape(h, w, pp).astype(jnp.bfloat16)

    # Three column-shifted copies (kx = 0, 1, 2) concatenated along channels.
    # Stores are row-offset (outer axis) and lane-aligned -> unmasked vst.
    zcol = jnp.zeros((h, 1, pp), jnp.bfloat16)
    left = jnp.concatenate([zcol, y3[:, :w - 1, :]], axis=1)    # kx = 0 tap
    right = jnp.concatenate([y3[:, 1:, :], zcol], axis=1)       # kx = 2 tap
    zero_row = jnp.zeros((1, w, kpp), jnp.bfloat16)
    mid_ref[0:1] = zero_row              # top halo  (zero every step: scratch
    mid_ref[h + 1:h + 2] = zero_row      # bottom halo; persists per core)
    mid_ref[1:h + 1] = jnp.concatenate([left, y3, right], axis=2)

    # conv2 (3x3): 3 MXU matmuls with K = 3*P_p, accumulated in registers —
    # no VMEM read-modify-write accumulator passes, no unaligned tap copies.
    acc = jnp.zeros((h * w, pp), jnp.float32)
    for ky in range(3):
        tap = mid_ref[ky:ky + h].reshape(h * w, kpp)
        acc = acc + jnp.dot(tap, w2_ref[ky], preferred_element_type=jnp.float32)

    z = acc.reshape(h, w, pp)
    if stride > 1:
        # TODO(synk): accumulating only the strided output rows would also cut
        # MXU work ~2x; here we at least avoid 4x HBM writeback + wrapper slice.
        z = z[::stride, ::stride, :]
    z = jnp.maximum(z * s2_ref[...] + b2_ref[...], 0.0)
    o_ref[...] = z[None].astype(o_ref.dtype)


def _stage_a(x, w1, s1, b1, w2k, s2, b2, *, stride):
    n, h, w, cin_p = x.shape
    kpp = w2k.shape[1]
    pp = w2k.shape[2]
    ho = (h - 1) // stride + 1
    wo = (w - 1) // stride + 1
    kernel = functools.partial(_stage_a_kernel, stride=stride)
    return pl.pallas_call(
        kernel,
        out_shape=jax.ShapeDtypeStruct((n, ho, wo, pp), jnp.bfloat16),
        grid=(n,),
        in_specs=[
            pl.BlockSpec((1, h, w, cin_p), lambda i: (i, 0, 0, 0)),
            pl.BlockSpec((cin_p, pp), lambda i: (0, 0)),
            pl.BlockSpec((1, pp), lambda i: (0, 0)),
            pl.BlockSpec((1, pp), lambda i: (0, 0)),
            pl.BlockSpec((3, kpp, pp), lambda i: (0, 0, 0)),
            pl.BlockSpec((1, pp), lambda i: (0, 0)),
            pl.BlockSpec((1, pp), lambda i: (0, 0)),
        ],
        out_specs=pl.BlockSpec((1, ho, wo, pp), lambda i: (i, 0, 0, 0)),
        scratch_shapes=[
            pltpu.VMEM((h + 2, w, kpp), jnp.bfloat16),
        ],
        compiler_params=_CompilerParams(
            dimension_semantics=("parallel",),
            vmem_limit_bytes=_VMEM_LIMIT),
    )(x, w1, s1, b1, w2k, s2, b2)


# ----------------------------------------------------------------------------
# Stage B: conv3 (1x1) + BN3 + shortcut (conv+BN or identity) + add + ReLU
# ----------------------------------------------------------------------------
def _stage_b_proj_kernel(u_ref, xs_ref, w3_ref, s3_ref, b3_ref,
                         wsc_ref, ssc_ref, bsc_ref, o_ref):
    y = jnp.dot(u_ref[...], w3_ref[...], preferred_element_type=jnp.float32)
    y = y * s3_ref[...] + b3_ref[...]
    r = jnp.dot(xs_ref[...], wsc_ref[...], preferred_element_type=jnp.float32)
    r = r * ssc_ref[...] + bsc_ref[...]
    o_ref[...] = jnp.maximum(y + r, 0.0).astype(o_ref.dtype)


def _stage_b_id_kernel(u_ref, xs_ref, w3_ref, s3_ref, b3_ref, o_ref):
    y = jnp.dot(u_ref[...], w3_ref[...], preferred_element_type=jnp.float32)
    y = y * s3_ref[...] + b3_ref[...]
    o_ref[...] = jnp.maximum(y + xs_ref[...].astype(jnp.float32),
                             0.0).astype(o_ref.dtype)


def _stage_b(u2, xs, w3, s3, b3, wsc=None, ssc=None, bsc=None):
    rows, pp = u2.shape
    cout_p = w3.shape[1]
    cs = xs.shape[1]
    # 1024-row blocks amortize per-grid-step overhead; still small on v7x VMEM.
    br = 1024 if rows >= 1024 else _round_up(rows, 8)
    rows_p = _round_up(rows, br)
    if rows_p != rows:
        u2 = jnp.pad(u2, ((0, rows_p - rows), (0, 0)))
        xs = jnp.pad(xs, ((0, rows_p - rows), (0, 0)))

    def row_spec(c):
        return pl.BlockSpec((br, c), lambda i: (i, 0))

    def full2(a):
        # Constant-index weight/BN blocks; default buffering kept for
        # portability across JAX versions (pipeline_mode=pl.Buffered(1) would
        # shave a duplicate weight buffer from VMEM).
        return pl.BlockSpec(a.shape, lambda i: (0, 0))

    if wsc is not None:
        kern = _stage_b_proj_kernel
        in_specs = [row_spec(pp), row_spec(cs), full2(w3), full2(s3), full2(b3),
                    full2(wsc), full2(ssc), full2(bsc)]
        args = (u2, xs, w3, s3, b3, wsc, ssc, bsc)
    else:
        kern = _stage_b_id_kernel
        in_specs = [row_spec(pp), row_spec(cs), full2(w3), full2(s3), full2(b3)]
        args = (u2, xs, w3, s3, b3)

    # NOTE: output stays f32 because it is the block's final output; a chained
    # bottleneck consumer could take bf16 here to halve the dominant writeback.
    return pl.pallas_call(
        kern,
        out_shape=jax.ShapeDtypeStruct((rows_p, cout_p), jnp.float32),
        grid=(rows_p // br,),
        in_specs=in_specs,
        out_specs=pl.BlockSpec((br, cout_p), lambda i: (i, 0)),
        compiler_params=_CompilerParams(
            dimension_semantics=("parallel",),
            vmem_limit_bytes=_VMEM_LIMIT),
    )(*args)


# ----------------------------------------------------------------------------
# Parameters (deterministic, synthetic) and the full forward
# ----------------------------------------------------------------------------
EXPANSION = 4


def fold_bn(gamma, beta, mean, var, eps=1e-5):
    scale = gamma / jnp.sqrt(var + eps)
    bias = beta - mean * scale
    return (scale.reshape(1, -1).astype(jnp.float32),
            bias.reshape(1, -1).astype(jnp.float32))


def make_params(key, in_planes, planes, stride):
    out_planes = EXPANSION * planes
    keys = jax.random.split(key, 16)

    def bn(k, c):
        k1, k2, k3, k4 = jax.random.split(k, 4)
        gamma = jax.random.uniform(k1, (c,), minval=0.5, maxval=1.5)
        beta = 0.1 * jax.random.normal(k2, (c,))
        mean = 0.1 * jax.random.normal(k3, (c,))
        var = jax.random.uniform(k4, (c,), minval=0.5, maxval=1.5)
        return fold_bn(gamma, beta, mean, var)

    p = {}
    p["w1"] = 0.2 * jax.random.normal(keys[0], (in_planes, planes), jnp.float32)
    p["s1"], p["b1"] = bn(keys[1], planes)
    p["w2"] = 0.2 * jax.random.normal(keys[2], (3, 3, planes, planes), jnp.float32)
    p["s2"], p["b2"] = bn(keys[3], planes)
    p["w3"] = 0.2 * jax.random.normal(keys[4], (planes, out_planes), jnp.float32)
    p["s3"], p["b3"] = bn(keys[5], out_planes)
    if stride != 1 or in_planes != out_planes:
        p["w_sc"] = 0.2 * jax.random.normal(keys[6], (in_planes, out_planes),
                                            jnp.float32)
        p["s_sc"], p["b_sc"] = bn(keys[7], out_planes)
    return p


def bottleneck_forward(x_nchw, params, *, stride=1):
    """Bottleneck forward. Input/output are NCHW (PyTorch convention)."""
    x = jnp.transpose(x_nchw, (0, 2, 3, 1)).astype(jnp.float32)   # -> NHWC
    n, h, w, cin = x.shape
    planes = params["w1"].shape[1]
    out_planes = params["w3"].shape[1]
    cin_p = _round_up(cin, _LANE)
    pp = _round_up(planes, _LANE)
    cout_p = _round_up(out_planes, _LANE)

    # Padded bf16 weights / f32 folded-BN params (wrapper-side layout plumbing).
    w1 = _pad_to(params["w1"], (cin_p, pp)).astype(jnp.bfloat16)
    s1 = _pad_to(params["s1"], (1, pp))
    b1 = _pad_to(params["b1"], (1, pp))
    # Fold (kx, cin) into K so conv2 runs as 3 deep-K matmuls: (3, 3*pp, pp).
    w2k = _pad_to(params["w2"], (3, 3, pp, pp)).reshape(3, 3 * pp, pp)
    w2k = w2k.astype(jnp.bfloat16)
    s2 = _pad_to(params["s2"], (1, pp))
    b2 = _pad_to(params["b2"], (1, pp))
    w3 = _pad_to(params["w3"], (pp, cout_p)).astype(jnp.bfloat16)
    s3 = _pad_to(params["s3"], (1, cout_p))
    b3 = _pad_to(params["b3"], (1, cout_p))

    x_p = _pad_to(x, (n, h, w, cin_p)).astype(jnp.bfloat16)

    # Stage A: conv1+bn1+relu fused with conv2(3x3,stride)+bn2+relu.
    u = _stage_a(x_p, w1, s1, b1, w2k, s2, b2, stride=stride)
    ho, wo = u.shape[1], u.shape[2]
    rows = n * ho * wo
    u2 = u.reshape(rows, pp)

    x_ds = x if stride == 1 else x[:, ::stride, ::stride, :]

    # Stage B: conv3+bn3 + shortcut + add + relu (fused, row-tiled).
    if "w_sc" in params:
        xs = _pad_to(x_ds, (n, ho, wo, cin_p)).astype(jnp.bfloat16)
        xs = xs.reshape(rows, cin_p)
        wsc = _pad_to(params["w_sc"], (cin_p, cout_p)).astype(jnp.bfloat16)
        ssc = _pad_to(params["s_sc"], (1, cout_p))
        bsc = _pad_to(params["b_sc"], (1, cout_p))
        out = _stage_b(u2, xs, w3, s3, b3, wsc, ssc, bsc)
    else:
        # Identity shortcut: keep the residual in full f32 precision.
        xs = _pad_to(x_ds, (n, ho, wo, cout_p)).reshape(rows, cout_p)
        out = _stage_b(u2, xs, w3, s3, b3)

    # Final NCHW conversion for the PyTorch contract; a chained bottleneck
    # consumer would instead keep NHWC/padded channels and skip this pass.
    out = out[:rows].reshape(n, ho, wo, cout_p)[..., :out_planes]
    return jnp.transpose(out, (0, 3, 1, 2)).astype(x_nchw.dtype)


# ----------------------------------------------------------------------------
# Pure-JAX reference (lax convolutions) mirroring the kernels' bf16 MXU casts.
# ----------------------------------------------------------------------------
def bottleneck_reference(x_nchw, params, *, stride=1):
    x = jnp.transpose(x_nchw, (0, 2, 3, 1)).astype(jnp.float32)

    def bf(a):  # mirror bf16 rounding applied to MXU operands in the kernels
        return a.astype(jnp.bfloat16).astype(jnp.float32)

    def conv(inp, wgt, s, pad):
        return jax.lax.conv_general_dilated(
            inp, wgt, (s, s), pad, dimension_numbers=("NHWC", "HWIO", "NHWC"))

    w1 = params["w1"].reshape(1, 1, *params["w1"].shape)
    out = conv(bf(x), bf(w1), 1, "VALID")
    out = jnp.maximum(out * params["s1"] + params["b1"], 0.0)
    out = conv(bf(out), bf(params["w2"]), stride, [(1, 1), (1, 1)])
    out = jnp.maximum(out * params["s2"] + params["b2"], 0.0)
    w3 = params["w3"].reshape(1, 1, *params["w3"].shape)
    out = conv(bf(out), bf(w3), 1, "VALID")
    out = out * params["s3"] + params["b3"]
    if "w_sc" in params:
        wsc = params["w_sc"].reshape(1, 1, *params["w_sc"].shape)
        sc = conv(bf(x), bf(wsc), stride, "VALID")
        sc = sc * params["s_sc"] + params["b_sc"]
    else:
        sc = x
    out = jnp.maximum(out + sc, 0.0)
    return jnp.transpose(out, (0, 3, 1, 2))


if __name__ == "__main__":
    key = jax.random.PRNGKey(0)

    configs = [
        # (batch, in_planes, planes, spatial, stride)
        (2, 4, 4, 16, 1),    # projection shortcut (in_planes != 4*planes)
        (2, 16, 4, 16, 1),   # identity shortcut  (in_planes == 4*planes)
        (2, 4, 4, 16, 2),    # strided projection shortcut
    ]
    for idx, (batch, in_planes, planes, spatial, stride) in enumerate(configs):
        k_x, k_p = jax.random.split(jax.random.fold_in(key, idx))
        x = jax.random.normal(k_x, (batch, in_planes, spatial, spatial),
                              jnp.float32)
        params = make_params(k_p, in_planes, planes, stride)

        out = jax.block_until_ready(bottleneck_forward(x, params, stride=stride))
        ref = jax.block_until_ready(bottleneck_reference(x, params, stride=stride))

        ho = (spatial - 1) // stride + 1
        assert out.shape == (batch, EXPANSION * planes, ho, ho), out.shape
        if not jnp.allclose(out, ref, atol=2e-3, rtol=2e-3):
            err = float(jnp.max(jnp.abs(out - ref)))
            raise AssertionError(
                f"Pallas bottleneck mismatch vs reference (config {idx}, "
                f"max abs err {err})")

    print("KERNEL_OK")
</pallas_src>

<mosaic_0001>
module attributes {stable_mosaic.version = 11 : i64} {
  func.func @_stage_a_kernel(%arg0: i32, %arg1: memref<1x16x16x128xbf16, #tpu.memory_space<vmem>>, %arg2: memref<128x128xbf16, #tpu.memory_space<vmem>>, %arg3: memref<1x128xf32, #tpu.memory_space<vmem>>, %arg4: memref<1x128xf32, #tpu.memory_space<vmem>>, %arg5: memref<3x384x128xbf16, #tpu.memory_space<vmem>>, %arg6: memref<1x128xf32, #tpu.memory_space<vmem>>, %arg7: memref<1x128xf32, #tpu.memory_space<vmem>>, %arg8: memref<1x16x16x128xbf16, #tpu.memory_space<vmem>>, %arg9: memref<18x16x384xbf16, #tpu.memory_space<vmem>>) attributes {dimension_semantics = [#tpu.dimension_semantics<parallel>], iteration_bounds = array<i64: 2>, scalar_prefetch = 0 : i64, scratch_operands = 1 : i64, tpu.core_type = #tpu.core_type<tc>, window_params = [{transform_indices = @transform_0, window_bounds = array<i64: 1, 16, 16, 128>}, {pipeline_mode = #tpu.pipeline_mode<synchronous>, transform_indices = @transform_1, window_bounds = array<i64: 128, 128>}, {pipeline_mode = #tpu.pipeline_mode<synchronous>, transform_indices = @transform_2, window_bounds = array<i64: 1, 128>}, {pipeline_mode = #tpu.pipeline_mode<synchronous>, transform_indices = @transform_3, window_bounds = array<i64: 1, 128>}, {pipeline_mode = #tpu.pipeline_mode<synchronous>, transform_indices = @transform_4, window_bounds = array<i64: 3, 384, 128>}, {pipeline_mode = #tpu.pipeline_mode<synchronous>, transform_indices = @transform_5, window_bounds = array<i64: 1, 128>}, {pipeline_mode = #tpu.pipeline_mode<synchronous>, transform_indices = @transform_6, window_bounds = array<i64: 1, 128>}, {transform_indices = @transform_7, window_bounds = array<i64: 1, 16, 16, 128>}]} {
    %c0 = arith.constant 0 : index
    %c0_0 = arith.constant 0 : index
    %c0_1 = arith.constant 0 : index
    %c0_2 = arith.constant 0 : index
    %0 = vector.load %arg1[%c0, %c0_0, %c0_1, %c0_2] : memref<1x16x16x128xbf16, #tpu.memory_space<vmem>>, vector<1x16x16x128xbf16>
    %1 = vector.shape_cast %0 : vector<1x16x16x128xbf16> to vector<256x128xbf16>
    %c0_3 = arith.constant 0 : index
    %c0_4 = arith.constant 0 : index
    %2 = vector.load %arg2[%c0_3, %c0_4] : memref<128x128xbf16, #tpu.memory_space<vmem>>, vector<128x128xbf16>
    %cst = arith.constant dense<0.000000e+00> : vector<256x128xf32>
    %3 = tpu.matmul %1, %2, %cst {dimension_numbers = #tpu.dot_dimension_numbers<[1], [0], [0], [1], [0, 0, 1, 1], [], []>} : vector<256x128xbf16>, vector<128x128xbf16>, vector<256x128xf32> -> vector<256x128xf32>
    %c0_5 = arith.constant 0 : index
    %c0_6 = arith.constant 0 : index
    %4 = vector.load %arg3[%c0_5, %c0_6] : memref<1x128xf32, #tpu.memory_space<vmem>>, vector<1x128xf32>
    %5 = vector.broadcast %4 : vector<1x128xf32> to vector<256x128xf32>
    %6 = arith.mulf %3, %5 : vector<256x128xf32>
    %c0_7 = arith.constant 0 : index
    %c0_8 = arith.constant 0 : index
    %7 = vector.load %arg4[%c0_7, %c0_8] : memref<1x128xf32, #tpu.memory_space<vmem>>, vector<1x128xf32>
    %8 = vector.broadcast %7 : vector<1x128xf32> to vector<256x128xf32>
    %9 = arith.addf %6, %8 : vector<256x128xf32>
    %cst_9 = arith.constant 0.000000e+00 : f32
    %10 = vector.broadcast %cst_9 : f32 to vector<256x128xf32>
    %11 = arith.maximumf %9, %10 : vector<256x128xf32>
    %12 = vector.shape_cast %11 : vector<256x128xf32> to vector<16x16x128xf32>
    %13 = arith.truncf %12 : vector<16x16x128xf32> to vector<16x16x128xbf16>
    %cst_10 = arith.constant 0.000000e+00 : bf16
    %14 = vector.broadcast %cst_10 : bf16 to vector<16x1x128xbf16>
    %15 = vector.extract_strided_slice %13 {offsets = [0, 0, 0], sizes = [16, 15, 128], strides = [1, 1, 1]} : vector<16x16x128xbf16> to vector<16x15x128xbf16>
    %16 = tpu.concatenate %14, %15 in 1 : vector<16x1x128xbf16>, vector<16x15x128xbf16> -> vector<16x16x128xbf16>
    %17 = vector.extract_strided_slice %13 {offsets = [0, 1, 0], sizes = [16, 15, 128], strides = [1, 1, 1]} : vector<16x16x128xbf16> to vector<16x15x128xbf16>
    %18 = tpu.concatenate %17, %14 in 1 : vector<16x15x128xbf16>, vector<16x1x128xbf16> -> vector<16x16x128xbf16>
    %cst_11 = arith.constant 0.000000e+00 : bf16
    %19 = vector.broadcast %cst_11 : bf16 to vector<1x16x384xbf16>
    %c0_12 = arith.constant 0 : index
    %c0_13 = arith.constant 0 : index
    %c0_14 = arith.constant 0 : index
    %20 = vector.load %arg9[%c0_12, %c0_13, %c0_14] : memref<18x16x384xbf16, #tpu.memory_space<vmem>>, vector<1x16x384xbf16>
    tpu.vector_store %arg9[%c0_12, %c0_13, %c0_14], %19 {strides = array<i32>} : memref<18x16x384xbf16, #tpu.memory_space<vmem>>, vector<1x16x384xbf16>,
    %c17 = arith.constant 17 : index
    %c0_15 = arith.constant 0 : index
    %c0_16 = arith.constant 0 : index
    %21 = vector.load %arg9[%c17, %c0_15, %c0_16] : memref<18x16x384xbf16, #tpu.memory_space<vmem>>, vector<1x16x384xbf16>
    tpu.vector_store %arg9[%c17, %c0_15, %c0_16], %19 {strides = array<i32>} : memref<18x16x384xbf16, #tpu.memory_space<vmem>>, vector<1x16x384xbf16>,
    %22 = tpu.concatenate %16, %13, %18 in 2 : vector<16x16x128xbf16>, vector<16x16x128xbf16>, vector<16x16x128xbf16> -> vector<16x16x384xbf16>
    %c1 = arith.constant 1 : index
    %c0_17 = arith.constant 0 : index
    %c0_18 = arith.constant 0 : index
    %23 = vector.load %arg9[%c1, %c0_17, %c0_18] : memref<18x16x384xbf16, #tpu.memory_space<vmem>>, vector<16x16x384xbf16>
    tpu.vector_store %arg9[%c1, %c0_17, %c0_18], %22 {strides = array<i32>} : memref<18x16x384xbf16, #tpu.memory_space<vmem>>, vector<16x16x384xbf16>,
    %cst_19 = arith.constant 0.000000e+00 : f32
    %24 = vector.broadcast %cst_19 : f32 to vector<256x128xf32>
    %c0_20 = arith.constant 0 : index
    %c0_21 = arith.constant 0 : index
    %c0_22 = arith.constant 0 : index
    %25 = vector.load %arg9[%c0_20, %c0_21, %c0_22] : memref<18x16x384xbf16, #tpu.memory_space<vmem>>, vector<16x16x384xbf16>
    %26 = vector.shape_cast %25 : vector<16x16x384xbf16> to vector<256x384xbf16>
    %c0_23 = arith.constant 0 : index
    %c0_24 = arith.constant 0 : index
    %c0_25 = arith.constant 0 : index
    %27 = vector.load %arg5[%c0_23, %c0_24, %c0_25] : memref<3x384x128xbf16, #tpu.memory_space<vmem>>, vector<1x384x128xbf16>
    %28 = vector.shape_cast %27 : vector<1x384x128xbf16> to vector<384x128xbf16>
    %cst_26 = arith.constant dense<0.000000e+00> : vector<256x128xf32>
    %29 = tpu.matmul %26, %28, %cst_26 {dimension_numbers = #tpu.dot_dimension_numbers<[1], [0], [0], [1], [0, 0, 1, 1], [], []>} : vector<256x384xbf16>, vector<384x128xbf16>, vector<256x128xf32> -> vector<256x128xf32>
    %30 = arith.addf %24, %29 : vector<256x128xf32>
    %c1_27 = arith.constant 1 : index
    %c0_28 = arith.constant 0 : index
    %c0_29 = arith.constant 0 : index
    %31 = vector.load %arg9[%c1_27, %c0_28, %c0_29] : memref<18x16x384xbf16, #tpu.memory_space<vmem>>, vector<16x16x384xbf16>
    %32 = vector.shape_cast %31 : vector<16x16x384xbf16> to vector<256x384xbf16>
    %c1_30 = arith.constant 1 : index
    %c0_31 = arith.constant 0 : index
    %c0_32 = arith.constant 0 : index
    %33 = vector.load %arg5[%c1_30, %c0_31, %c0_32] : memref<3x384x128xbf16, #tpu.memory_space<vmem>>, vector<1x384x128xbf16>
    %34 = vector.shape_cast %33 : vector<1x384x128xbf16> to vector<384x128xbf16>
    %cst_33 = arith.constant dense<0.000000e+00> : vector<256x128xf32>
    %35 = tpu.matmul %32, %34, %cst_33 {dimension_numbers = #tpu.dot_dimension_numbers<[1], [0], [0], [1], [0, 0, 1, 1], [], []>} : vector<256x384xbf16>, vector<384x128xbf16>, vector<256x128xf32> -> vector<256x128xf32>
    %36 = arith.addf %30, %35 : vector<256x128xf32>
    %c2 = arith.constant 2 : index
    %c0_34 = arith.constant 0 : index
    %c0_35 = arith.constant 0 : index
    %37 = vector.load %arg9[%c2, %c0_34, %c0_35] : memref<18x16x384xbf16, #tpu.memory_space<vmem>>, vector<16x16x384xbf16>
    %38 = vector.shape_cast %37 : vector<16x16x384xbf16> to vector<256x384xbf16>
    %c2_36 = arith.constant 2 : index
    %c0_37 = arith.constant 0 : index
    %c0_38 = arith.constant 0 : index
    %39 = vector.load %arg5[%c2_36, %c0_37, %c0_38] : memref<3x384x128xbf16, #tpu.memory_space<vmem>>, vector<1x384x128xbf16>
    %40 = vector.shape_cast %39 : vector<1x384x128xbf16> to vector<384x128xbf16>
    %cst_39 = arith.constant dense<0.000000e+00> : vector<256x128xf32>
    %41 = tpu.matmul %38, %40, %cst_39 {dimension_numbers = #tpu.dot_dimension_numbers<[1], [0], [0], [1], [0, 0, 1, 1], [], []>} : vector<256x384xbf16>, vector<384x128xbf16>, vector<256x128xf32> -> vector<256x128xf32>
    %42 = arith.addf %36, %41 : vector<256x128xf32>
    %43 = vector.shape_cast %42 : vector<256x128xf32> to vector<16x16x128xf32>
    %c0_40 = arith.constant 0 : index
    %c0_41 = arith.constant 0 : index
    %44 = vector.load %arg6[%c0_40, %c0_41] : memref<1x128xf32, #tpu.memory_space<vmem>>, vector<1x128xf32>
    %45 = vector.shape_cast %44 : vector<1x128xf32> to vector<1x1x128xf32>
    %46 = vector.broadcast %45 : vector<1x1x128xf32> to vector<16x16x128xf32>
    %47 = arith.mulf %43, %46 : vector<16x16x128xf32>
    %c0_42 = arith.constant 0 : index
    %c0_43 = arith.constant 0 : index
    %48 = vector.load %arg7[%c0_42, %c0_43] : memref<1x128xf32, #tpu.memory_space<vmem>>, vector<1x128xf32>
    %49 = vector.shape_cast %48 : vector<1x128xf32> to vector<1x1x128xf32>
    %50 = vector.broadcast %49 : vector<1x1x128xf32> to vector<16x16x128xf32>
    %51 = arith.addf %47, %50 : vector<16x16x128xf32>
    %cst_44 = arith.constant 0.000000e+00 : f32
    %52 = vector.broadcast %cst_44 : f32 to vector<16x16x128xf32>
    %53 = arith.maximumf %51, %52 : vector<16x16x128xf32>
    %54 = vector.shape_cast %53 : vector<16x16x128xf32> to vector<1x16x16x128xf32>
    %55 = arith.truncf %54 : vector<1x16x16x128xf32> to vector<1x16x16x128xbf16>
    %c0_45 = arith.constant 0 : index
    %c0_46 = arith.constant 0 : index
    %c0_47 = arith.constant 0 : index
    %c0_48 = arith.constant 0 : index
    %56 = vector.load %arg8[%c0_45, %c0_46, %c0_47, %c0_48] : memref<1x16x16x128xbf16, #tpu.memory_space<vmem>>, vector<1x16x16x128xbf16>
    tpu.vector_store %arg8[%c0_45, %c0_46, %c0_47, %c0_48], %55 {strides = array<i32>} : memref<1x16x16x128xbf16, #tpu.memory_space<vmem>>, vector<1x16x16x128xbf16>,
    return
  }
  func.func @transform_0(%arg0: i32) -> (i32, i32, i32, i32) {
    %c0_i32 = arith.constant 0 : i32
    %c0_i32_0 = arith.constant 0 : i32
    %c0_i32_1 = arith.constant 0 : i32
    %c0_i32_2 = arith.constant 0 : i32
    return %arg0, %c0_i32, %c0_i32_0, %c0_i32_1 : i32, i32, i32, i32
  }
  func.func @transform_1(%arg0: i32) -> (i32, i32) {
    %c0_i32 = arith.constant 0 : i32
    %c0_i32_0 = arith.constant 0 : i32
    %c0_i32_1 = arith.constant 0 : i32
    return %c0_i32, %c0_i32_0 : i32, i32
  }
  func.func @transform_2(%arg0: i32) -> (i32, i32) {
    %c0_i32 = arith.constant 0 : i32
    %c0_i32_0 = arith.constant 0 : i32
    %c0_i32_1 = arith.constant 0 : i32
    return %c0_i32, %c0_i32_0 : i32, i32
  }
  func.func @transform_3(%arg0: i32) -> (i32, i32) {
    %c0_i32 = arith.constant 0 : i32
    %c0_i32_0 = arith.constant 0 : i32
    %c0_i32_1 = arith.constant 0 : i32
    return %c0_i32, %c0_i32_0 : i32, i32
  }
  func.func @transform_4(%arg0: i32) -> (i32, i32, i32) {
    %c0_i32 = arith.constant 0 : i32
    %c0_i32_0 = arith.constant 0 : i32
    %c0_i32_1 = arith.constant 0 : i32
    %c0_i32_2 = arith.constant 0 : i32
    return %c0_i32, %c0_i32_0, %c0_i32_1 : i32, i32, i32
  }
  func.func @transform_5(%arg0: i32) -> (i32, i32) {
    %c0_i32 = arith.constant 0 : i32
    %c0_i32_0 = arith.constant 0 : i32
    %c0_i32_1 = arith.constant 0 : i32
    return %c0_i32, %c0_i32_0 : i32, i32
  }
  func.func @transform_6(%arg0: i32) -> (i32, i32) {
    %c0_i32 = arith.constant 0 : i32
    %c0_i32_0 = arith.constant 0 : i32
    %c0_i32_1 = arith.constant 0 : i32
    return %c0_i32, %c0_i32_0 : i32, i32
  }
  func.func @transform_7(%arg0: i32) -> (i32, i32, i32, i32) {
    %c0_i32 = arith.constant 0 : i32
    %c0_i32_0 = arith.constant 0 : i32
    %c0_i32_1 = arith.constant 0 : i32
    %c0_i32_2 = arith.constant 0 : i32
    return %arg0, %c0_i32, %c0_i32_0, %c0_i32_1 : i32, i32, i32, i32
  }
}

</mosaic_0001>

<llo_original>
// kernel: tpu_custom_call.1
$region0: #{tpu_custom_call.1}
  #allocation0 [shape = 'u32[]', space=smem, size = 0x4, offset = 0x4, fixed_abs, tag = 'smem constant byte address 0x4 - core index']
  #allocation1 [shape = 'u32[144,128]{1,0:T(1,128)}', space=vmem, size = 0x12000, scoped, tag = 'internal scratch']
  #allocation2 [shape = 'bf16[18,16,384]{2,1,0:T(16,128)(2,1)}', space=vmem, size = 0x36000, scoped, tag = 'scratch operand']
  %s0 = inlined_call_operand.hbm [shape: bf16[2,16,16,128], index: 0, kind: input, shape index: {}]
  %s1 = inlined_call_operand.hbm [shape: bf16[128,128], index: 1, kind: input, shape index: {}]
  %s2 = inlined_call_operand.vmem [shape: f32[1,128], index: 2, kind: input, shape index: {}]
  %s3 = inlined_call_operand.vmem [shape: f32[1,128], index: 3, kind: input, shape index: {}]
  %s4 = inlined_call_operand.hbm [shape: bf16[3,384,128], index: 4, kind: input, shape index: {}]
  %s5 = inlined_call_operand.vmem [shape: f32[1,128], index: 5, kind: input, shape index: {}]
  %s6 = inlined_call_operand.vmem [shape: f32[1,128], index: 6, kind: input, shape index: {}]
  %s7 = inlined_call_operand.hbm [shape: bf16[2,16,16,128], index: 7, kind: output, shape index: {}]
  %s8 = sld [smem:[#allocation0]]
  $region73: #{tpu_custom_call.1} parent=0
    _
  %s10 = ssub.s32 1, %s8
  %s11 = scalar_select 0, %s10, %s8
  $region1: #{tpu_custom_call.1} parent=0
    #allocation3 [shape = 'u8[131072]{0}', space=vmem, size = 0x20000, scoped, tag = 'input window, operand 0']
    #allocation4 [shape = 's32[2]{0}', space=sflag, size = 0x8, scoped, tag = 'scoped memory for tpu_custom_call.1']
    #allocation5 [shape = 's32[2]{0}', space=sflag, size = 0x8, scoped, tag = 'scoped memory for tpu_custom_call.1']
    #allocation6 [shape = 'u8[32768]{0}', space=vmem, size = 0x8000, scoped, tag = 'input window, operand 1, single buffered']
    #allocation7 [shape = 's32[1]{0}', space=sflag, size = 0x4, scoped, tag = 'scoped memory for tpu_custom_call.1']
    #allocation8 [shape = 'u8[294912]{0}', space=vmem, size = 0x48000, scoped, tag = 'input window, operand 4, single buffered']
    #allocation9 [shape = 'u8[131072]{0}', space=vmem, size = 0x20000, scoped, tag = 'output window, operand 0']
    %12 = vsyncpa [#allocation4], 0
    %s13 = scalar_lea.sflag [#allocation4], 1
    %14 = vsyncpa %s13, 0
    %15 = vsyncpa [#allocation7], 0
    %16 = vsyncpa [#allocation5], 0
    %s17 = scalar_lea.sflag [#allocation5], 1
    %18 = vsyncpa %s17, 0
    loop: start=0, step=1, limit=4
    $region2: #{tpu_custom_call.1} parent=1 // loop_pre_header
      _
    $region3: #{tpu_custom_call.1} parent=1 // loop_header
      %s20 = sphi 0, %s24
      %p21 = scmp.ge.s32.totalorder %s20, 4
      %s30 = sphi 0, %s32
      %s33 = sphi 0, %s30
      %s34 = sphi 0, %s33
      %s50 = sphi 0, %s34
      %s54 = sphi 0, %s54
      %s56 = sphi 0, %s54
      %s57 = sphi 0, %s56
      %s71 = sphi 0, %s57
      %s75 = sphi 0, %s75
      %s77 = sphi 0, %s75
      %s78 = sphi 0, %s77
      %s92 = sphi 0, %s78
      %s96 = sphi 0, %s96
      %s98 = sphi 0, %s96
      %s99 = sphi 0, %s98
      %s113 = sphi 0, %s99
      %s117 = sphi 0, %s117
      %s119 = sphi 0, %s117
      %s120 = sphi 0, %s119
      %s134 = sphi 0, %s120
      %s138 = sphi 0, %s138
      %s140 = sphi 0, %s138
      %s141 = sphi 0, %s140
      %s155 = sphi 0, %s141
      %s159 = sphi 0, %s159
      %s161 = sphi 0, %s159
      %s162 = sphi 0, %s161
      %s176 = sphi 0, %s162
      %s182 = sphi 0, %s184
      %s185 = sphi 0, %s182
      %s186 = sphi 0, %s185
      %s202 = sphi 0, %s186
    $region4: #{tpu_custom_call.1} parent=1 // loop_header_branch
      %23 = sbr.rel (%p21) target = $region8
    $region5: #{tpu_custom_call.1} parent=1 // loop_body
      %s25 = ssub.s32 %s20, 1
      %s26 = ssub.s32 %s20, 2
      %s27 = sadd.s32 %s20, 1
      %s28 = ssub.s32 %s20, %s27
      %p29 = scmp.eq.s32.totalorder %s28, 0
      %s31 = sadd.s32 %s30, 1
      %s32 = scalar_select %p29, %s30, %s31
      %p35 = pneg %p29
      %p36 = scmp.eq.s32.totalorder %s20, 1
      %p37 = por %p35, %p36
      %p38 = scmp.ne.s32.totalorder %s30, %s33
      %p39 = scmp.eq.s32.totalorder %s20, 0
      %p40 = por %p38, %p39
      %p41 = scmp.ne.s32.totalorder %s30, %s33
      %p42 = scmp.eq.s32.totalorder %s25, 1
      %p43 = por %p41, %p42
      %p44 = scmp.ne.s32.totalorder %s33, %s34
      %p45 = scmp.eq.s32.totalorder %s25, 0
      %p46 = por %p44, %p45
      %p47 = scmp.ne.s32.totalorder %s33, %s34
      %p48 = scmp.eq.s32.totalorder %s26, 1
      %p49 = por %p47, %p48
      %p51 = scmp.ne.s32.totalorder %s34, %s50
      %p52 = scmp.eq.s32.totalorder %s26, 0
      %p53 = por %p51, %p52
      %s55 = sadd.s32 %s54, 1
      %p58 = scmp.eq.s32.totalorder %s20, 1
      %p59 = scmp.ne.s32.totalorder %s54, %s56
      %p60 = scmp.eq.s32.totalorder %s20, 0
      %p61 = por %p59, %p60
      %p62 = scmp.ne.s32.totalorder %s54, %s56
      %p63 = scmp.eq.s32.totalorder %s25, 1
      %p64 = por %p62, %p63
      %p65 = scmp.ne.s32.totalorder %s56, %s57
      %p66 = scmp.eq.s32.totalorder %s25, 0
      %p67 = por %p65, %p66
      %p68 = scmp.ne.s32.totalorder %s56, %s57
      %p69 = scmp.eq.s32.totalorder %s26, 1
      %p70 = por %p68, %p69
      %p72 = scmp.ne.s32.totalorder %s57, %s71
      %p73 = scmp.eq.s32.totalorder %s26, 0
      %p74 = por %p72, %p73
      %s76 = sadd.s32 %s75, 1
      %p79 = scmp.eq.s32.totalorder %s20, 1
      %p80 = scmp.ne.s32.totalorder %s75, %s77
      %p81 = scmp.eq.s32.totalorder %s20, 0
      %p82 = por %p80, %p81
      %p83 = scmp.ne.s32.totalorder %s75, %s77
      %p84 = scmp.eq.s32.totalorder %s25, 1
      %p85 = por %p83, %p84
      %p86 = scmp.ne.s32.totalorder %s77, %s78
      %p87 = scmp.eq.s32.totalorder %s25, 0
      %p88 = por %p86, %p87
      %p89 = scmp.ne.s32.totalorder %s77, %s78
      %p90 = scmp.eq.s32.totalorder %s26, 1
      %p91 = por %p89, %p90
      %p93 = scmp.ne.s32.totalorder %s78, %s92
      %p94 = scmp.eq.s32.totalorder %s26, 0
      %p95 = por %p93, %p94
      %s97 = sadd.s32 %s96, 1
      %p100 = scmp.eq.s32.totalorder %s20, 1
      %p101 = scmp.ne.s32.totalorder %s96, %s98
      %p102 = scmp.eq.s32.totalorder %s20, 0
      %p103 = por %p101, %p102
      %p104 = scmp.ne.s32.totalorder %s96, %s98
      %p105 = scmp.eq.s32.totalorder %s25, 1
      %p106 = por %p104, %p105
      %p107 = scmp.ne.s32.totalorder %s98, %s99
      %p108 = scmp.eq.s32.totalorder %s25, 0
      %p109 = por %p107, %p108
      %p110 = scmp.ne.s32.totalorder %s98, %s99
      %p111 = scmp.eq.s32.totalorder %s26, 1
      %p112 = por %p110, %p111
      %p114 = scmp.ne.s32.totalorder %s99, %s113
      %p115 = scmp.eq.s32.totalorder %s26, 0
      %p116 = por %p114, %p115
      %s118 = sadd.s32 %s117, 1
      %p121 = scmp.eq.s32.totalorder %s20, 1
      %p122 = scmp.ne.s32.totalorder %s117, %s119
      %p123 = scmp.eq.s32.totalorder %s20, 0
      %p124 = por %p122, %p123
      %p125 = scmp.ne.s32.totalorder %s117, %s119
      %p126 = scmp.eq.s32.totalorder %s25, 1
      %p127 = por %p125, %p126
      %p128 = scmp.ne.s32.totalorder %s119, %s120
      %p129 = scmp.eq.s32.totalorder %s25, 0
      %p130 = por %p128, %p129
      %p131 = scmp.ne.s32.totalorder %s119, %s120
      %p132 = scmp.eq.s32.totalorder %s26, 1
      %p133 = por %p131, %p132
      %p135 = scmp.ne.s32.totalorder %s120, %s134
      %p136 = scmp.eq.s32.totalorder %s26, 0
      %p137 = por %p135, %p136
      %s139 = sadd.s32 %s138, 1
      %p142 = scmp.eq.s32.totalorder %s20, 1
      %p143 = scmp.ne.s32.totalorder %s138, %s140
      %p144 = scmp.eq.s32.totalorder %s20, 0
      %p145 = por %p143, %p144
      %p146 = scmp.ne.s32.totalorder %s138, %s140
      %p147 = scmp.eq.s32.totalorder %s25, 1
      %p148 = por %p146, %p147
      %p149 = scmp.ne.s32.totalorder %s140, %s141
      %p150 = scmp.eq.s32.totalorder %s25, 0
      %p151 = por %p149, %p150
      %p152 = scmp.ne.s32.totalorder %s140, %s141
      %p153 = scmp.eq.s32.totalorder %s26, 1
      %p154 = por %p152, %p153
      %p156 = scmp.ne.s32.totalorder %s141, %s155
      %p157 = scmp.eq.s32.totalorder %s26, 0
      %p158 = por %p156, %p157
      %s160 = sadd.s32 %s159, 1
      %p163 = scmp.eq.s32.totalorder %s20, 1
      %p164 = scmp.ne.s32.totalorder %s159, %s161
      %p165 = scmp.eq.s32.totalorder %s20, 0
      %p166 = por %p164, %p165
      %p167 = scmp.ne.s32.totalorder %s159, %s161
      %p168 = scmp.eq.s32.totalorder %s25, 1
      %p169 = por %p167, %p168
      %p170 = scmp.ne.s32.totalorder %s161, %s162
      %p171 = scmp.eq.s32.totalorder %s25, 0
      %p172 = por %p170, %p171
      %p173 = scmp.ne.s32.totalorder %s161, %s162
      %p174 = scmp.eq.s32.totalorder %s26, 1
      %p175 = por %p173, %p174
      %p177 = scmp.ne.s32.totalorder %s162, %s176
      %p178 = scmp.eq.s32.totalorder %s26, 0
      %p179 = por %p177, %p178
      %s180 = ssub.s32 %s20, %s27
      %p181 = scmp.eq.s32.totalorder %s180, 0
      %s183 = sadd.s32 %s182, 1
      %s184 = scalar_select %p181, %s182, %s183
      %p187 = pneg %p181
      %p188 = scmp.eq.s32.totalorder %s20, 1
      %p189 = por %p187, %p188
      %p190 = scmp.ne.s32.totalorder %s182, %s185
      %p191 = scmp.eq.s32.totalorder %s20, 0
      %p192 = por %p190, %p191
      %p193 = scmp.ne.s32.totalorder %s182, %s185
      %p194 = scmp.eq.s32.totalorder %s25, 1
      %p195 = por %p193, %p194
      %p196 = scmp.ne.s32.totalorder %s185, %s186
      %p197 = scmp.eq.s32.totalorder %s25, 0
      %p198 = por %p196, %p197
      %p199 = scmp.ne.s32.totalorder %s185, %s186
      %p200 = scmp.eq.s32.totalorder %s26, 1
      %p201 = por %p199, %p200
      %p203 = scmp.ne.s32.totalorder %s186, %s202
      %p204 = scmp.eq.s32.totalorder %s26, 0
      %p205 = por %p203, %p204
      %p206 = scmp.le.s32.totalorder 1, %s20
      %p207 = scmp.lt.s32.totalorder %s20, 3
      %p208 = pnand %p206, %p207
      %p209 = pneg %p208
      // Predicated region
      $region9: #{tpu_custom_call.1} parent=5 // pred_check
        _
      $region10: #{tpu_custom_call.1} parent=5 // pred_check_branch
        %211 = sbr.rel (%p208) target = $region12
      $region11: #{tpu_custom_call.1} parent=5 // pred_region
        %s212 = ssub.s32 %s20, 1
        // Predicated region
        $region13: #{tpu_custom_call.1} parent=11 // pred_check
          %p213 = pneg %p67
        $region14: #{tpu_custom_call.1} parent=11 // pred_check_branch
          %215 = sbr.rel (%p213) target = $region16
        $region15: #{tpu_custom_call.1} parent=11 // pred_region
          %s217 = ssub.s32 1024, 1024
          %218 = vsyncadd [#allocation7], %s217
          %s219 = sshll.u32 [#allocation6], 4
          %s220 = int_to_ptr.vmem [resolvable:$true] %s219
          %225 = dma.hbm_to_vmem [thread:$0]  %s1, 1024, %s220, [#allocation7], 64, 64, 4
        $region16: #{tpu_custom_call.1} parent=11 // pred_fallthru
          _
        // Predicated region
        $region17: #{tpu_custom_call.1} parent=11 // pred_check
          %p226 = pneg %p88
        $region18: #{tpu_custom_call.1} parent=11 // pred_check_branch
          %228 = sbr.rel (%p226) target = $region20
        $region19: #{tpu_custom_call.1} parent=11 // pred_region
          _
        $region20: #{tpu_custom_call.1} parent=11 // pred_fallthru
          _
        // Predicated region
        $region21: #{tpu_custom_call.1} parent=11 // pred_check
          %p229 = pneg %p109
        $region22: #{tpu_custom_call.1} parent=11 // pred_check_branch
          %231 = sbr.rel (%p229) target = $region24
        $region23: #{tpu_custom_call.1} parent=11 // pred_region
          _
        $region24: #{tpu_custom_call.1} parent=11 // pred_fallthru
          _
        // Predicated region
        $region25: #{tpu_custom_call.1} parent=11 // pred_check
          %p232 = pneg %p130
        $region26: #{tpu_custom_call.1} parent=11 // pred_check_branch
          %234 = sbr.rel (%p232) target = $region28
        $region27: #{tpu_custom_call.1} parent=11 // pred_region
          %s236 = ssub.s32 9216, 9216
          %237 = vsyncadd [#allocation7], %s236
          %s238 = sshll.u32 [#allocation8], 4
          %s239 = int_to_ptr.vmem [resolvable:$true] %s238
          %244 = dma.hbm_to_vmem [thread:$0]  %s4, 9216, %s239, [#allocation7], 64, 64, 4
        $region28: #{tpu_custom_call.1} parent=11 // pred_fallthru
          _
        // Predicated region
        $region29: #{tpu_custom_call.1} parent=11 // pred_check
          %p245 = pneg %p151
        $region30: #{tpu_custom_call.1} parent=11 // pred_check_branch
          %247 = sbr.rel (%p245) target = $region32
        $region31: #{tpu_custom_call.1} parent=11 // pred_region
          _
        $region32: #{tpu_custom_call.1} parent=11 // pred_fallthru
          _
        // Predicated region
        $region33: #{tpu_custom_call.1} parent=11 // pred_check
          %p248 = pneg %p172
        $region34: #{tpu_custom_call.1} parent=11 // pred_check_branch
          %250 = sbr.rel (%p248) target = $region36
        $region35: #{tpu_custom_call.1} parent=11 // pred_region
          _
        $region36: #{tpu_custom_call.1} parent=11 // pred_fallthru
          _
      $region12: #{tpu_custom_call.1} parent=5 // pred_fallthru
        _
      %p251 = scmp.lt.s32.totalorder %s20, 2
      // Predicated region
      $region37: #{tpu_custom_call.1} parent=5 // pred_check
        %p252 = pneg %p251
      $region38: #{tpu_custom_call.1} parent=5 // pred_check_branch
        %254 = sbr.rel (%p252) target = $region40
      $region39: #{tpu_custom_call.1} parent=5 // pred_region
        // Predicated region
        $region41: #{tpu_custom_call.1} parent=39 // pred_check
          %p255 = pneg %p40
        $region42: #{tpu_custom_call.1} parent=39 // pred_check_branch
          %257 = sbr.rel (%p255) target = $region44
        $region43: #{tpu_custom_call.1} parent=39 // pred_region
          %s258 = sand.u32 %s30, 1
          %s259 = scalar_lea.sflag [#allocation4], %s258
          %s260 = sand.u32 %s30, 1
          %s261 = smul.addr %s260, 128
          %s262 = scalar_lea.vmem [#allocation3], %s261
          %s264 = ssub.s32 2048, 2048
          %265 = vsyncadd %s259, %s264
          %s266 = smul.addr %s20, 32
          %s267 = smul.addr %s266, 64
          %s268 = scalar_lea.hbm %s0, %s267
          %s269 = sshll.u32 %s262, 4
          %s270 = int_to_ptr.vmem [resolvable:$true] %s269
          %275 = dma.hbm_to_vmem [thread:$0]  %s268, 2048, %s270, %s259, 64, 64, 4
        $region44: #{tpu_custom_call.1} parent=39 // pred_fallthru
          _
      $region40: #{tpu_custom_call.1} parent=5 // pred_fallthru
        _
      %p276 = scmp.le.s32.totalorder 1, %s20
      %p277 = scmp.lt.s32.totalorder %s20, 3
      %p278 = pnand %p276, %p277
      %p279 = pneg %p278
      // Predicated region
      $region45: #{tpu_custom_call.1} parent=5 // pred_check
        _
      $region46: #{tpu_custom_call.1} parent=5 // pred_check_branch
        %281 = sbr.rel (%p278) target = $region48
      $region47: #{tpu_custom_call.1} parent=5 // pred_region
        %s282 = ssub.s32 %s20, 1
        %s283 = sand.u32 %s33, 1
        %s284 = scalar_lea.sflag [#allocation4], %s283
        %s285 = sand.u32 %s33, 1
        %s286 = smul.addr %s285, 128
        %s287 = scalar_lea.vmem [#allocation3], %s286
        // Predicated region
        $region49: #{tpu_custom_call.1} parent=47 // pred_check
          %p288 = pneg %p46
        $region50: #{tpu_custom_call.1} parent=47 // pred_check_branch
          %290 = sbr.rel (%p288) target = $region52
        $region51: #{tpu_custom_call.1} parent=47 // pred_region
          %291 = dma.done %s284, 2048
        $region52: #{tpu_custom_call.1} parent=47 // pred_fallthru
          _
        // Predicated region
        $region53: #{tpu_custom_call.1} parent=47 // pred_check
          %p292 = pneg %p67
        $region54: #{tpu_custom_call.1} parent=47 // pred_check_branch
          %294 = sbr.rel (%p292) target = $region56
        $region55: #{tpu_custom_call.1} parent=47 // pred_region
          %295 = dma.done [#allocation7], 1024
        $region56: #{tpu_custom_call.1} parent=47 // pred_fallthru
          _
        // Predicated region
        $region57: #{tpu_custom_call.1} parent=47 // pred_check
          %p296 = pneg %p130
        $region58: #{tpu_custom_call.1} parent=47 // pred_check_branch
          %298 = sbr.rel (%p296) target = $region60
        $region59: #{tpu_custom_call.1} parent=47 // pred_region
          %299 = dma.done [#allocation7], 9216
        $region60: #{tpu_custom_call.1} parent=47 // pred_fallthru
          _
        %s300 = sand.u32 %s33, 1
        %s301 = scalar_lea.sflag [#allocation4], %s300
        %s302 = sand.u32 %s33, 1
        %s303 = smul.addr %s302, 128
        %s304 = scalar_lea.vmem [#allocation3], %s303
        %p305 = pneg %p46
        %p306 = pneg %p43
        %p307 = pneg %p67
        %p308 = pneg %p64
        %p309 = pneg %p88
        %p310 = pneg %p85
        %p311 = pneg %p109
        %p312 = pneg %p106
        %p313 = pneg %p130
        %p314 = pneg %p127
        %p315 = pneg %p151
        %p316 = pneg %p148
        %p317 = pneg %p172
        %p318 = pneg %p169
        %p319 = pneg %p198
        %p320 = pneg %p195
        %s321 = sand.u32 %s185, 1
        %s322 = scalar_lea.sflag [#allocation5], %s321
        %s323 = sand.u32 %s185, 1
        %s324 = smul.addr %s323, 128
        %s325 = scalar_lea.vmem [#allocation9], %s324
        %v327 = vld [vmem:[%s287] sm:$0xf]
        %v328 = vld [vmem:[%s287 + $0x4] sm:$0xf]
        %v329 = vld [vmem:[%s287 + $0x8] sm:$0xf]
        %v330 = vld [vmem:[%s287 + $0xc] sm:$0xf]
        %v331 = vld [vmem:[%s287 + $0x10] sm:$0xf]
        %v332 = vld [vmem:[%s287 + $0x14] sm:$0xf]
        %v333 = vld [vmem:[%s287 + $0x18] sm:$0xf]
        %v334 = vld [vmem:[%s287 + $0x1c] sm:$0xf]
        %v335 = vld [vmem:[%s287 + $0x20] sm:$0xf]
        %v336 = vld [vmem:[%s287 + $0x24] sm:$0xf]
        %v337 = vld [vmem:[%s287 + $0x28] sm:$0xf]
        %v338 = vld [vmem:[%s287 + $0x2c] sm:$0xf]
        %v339 = vld [vmem:[%s287 + $0x30] sm:$0xf]
        %v340 = vld [vmem:[%s287 + $0x34] sm:$0xf]
        %v341 = vld [vmem:[%s287 + $0x38] sm:$0xf]
        %v342 = vld [vmem:[%s287 + $0x3c] sm:$0xf]
        %v343 = vld [vmem:[%s287 + $0x40] sm:$0xf]
        %v344 = vld [vmem:[%s287 + $0x44] sm:$0xf]
        %v345 = vld [vmem:[%s287 + $0x48] sm:$0xf]
        %v346 = vld [vmem:[%s287 + $0x4c] sm:$0xf]
        %v347 = vld [vmem:[%s287 + $0x50] sm:$0xf]
        %v348 = vld [vmem:[%s287 + $0x54] sm:$0xf]
        %v349 = vld [vmem:[%s287 + $0x58] sm:$0xf]
        %v350 = vld [vmem:[%s287 + $0x5c] sm:$0xf]
        %v351 = vld [vmem:[%s287 + $0x60] sm:$0xf]
        %v352 = vld [vmem:[%s287 + $0x64] sm:$0xf]
        %v353 = vld [vmem:[%s287 + $0x68] sm:$0xf]
        %v354 = vld [vmem:[%s287 + $0x6c] sm:$0xf]
        %v355 = vld [vmem:[%s287 + $0x70] sm:$0xf]
        %v356 = vld [vmem:[%s287 + $0x74] sm:$0xf]
        %v357 = vld [vmem:[%s287 + $0x78] sm:$0xf]
        %v358 = vld [vmem:[%s287 + $0x7c] sm:$0xf]
        %v359 = vld [vmem:[#allocation6] sm:$0xf]
        %v360 = vld [vmem:[#allocation6 + $0x4] sm:$0xf]
        %v361 = vld [vmem:[#allocation6 + $0x8] sm:$0xf]
        %v362 = vld [vmem:[#allocation6 + $0xc] sm:$0xf]
        %v363 = vld [vmem:[#allocation6 + $0x10] sm:$0xf]
        %v364 = vld [vmem:[#allocation6 + $0x14] sm:$0xf]
        %v365 = vld [vmem:[#allocation6 + $0x18] sm:$0xf]
        %v366 = vld [vmem:[#allocation6 + $0x1c] sm:$0xf]
        %v367 = vld [vmem:[#allocation6 + $0x20] sm:$0xf]
        %v368 = vld [vmem:[#allocation6 + $0x24] sm:$0xf]
        %v369 = vld [vmem:[#allocation6 + $0x28] sm:$0xf]
        %v370 = vld [vmem:[#allocation6 + $0x2c] sm:$0xf]
        %v371 = vld [vmem:[#allocation6 + $0x30] sm:$0xf]
        %v372 = vld [vmem:[#allocation6 + $0x34] sm:$0xf]
        %v373 = vld [vmem:[#allocation6 + $0x38] sm:$0xf]
        %v374 = vld [vmem:[#allocation6 + $0x3c] sm:$0xf]
        %v407 = vunpack.c.l.b16 %v327
        %v408 = vunpack.c.l.b16 %v328
        %v409 = vunpack.c.l.b16 %v329
        %v410 = vunpack.c.l.b16 %v330
        %v411 = vunpack.c.l.b16 %v331
        %v412 = vunpack.c.l.b16 %v332
        %v413 = vunpack.c.l.b16 %v333
        %v414 = vunpack.c.l.b16 %v334
        %v415 = vunpack.c.l.b16 %v335
        %v416 = vunpack.c.l.b16 %v336
        %v417 = vunpack.c.l.b16 %v337
        %v418 = vunpack.c.l.b16 %v338
        %v419 = vunpack.c.l.b16 %v339
        %v420 = vunpack.c.l.b16 %v340
        %v421 = vunpack.c.l.b16 %v341
        %v422 = vunpack.c.l.b16 %v342
        %v423 = vunpack.c.l.b16 %v343
        %v424 = vunpack.c.l.b16 %v344
        %v425 = vunpack.c.l.b16 %v345
        %v426 = vunpack.c.l.b16 %v346
        %v427 = vunpack.c.l.b16 %v347
        %v428 = vunpack.c.l.b16 %v348
        %v429 = vunpack.c.l.b16 %v349
        %v430 = vunpack.c.l.b16 %v350
        %v431 = vunpack.c.l.b16 %v351
        %v432 = vunpack.c.l.b16 %v352
        %v433 = vunpack.c.l.b16 %v353
        %v434 = vunpack.c.l.b16 %v354
        %v435 = vunpack.c.l.b16 %v355
        %v436 = vunpack.c.l.b16 %v356
        %v437 = vunpack.c.l.b16 %v357
        %v438 = vunpack.c.l.b16 %v358
        %v439 = vpack.c.b16 %v408, %v407
        %v440 = vpack.c.b16 %v410, %v409
        %v441 = vpack.c.b16 %v412, %v411
        %v442 = vpack.c.b16 %v414, %v413
        %v443 = vpack.c.b16 %v416, %v415
        %v444 = vpack.c.b16 %v418, %v417
        %v445 = vpack.c.b16 %v420, %v419
        %v446 = vpack.c.b16 %v422, %v421
        %v447 = vpack.c.b16 %v424, %v423
        %v448 = vpack.c.b16 %v426, %v425
        %v449 = vpack.c.b16 %v428, %v427
        %v450 = vpack.c.b16 %v430, %v429
        %v451 = vpack.c.b16 %v432, %v431
        %v452 = vpack.c.b16 %v434, %v433
        %v453 = vpack.c.b16 %v436, %v435
        %v454 = vpack.c.b16 %v438, %v437
        %v487 = vunpack.c.l.b16 %v359
        %v488 = vunpack.c.l.b16 %v360
        %v489 = vunpack.c.l.b16 %v361
        %v490 = vunpack.c.l.b16 %v362
        %v491 = vunpack.c.l.b16 %v363
        %v492 = vunpack.c.l.b16 %v364
        %v493 = vunpack.c.l.b16 %v365
        %v494 = vunpack.c.l.b16 %v366
        %v495 = vunpack.c.l.b16 %v367
        %v496 = vunpack.c.l.b16 %v368
        %v497 = vunpack.c.l.b16 %v369
        %v498 = vunpack.c.l.b16 %v370
        %v499 = vunpack.c.l.b16 %v371
        %v500 = vunpack.c.l.b16 %v372
        %v501 = vunpack.c.l.b16 %v373
        %v502 = vunpack.c.l.b16 %v374
        %v503 = vpack.c.b16 %v488, %v487
        %v504 = vpack.c.b16 %v490, %v489
        %v505 = vpack.c.b16 %v492, %v491
        %v506 = vpack.c.b16 %v494, %v493
        %v507 = vpack.c.b16 %v496, %v495
        %v508 = vpack.c.b16 %v498, %v497
        %v509 = vpack.c.b16 %v500, %v499
        %v510 = vpack.c.b16 %v502, %v501
        %519 = vmatprep.subr.bf16.mxu0 0
        %520 = vmatpush1.bf16.msra.mxu0 %v503
        %521 = vmatprep.subr.bf16.mxu0 0
        %522 = vmatpush1.bf16.msra.mxu0 %v504
        %523 = vmatprep.subr.bf16.mxu0 0
        %524 = vmatpush1.bf16.msra.mxu0 %v505
        %525 = vmatprep.subr.bf16.mxu0 0
        %526 = vmatpush1.bf16.msra.mxu0 %v506
        %527 = vmatprep.subr.bf16.mxu0 0
        %528 = vmatpush1.bf16.msra.mxu0 %v507
        %529 = vmatprep.subr.bf16.mxu0 0
        %530 = vmatpush1.bf16.msra.mxu0 %v508
        %531 = vmatprep.subr.bf16.mxu0 0
        %532 = vmatpush1.bf16.msra.mxu0 %v509
        %533 = vmatprep.subr.bf16.mxu0 0
        %534 = vmatpush1.bf16.msra.mxu0 %v510
        %535 = vmatprep.subr.bf16.mxu0 0
        %536 = vmatpush1.bf16.msra.mxu0 0
        %537 = vmatprep.subr.bf16.mxu0 0
        %538 = vmatpush1.bf16.msra.mxu0 0
        %539 = vmatprep.subr.bf16.mxu0 0
        %540 = vmatpush1.bf16.msra.mxu0 0
        %541 = vmatprep.subr.bf16.mxu0 0
        %542 = vmatpush1.bf16.msra.mxu0 0
        %543 = vmatprep.subr.bf16.mxu0 0
        %544 = vmatpush1.bf16.msra.mxu0 0
        %545 = vmatprep.subr.bf16.mxu0 0
        %546 = vmatpush1.bf16.msra.mxu0 0
        %547 = vmatprep.subr.bf16.mxu0 0
        %548 = vmatpush1.bf16.msra.mxu0 0
        %549 = vmatprep.subr.bf16.mxu0 0
        %550 = vmatpush1.bf16.msra.mxu0 0
        %551 = vmatprep.mubr.bf16.mxu0 0
        %552 = vmatmul.mubr.bf16.gmra.mrb[0].mxu0 %v439
        %v553 = vpop.f32.mrb[0].mxu0
        %v554 = vadd.f32 0.0, %v553
        %v555 = vpop.f32.mrb[0].mxu0
        %v556 = vpop.f32.mrb[0].mxu0
        %v557 = vadd.f32 0.0, %v556
        %v558 = vpop.f32.mrb[0].mxu0
        %559 = vmatprep.mubr.bf16.mxu0 0
        %560 = vmatmul.mubr.bf16.gmra.mrb[0].mxu0 %v440
        %v561 = vpop.f32.mrb[0].mxu0
        %v562 = vadd.f32 0.0, %v561
        %v563 = vpop.f32.mrb[0].mxu0
        %v564 = vpop.f32.mrb[0].mxu0
        %v565 = vadd.f32 0.0, %v564
        %v566 = vpop.f32.mrb[0].mxu0
        %567 = vmatprep.mubr.bf16.mxu0 0
        %568 = vmatmul.mubr.bf16.gmra.mrb[0].mxu0 %v441
        %v569 = vpop.f32.mrb[0].mxu0
        %v570 = vadd.f32 0.0, %v569
        %v571 = vpop.f32.mrb[0].mxu0
        %v572 = vpop.f32.mrb[0].mxu0
        %v573 = vadd.f32 0.0, %v572
        %v574 = vpop.f32.mrb[0].mxu0
        %575 = vmatprep.mubr.bf16.mxu0 0
        %576 = vmatmul.mubr.bf16.gmra.mrb[0].mxu0 %v442
        %v577 = vpop.f32.mrb[0].mxu0
        %v578 = vadd.f32 0.0, %v577
        %v579 = vpop.f32.mrb[0].mxu0
        %v580 = vpop.f32.mrb[0].mxu0
        %v581 = vadd.f32 0.0, %v580
        %v582 = vpop.f32.mrb[0].mxu0
        %583 = vmatprep.mubr.bf16.mxu0 0
        %584 = vmatmul.mubr.bf16.gmra.mrb[0].mxu0 %v443
        %v585 = vpop.f32.mrb[0].mxu0
        %v586 = vadd.f32 0.0, %v585
        %v587 = vpop.f32.mrb[0].mxu0
        %v588 = vpop.f32.mrb[0].mxu0
        %v589 = vadd.f32 0.0, %v588
        %v590 = vpop.f32.mrb[0].mxu0
        %591 = vmatprep.mubr.bf16.mxu0 0
        %592 = vmatmul.mubr.bf16.gmra.mrb[0].mxu0 %v444
        %v593 = vpop.f32.mrb[0].mxu0
        %v594 = vadd.f32 0.0, %v593
        %v595 = vpop.f32.mrb[0].mxu0
        %v596 = vpop.f32.mrb[0].mxu0
        %v597 = vadd.f32 0.0, %v596
        %v598 = vpop.f32.mrb[0].mxu0
        %599 = vmatprep.mubr.bf16.mxu0 0
        %600 = vmatmul.mubr.bf16.gmra.mrb[0].mxu0 %v445
        %v601 = vpop.f32.mrb[0].mxu0
        %v602 = vadd.f32 0.0, %v601
        %v603 = vpop.f32.mrb[0].mxu0
        %v604 = vpop.f32.mrb[0].mxu0
        %v605 = vadd.f32 0.0, %v604
        %v606 = vpop.f32.mrb[0].mxu0
        %607 = vmatprep.mubr.bf16.mxu0 0
        %608 = vmatmul.mubr.bf16.gmra.mrb[0].mxu0 %v446
        %v609 = vpop.f32.mrb[0].mxu0
        %v610 = vadd.f32 0.0, %v609
        %v611 = vpop.f32.mrb[0].mxu0
        %v612 = vpop.f32.mrb[0].mxu0
        %v613 = vadd.f32 0.0, %v612
        %v614 = vpop.f32.mrb[0].mxu0
        %615 = vmatprep.mubr.bf16.mxu0 0
        %616 = vmatmul.mubr.bf16.gmra.mrb[0].mxu0 %v447
        %v617 = vpop.f32.mrb[0].mxu0
        %v618 = vadd.f32 0.0, %v617
        %v619 = vpop.f32.mrb[0].mxu0
        %v620 = vpop.f32.mrb[0].mxu0
        %v621 = vadd.f32 0.0, %v620
        %v622 = vpop.f32.mrb[0].mxu0
        %623 = vmatprep.mubr.bf16.mxu0 0
        %624 = vmatmul.mubr.bf16.gmra.mrb[0].mxu0 %v448
        %v625 = vpop.f32.mrb[0].mxu0
        %v626 = vadd.f32 0.0, %v625
        %v627 = vpop.f32.mrb[0].mxu0
        %v628 = vpop.f32.mrb[0].mxu0
        %v629 = vadd.f32 0.0, %v628
        %v630 = vpop.f32.mrb[0].mxu0
        %631 = vmatprep.mubr.bf16.mxu0 0
        %632 = vmatmul.mubr.bf16.gmra.mrb[0].mxu0 %v449
        %v633 = vpop.f32.mrb[0].mxu0
        %v634 = vadd.f32 0.0, %v633
        %v635 = vpop.f32.mrb[0].mxu0
        %v636 = vpop.f32.mrb[0].mxu0
        %v637 = vadd.f32 0.0, %v636
        %v638 = vpop.f32.mrb[0].mxu0
        %639 = vmatprep.mubr.bf16.mxu0 0
        %640 = vmatmul.mubr.bf16.gmra.mrb[0].mxu0 %v450
        %v641 = vpop.f32.mrb[0].mxu0
        %v642 = vadd.f32 0.0, %v641
        %v643 = vpop.f32.mrb[0].mxu0
        %v644 = vpop.f32.mrb[0].mxu0
        %v645 = vadd.f32 0.0, %v644
        %v646 = vpop.f32.mrb[0].mxu0
        %647 = vmatprep.mubr.bf16.mxu0 0
        %648 = vmatmul.mubr.bf16.gmra.mrb[0].mxu0 %v451
        %v649 = vpop.f32.mrb[0].mxu0
        %v650 = vadd.f32 0.0, %v649
        %v651 = vpop.f32.mrb[0].mxu0
        %v652 = vpop.f32.mrb[0].mxu0
        %v653 = vadd.f32 0.0, %v652
        %v654 = vpop.f32.mrb[0].mxu0
        %655 = vmatprep.mubr.bf16.mxu0 0
        %656 = vmatmul.mubr.bf16.gmra.mrb[0].mxu0 %v452
        %v657 = vpop.f32.mrb[0].mxu0
        %v658 = vadd.f32 0.0, %v657
        %v659 = vpop.f32.mrb[0].mxu0
        %v660 = vpop.f32.mrb[0].mxu0
        %v661 = vadd.f32 0.0, %v660
        %v662 = vpop.f32.mrb[0].mxu0
        %663 = vmatprep.mubr.bf16.mxu0 0
        %664 = vmatmul.mubr.bf16.gmra.mrb[0].mxu0 %v453
        %v665 = vpop.f32.mrb[0].mxu0
        %v666 = vadd.f32 0.0, %v665
        %v667 = vpop.f32.mrb[0].mxu0
        %v668 = vpop.f32.mrb[0].mxu0
        %v669 = vadd.f32 0.0, %v668
        %v670 = vpop.f32.mrb[0].mxu0
        %671 = vmatprep.mubr.bf16.mxu0 0
        %672 = vmatmul.mubr.bf16.gmra.mrb[0].mxu0 %v454
        %v673 = vpop.f32.mrb[0].mxu0
        %v674 = vadd.f32 0.0, %v673
        %v675 = vpop.f32.mrb[0].mxu0
        %v676 = vpop.f32.mrb[0].mxu0
        %v677 = vadd.f32 0.0, %v676
        %v678 = vpop.f32.mrb[0].mxu0
        %679 = vdwg.mxu0
        %v680 = vld [vmem:[%s2] sm:$0x1]
        %v682 = vlaneseq
        %v683 = vshrl.u32 %v682, 7
        %v684 = vsub.s32 0, %v683
        %v685 = vrot.slane %v680, %v684
        %v687 = vmul.f32 %v554, %v685
        %v688 = vmul.f32 %v557, %v685
        %v689 = vmul.f32 %v562, %v685
        %v690 = vmul.f32 %v565, %v685
        %v691 = vmul.f32 %v570, %v685
        %v692 = vmul.f32 %v573, %v685
        %v693 = vmul.f32 %v578, %v685
        %v694 = vmul.f32 %v581, %v685
        %v695 = vmul.f32 %v586, %v685
        %v696 = vmul.f32 %v589, %v685
        %v697 = vmul.f32 %v594, %v685
        %v698 = vmul.f32 %v597, %v685
        %v699 = vmul.f32 %v602, %v685
        %v700 = vmul.f32 %v605, %v685
        %v701 = vmul.f32 %v610, %v685
        %v702 = vmul.f32 %v613, %v685
        %v703 = vmul.f32 %v618, %v685
        %v704 = vmul.f32 %v621, %v685
        %v705 = vmul.f32 %v626, %v685
        %v706 = vmul.f32 %v629, %v685
        %v707 = vmul.f32 %v634, %v685
        %v708 = vmul.f32 %v637, %v685
        %v709 = vmul.f32 %v642, %v685
        %v710 = vmul.f32 %v645, %v685
        %v711 = vmul.f32 %v650, %v685
        %v712 = vmul.f32 %v653, %v685
        %v713 = vmul.f32 %v658, %v685
        %v714 = vmul.f32 %v661, %v685
        %v715 = vmul.f32 %v666, %v685
        %v716 = vmul.f32 %v669, %v685
        %v717 = vmul.f32 %v674, %v685
        %v718 = vmul.f32 %v677, %v685
        %v719 = vld [vmem:[%s3] sm:$0x1]
        %v721 = vlaneseq
        %v722 = vshrl.u32 %v721, 7
        %v723 = vsub.s32 0, %v722
        %v724 = vrot.slane %v719, %v723
        %v726 = vadd.f32 %v687, %v724
        %v727 = vadd.f32 %v688, %v724
        %v728 = vadd.f32 %v689, %v724
        %v729 = vadd.f32 %v690, %v724
        %v730 = vadd.f32 %v691, %v724
        %v731 = vadd.f32 %v692, %v724
        %v732 = vadd.f32 %v693, %v724
        %v733 = vadd.f32 %v694, %v724
        %v734 = vadd.f32 %v695, %v724
        %v735 = vadd.f32 %v696, %v724
        %v736 = vadd.f32 %v697, %v724
        %v737 = vadd.f32 %v698, %v724
        %v738 = vadd.f32 %v699, %v724
        %v739 = vadd.f32 %v700, %v724
        %v740 = vadd.f32 %v701, %v724
        %v741 = vadd.f32 %v702, %v724
        %v742 = vadd.f32 %v703, %v724
        %v743 = vadd.f32 %v704, %v724
        %v744 = vadd.f32 %v705, %v724
        %v745 = vadd.f32 %v706, %v724
        %v746 = vadd.f32 %v707, %v724
        %v747 = vadd.f32 %v708, %v724
        %v748 = vadd.f32 %v709, %v724
        %v749 = vadd.f32 %v710, %v724
        %v750 = vadd.f32 %v711, %v724
        %v751 = vadd.f32 %v712, %v724
        %v752 = vadd.f32 %v713, %v724
        %v753 = vadd.f32 %v714, %v724
        %v754 = vadd.f32 %v715, %v724
        %v755 = vadd.f32 %v716, %v724
        %v756 = vadd.f32 %v717, %v724
        %v757 = vadd.f32 %v718, %v724
        %v758 = vmax.f32 %v726, 0.0
        %v759 = vmax.f32 %v727, 0.0
        %v760 = vmax.f32 %v728, 0.0
        %v761 = vmax.f32 %v729, 0.0
        %v762 = vmax.f32 %v730, 0.0
        %v763 = vmax.f32 %v731, 0.0
        %v764 = vmax.f32 %v732, 0.0
        %v765 = vmax.f32 %v733, 0.0
        %v766 = vmax.f32 %v734, 0.0
        %v767 = vmax.f32 %v735, 0.0
        %v768 = vmax.f32 %v736, 0.0
        %v769 = vmax.f32 %v737, 0.0
        %v770 = vmax.f32 %v738, 0.0
        %v771 = vmax.f32 %v739, 0.0
        %v772 = vmax.f32 %v740, 0.0
        %v773 = vmax.f32 %v741, 0.0
        %v774 = vmax.f32 %v742, 0.0
        %v775 = vmax.f32 %v743, 0.0
        %v776 = vmax.f32 %v744, 0.0
        %v777 = vmax.f32 %v745, 0.0
        %v778 = vmax.f32 %v746, 0.0
        %v779 = vmax.f32 %v747, 0.0
        %v780 = vmax.f32 %v748, 0.0
        %v781 = vmax.f32 %v749, 0.0
        %v782 = vmax.f32 %v750, 0.0
        %v783 = vmax.f32 %v751, 0.0
        %v784 = vmax.f32 %v752, 0.0
        %v785 = vmax.f32 %v753, 0.0
        %v786 = vmax.f32 %v754, 0.0
        %v787 = vmax.f32 %v755, 0.0
        %v788 = vmax.f32 %v756, 0.0
        %v789 = vmax.f32 %v757, 0.0
        %v790 = vpack.c.bf16 %v759, %v758
        %v791 = vpack.c.bf16 %v761, %v760
        %v792 = vpack.c.bf16 %v763, %v762
        %v793 = vpack.c.bf16 %v765, %v764
        %v794 = vpack.c.bf16 %v767, %v766
        %v795 = vpack.c.bf16 %v769, %v768
        %v796 = vpack.c.bf16 %v771, %v770
        %v797 = vpack.c.bf16 %v773, %v772
        %v798 = vpack.c.bf16 %v775, %v774
        %v799 = vpack.c.bf16 %v777, %v776
        %v800 = vpack.c.bf16 %v779, %v778
        %v801 = vpack.c.bf16 %v781, %v780
        %v802 = vpack.c.bf16 %v783, %v782
        %v803 = vpack.c.bf16 %v785, %v784
        %v804 = vpack.c.bf16 %v787, %v786
        %v805 = vpack.c.bf16 %v789, %v788
        %v807 = vshrl.u32 %v790, 16
        %v809 = vrot.slane %v807, 7
        %v810 = vshll.u32 %v790, 16
        %v812 = vor.u32 %v809, %v810
        %v814 = vshrl.u32 %v791, 16
        %v816 = vrot.slane %v814, 7
        %v817 = vshll.u32 %v791, 16
        %v819 = vor.u32 %v816, %v817
        %v821 = vshrl.u32 %v792, 16
        %v823 = vrot.slane %v821, 7
        %v824 = vshll.u32 %v792, 16
        %v826 = vor.u32 %v823, %v824
        %v828 = vshrl.u32 %v793, 16
        %v830 = vrot.slane %v828, 7
        %v831 = vshll.u32 %v793, 16
        %v833 = vor.u32 %v830, %v831
        %v835 = vshrl.u32 %v794, 16
        %v837 = vrot.slane %v835, 7
        %v838 = vshll.u32 %v794, 16
        %v840 = vor.u32 %v837, %v838
        %v842 = vshrl.u32 %v795, 16
        %v844 = vrot.slane %v842, 7
        %v845 = vshll.u32 %v795, 16
        %v847 = vor.u32 %v844, %v845
        %v849 = vshrl.u32 %v796, 16
        %v851 = vrot.slane %v849, 7
        %v852 = vshll.u32 %v796, 16
        %v854 = vor.u32 %v851, %v852
        %v856 = vshrl.u32 %v797, 16
        %v858 = vrot.slane %v856, 7
        %v859 = vshll.u32 %v797, 16
        %v861 = vor.u32 %v858, %v859
        %v863 = vshrl.u32 %v798, 16
        %v865 = vrot.slane %v863, 7
        %v866 = vshll.u32 %v798, 16
        %v868 = vor.u32 %v865, %v866
        %v870 = vshrl.u32 %v799, 16
        %v872 = vrot.slane %v870, 7
        %v873 = vshll.u32 %v799, 16
        %v875 = vor.u32 %v872, %v873
        %v877 = vshrl.u32 %v800, 16
        %v879 = vrot.slane %v877, 7
        %v880 = vshll.u32 %v800, 16
        %v882 = vor.u32 %v879, %v880
        %v884 = vshrl.u32 %v801, 16
        %v886 = vrot.slane %v884, 7
        %v887 = vshll.u32 %v801, 16
        %v889 = vor.u32 %v886, %v887
        %v891 = vshrl.u32 %v802, 16
        %v893 = vrot.slane %v891, 7
        %v894 = vshll.u32 %v802, 16
        %v896 = vor.u32 %v893, %v894
        %v898 = vshrl.u32 %v803, 16
        %v900 = vrot.slane %v898, 7
        %v901 = vshll.u32 %v803, 16
        %v903 = vor.u32 %v900, %v901
        %v905 = vshrl.u32 %v804, 16
        %v907 = vrot.slane %v905, 7
        %v908 = vshll.u32 %v804, 16
        %v910 = vor.u32 %v907, %v908
        %v912 = vshrl.u32 %v805, 16
        %v914 = vrot.slane %v912, 7
        %v915 = vshll.u32 %v805, 16
        %v917 = vor.u32 %v914, %v915
        %vm934 = vcmask 1040384
        %vm935 = vsmask.f32 256
        %vm936 = vmand %vm934, %vm935
        %v937 = vsel %vm936, 0, %v812
        %v938 = vsel %vm936, 0, %v819
        %v939 = vsel %vm936, 0, %v826
        %v940 = vsel %vm936, 0, %v833
        %v941 = vsel %vm936, 0, %v840
        %v942 = vsel %vm936, 0, %v847
        %v943 = vsel %vm936, 0, %v854
        %v944 = vsel %vm936, 0, %v861
        %v945 = vsel %vm936, 0, %v868
        %v946 = vsel %vm936, 0, %v875
        %v947 = vsel %vm936, 0, %v882
        %v948 = vsel %vm936, 0, %v889
        %v949 = vsel %vm936, 0, %v896
        %v950 = vsel %vm936, 0, %v903
        %v951 = vsel %vm936, 0, %v910
        %v952 = vsel %vm936, 0, %v917
        %v953 = vrot.slane %v810, 1
        %v954 = vor.u32 %v807, %v953
        %v955 = vrot.slane %v817, 1
        %v956 = vor.u32 %v814, %v955
        %v957 = vrot.slane %v824, 1
        %v958 = vor.u32 %v821, %v957
        %v959 = vrot.slane %v831, 1
        %v960 = vor.u32 %v828, %v959
        %v961 = vrot.slane %v838, 1
        %v962 = vor.u32 %v835, %v961
        %v963 = vrot.slane %v845, 1
        %v964 = vor.u32 %v842, %v963
        %v965 = vrot.slane %v852, 1
        %v966 = vor.u32 %v849, %v965
        %v967 = vrot.slane %v859, 1
        %v968 = vor.u32 %v856, %v967
        %v969 = vrot.slane %v866, 1
        %v970 = vor.u32 %v863, %v969
        %v971 = vrot.slane %v873, 1
        %v972 = vor.u32 %v870, %v971
        %v973 = vrot.slane %v880, 1
        %v974 = vor.u32 %v877, %v973
        %v975 = vrot.slane %v887, 1
        %v976 = vor.u32 %v884, %v975
        %v977 = vrot.slane %v894, 1
        %v978 = vor.u32 %v891, %v977
        %v979 = vrot.slane %v901, 1
        %v980 = vor.u32 %v898, %v979
        %v981 = vrot.slane %v908, 1
        %v982 = vor.u32 %v905, %v981
        %v983 = vrot.slane %v915, 1
        %v984 = vor.u32 %v912, %v983
        %vm1001 = vcmask 1047552
        %vm1002 = vsmask.f32 7424
        %vm1003 = vmand %vm1001, %vm1002
        %v1004 = vsel %vm1003, %v954, 0
        %v1005 = vsel %vm1003, %v956, 0
        %v1006 = vsel %vm1003, %v958, 0
        %v1007 = vsel %vm1003, %v960, 0
        %v1008 = vsel %vm1003, %v962, 0
        %v1009 = vsel %vm1003, %v964, 0
        %v1010 = vsel %vm1003, %v966, 0
        %v1011 = vsel %vm1003, %v968, 0
        %v1012 = vsel %vm1003, %v970, 0
        %v1013 = vsel %vm1003, %v972, 0
        %v1014 = vsel %vm1003, %v974, 0
        %v1015 = vsel %vm1003, %v976, 0
        %v1016 = vsel %vm1003, %v978, 0
        %v1017 = vsel %vm1003, %v980, 0
        %v1018 = vsel %vm1003, %v982, 0
        %v1019 = vsel %vm1003, %v984, 0
        %1020 = vst [vmem:[#allocation2] sm:$0xff] 0
        %1021 = vst [vmem:[#allocation2 + $0x8] sm:$0xff] 0
        %1022 = vst [vmem:[#allocation2 + $0x10] sm:$0xff] 0
        %s1023 = scalar_lea.vmem [#allocation2], 408
        %1024 = vst [vmem:[%s1023] sm:$0xff] 0
        %1025 = vst [vmem:[%s1023 + $0x8] sm:$0xff] 0
        %1026 = vst [vmem:[%s1023 + $0x10] sm:$0xff] 0
        %s1027 = scalar_lea.vmem [#allocation2], 24
        %1028 = vst [vmem:[%s1027] sm:$0xff] %v937
        %1029 = vst [vmem:[%s1027 + $0x8] sm:$0xff] %v790
        %1030 = vst [vmem:[%s1027 + $0x10] sm:$0xff] %v1004
        %1031 = vst [vmem:[%s1027 + $0x18] sm:$0xff] %v938
        %1032 = vst [vmem:[%s1027 + $0x20] sm:$0xff] %v791
        %1033 = vst [vmem:[%s1027 + $0x28] sm:$0xff] %v1005
        %1034 = vst [vmem:[%s1027 + $0x30] sm:$0xff] %v939
        %1035 = vst [vmem:[%s1027 + $0x38] sm:$0xff] %v792
        %1036 = vst [vmem:[%s1027 + $0x40] sm:$0xff] %v1006
        %1037 = vst [vmem:[%s1027 + $0x48] sm:$0xff] %v940
        %1038 = vst [vmem:[%s1027 + $0x50] sm:$0xff] %v793
        %1039 = vst [vmem:[%s1027 + $0x58] sm:$0xff] %v1007
        %1040 = vst [vmem:[%s1027 + $0x60] sm:$0xff] %v941
        %1041 = vst [vmem:[%s1027 + $0x68] sm:$0xff] %v794
        %1042 = vst [vmem:[%s1027 + $0x70] sm:$0xff] %v1008
        %1043 = vst [vmem:[%s1027 + $0x78] sm:$0xff] %v942
        %1044 = vst [vmem:[%s1027 + $0x80] sm:$0xff] %v795
        %1045 = vst [vmem:[%s1027 + $0x88] sm:$0xff] %v1009
        %1046 = vst [vmem:[%s1027 + $0x90] sm:$0xff] %v943
        %1047 = vst [vmem:[%s1027 + $0x98] sm:$0xff] %v796
        %1048 = vst [vmem:[%s1027 + $0xa0] sm:$0xff] %v1010
        %1049 = vst [vmem:[%s1027 + $0xa8] sm:$0xff] %v944
        %1050 = vst [vmem:[%s1027 + $0xb0] sm:$0xff] %v797
        %1051 = vst [vmem:[%s1027 + $0xb8] sm:$0xff] %v1011
        %1052 = vst [vmem:[%s1027 + $0xc0] sm:$0xff] %v945
        %1053 = vst [vmem:[%s1027 + $0xc8] sm:$0xff] %v798
        %1054 = vst [vmem:[%s1027 + $0xd0] sm:$0xff] %v1012
        %1055 = vst [vmem:[%s1027 + $0xd8] sm:$0xff] %v946
        %1056 = vst [vmem:[%s1027 + $0xe0] sm:$0xff] %v799
        %1057 = vst [vmem:[%s1027 + $0xe8] sm:$0xff] %v1013
        %1058 = vst [vmem:[%s1027 + $0xf0] sm:$0xff] %v947
        %1059 = vst [vmem:[%s1027 + $0xf8] sm:$0xff] %v800
        %1060 = vst [vmem:[%s1027 + $0x100] sm:$0xff] %v1014
        %1061 = vst [vmem:[%s1027 + $0x108] sm:$0xff] %v948
        %1062 = vst [vmem:[%s1027 + $0x110] sm:$0xff] %v801
        %1063 = vst [vmem:[%s1027 + $0x118] sm:$0xff] %v1015
        %1064 = vst [vmem:[%s1027 + $0x120] sm:$0xff] %v949
        %1065 = vst [vmem:[%s1027 + $0x128] sm:$0xff] %v802
        %1066 = vst [vmem:[%s1027 + $0x130] sm:$0xff] %v1016
        %1067 = vst [vmem:[%s1027 + $0x138] sm:$0xff] %v950
        %1068 = vst [vmem:[%s1027 + $0x140] sm:$0xff] %v803
        %1069 = vst [vmem:[%s1027 + $0x148] sm:$0xff] %v1017
        %1070 = vst [vmem:[%s1027 + $0x150] sm:$0xff] %v951
        %1071 = vst [vmem:[%s1027 + $0x158] sm:$0xff] %v804
        %1072 = vst [vmem:[%s1027 + $0x160] sm:$0xff] %v1018
        %1073 = vst [vmem:[%s1027 + $0x168] sm:$0xff] %v952
        %1074 = vst [vmem:[%s1027 + $0x170] sm:$0xff] %v805
        %1075 = vst [vmem:[%s1027 + $0x178] sm:$0xff] %v1019
        %v1076 = vld [vmem:[#allocation2] sm:$0xff]
        %v1077 = vld [vmem:[#allocation2 + $0x8] sm:$0xff]
        %v1078 = vld [vmem:[#allocation2 + $0x10] sm:$0xff]
        %v1079 = vld [vmem:[#allocation2 + $0x18] sm:$0xff]
        %v1080 = vld [vmem:[#allocation2 + $0x20] sm:$0xff]
        %v1081 = vld [vmem:[#allocation2 + $0x28] sm:$0xff]
        %v1082 = vld [vmem:[#allocation2 + $0x30] sm:$0xff]
        %v1083 = vld [vmem:[#allocation2 + $0x38] sm:$0xff]
        %v1084 = vld [vmem:[#allocation2 + $0x40] sm:$0xff]
        %v1085 = vld [vmem:[#allocation2 + $0x48] sm:$0xff]
        %v1086 = vld [vmem:[#allocation2 + $0x50] sm:$0xff]
        %v1087 = vld [vmem:[#allocation2 + $0x58] sm:$0xff]
        %v1088 = vld [vmem:[#allocation2 + $0x60] sm:$0xff]
        %v1089 = vld [vmem:[#allocation2 + $0x68] sm:$0xff]
        %v1090 = vld [vmem:[#allocation2 + $0x70] sm:$0xff]
        %v1091 = vld [vmem:[#allocation2 + $0x78] sm:$0xff]
        %v1092 = vld [vmem:[#allocation2 + $0x80] sm:$0xff]
        %v1093 = vld [vmem:[#allocation2 + $0x88] sm:$0xff]
        %v1094 = vld [vmem:[#allocation2 + $0x90] sm:$0xff]
        %v1095 = vld [vmem:[#allocation2 + $0x98] sm:$0xff]
        %v1096 = vld [vmem:[#allocation2 + $0xa0] sm:$0xff]
        %v1097 = vld [vmem:[#allocation2 + $0xa8] sm:$0xff]
        %v1098 = vld [vmem:[#allocation2 + $0xb0] sm:$0xff]
        %v1099 = vld [vmem:[#allocation2 + $0xb8] sm:$0xff]
        %v1100 = vld [vmem:[#allocation2 + $0xc0] sm:$0xff]
        %v1101 = vld [vmem:[#allocation2 + $0xc8] sm:$0xff]
        %v1102 = vld [vmem:[#allocation2 + $0xd0] sm:$0xff]
        %v1103 = vld [vmem:[#allocation2 + $0xd8] sm:$0xff]
        %v1104 = vld [vmem:[#allocation2 + $0xe0] sm:$0xff]
        %v1105 = vld [vmem:[#allocation2 + $0xe8] sm:$0xff]
        %v1106 = vld [vmem:[#allocation2 + $0xf0] sm:$0xff]
        %v1107 = vld [vmem:[#allocation2 + $0xf8] sm:$0xff]
        %v1108 = vld [vmem:[#allocation2 + $0x100] sm:$0xff]
        %v1109 = vld [vmem:[#allocation2 + $0x108] sm:$0xff]
        %v1110 = vld [vmem:[#allocation2 + $0x110] sm:$0xff]
        %v1111 = vld [vmem:[#allocation2 + $0x118] sm:$0xff]
        %v1112 = vld [vmem:[#allocation2 + $0x120] sm:$0xff]
        %v1113 = vld [vmem:[#allocation2 + $0x128] sm:$0xff]
        %v1114 = vld [vmem:[#allocation2 + $0x130] sm:$0xff]
        %v1115 = vld [vmem:[#allocation2 + $0x138] sm:$0xff]
        %v1116 = vld [vmem:[#allocation2 + $0x140] sm:$0xff]
        %v1117 = vld [vmem:[#allocation2 + $0x148] sm:$0xff]
        %v1118 = vld [vmem:[#allocation2 + $0x150] sm:$0xff]
        %v1119 = vld [vmem:[#allocation2 + $0x158] sm:$0xff]
        %v1120 = vld [vmem:[#allocation2 + $0x160] sm:$0xff]
        %v1121 = vld [vmem:[#allocation2 + $0x168] sm:$0xff]
        %v1122 = vld [vmem:[#allocation2 + $0x170] sm:$0xff]
        %v1123 = vld [vmem:[#allocation2 + $0x178] sm:$0xff]
        %v1124 = vld [vmem:[#allocation8] sm:$0xf]
        %v1125 = vld [vmem:[#allocation8 + $0x4] sm:$0xf]
        %v1126 = vld [vmem:[#allocation8 + $0x8] sm:$0xf]
        %v1127 = vld [vmem:[#allocation8 + $0xc] sm:$0xf]
        %v1128 = vld [vmem:[#allocation8 + $0x10] sm:$0xf]
        %v1129 = vld [vmem:[#allocation8 + $0x14] sm:$0xf]
        %v1130 = vld [vmem:[#allocation8 + $0x18] sm:$0xf]
        %v1131 = vld [vmem:[#allocation8 + $0x1c] sm:$0xf]
        %v1132 = vld [vmem:[#allocation8 + $0x20] sm:$0xf]
        %v1133 = vld [vmem:[#allocation8 + $0x24] sm:$0xf]
        %v1134 = vld [vmem:[#allocation8 + $0x28] sm:$0xf]
        %v1135 = vld [vmem:[#allocation8 + $0x2c] sm:$0xf]
        %v1136 = vld [vmem:[#allocation8 + $0x30] sm:$0xf]
        %v1137 = vld [vmem:[#allocation8 + $0x34] sm:$0xf]
        %v1138 = vld [vmem:[#allocation8 + $0x38] sm:$0xf]
        %v1139 = vld [vmem:[#allocation8 + $0x3c] sm:$0xf]
        %v1140 = vld [vmem:[#allocation8 + $0x40] sm:$0xf]
        %v1141 = vld [vmem:[#allocation8 + $0x44] sm:$0xf]
        %v1142 = vld [vmem:[#allocation8 + $0x48] sm:$0xf]
        %v1143 = vld [vmem:[#allocation8 + $0x4c] sm:$0xf]
        %v1144 = vld [vmem:[#allocation8 + $0x50] sm:$0xf]
        %v1145 = vld [vmem:[#allocation8 + $0x54] sm:$0xf]
        %v1146 = vld [vmem:[#allocation8 + $0x58] sm:$0xf]
        %v1147 = vld [vmem:[#allocation8 + $0x5c] sm:$0xf]
        %v1148 = vld [vmem:[#allocation8 + $0x60] sm:$0xf]
        %v1149 = vld [vmem:[#allocation8 + $0x64] sm:$0xf]
        %v1150 = vld [vmem:[#allocation8 + $0x68] sm:$0xf]
        %v1151 = vld [vmem:[#allocation8 + $0x6c] sm:$0xf]
        %v1152 = vld [vmem:[#allocation8 + $0x70] sm:$0xf]
        %v1153 = vld [vmem:[#allocation8 + $0x74] sm:$0xf]
        %v1154 = vld [vmem:[#allocation8 + $0x78] sm:$0xf]
        %v1155 = vld [vmem:[#allocation8 + $0x7c] sm:$0xf]
        %v1156 = vld [vmem:[#allocation8 + $0x80] sm:$0xf]
        %v1157 = vld [vmem:[#allocation8 + $0x84] sm:$0xf]
        %v1158 = vld [vmem:[#allocation8 + $0x88] sm:$0xf]
        %v1159 = vld [vmem:[#allocation8 + $0x8c] sm:$0xf]
        %v1160 = vld [vmem:[#allocation8 + $0x90] sm:$0xf]
        %v1161 = vld [vmem:[#allocation8 + $0x94] sm:$0xf]
        %v1162 = vld [vmem:[#allocation8 + $0x98] sm:$0xf]
        %v1163 = vld [vmem:[#allocation8 + $0x9c] sm:$0xf]
        %v1164 = vld [vmem:[#allocation8 + $0xa0] sm:$0xf]
        %v1165 = vld [vmem:[#allocation8 + $0xa4] sm:$0xf]
        %v1166 = vld [vmem:[#allocation8 + $0xa8] sm:$0xf]
        %v1167 = vld [vmem:[#allocation8 + $0xac] sm:$0xf]
        %v1168 = vld [vmem:[#allocation8 + $0xb0] sm:$0xf]
        %v1169 = vld [vmem:[#allocation8 + $0xb4] sm:$0xf]
        %v1170 = vld [vmem:[#allocation8 + $0xb8] sm:$0xf]
        %v1171 = vld [vmem:[#allocation8 + $0xbc] sm:$0xf]
        %v1172 = vld [vmem:[%s1027] sm:$0xff]
        %v1173 = vld [vmem:[%s1027 + $0x8] sm:$0xff]
        %v1174 = vld [vmem:[%s1027 + $0x10] sm:$0xff]
        %v1175 = vld [vmem:[%s1027 + $0x18] sm:$0xff]
        %v1176 = vld [vmem:[%s1027 + $0x20] sm:$0xff]
        %v1177 = vld [vmem:[%s1027 + $0x28] sm:$0xff]
        %v1178 = vld [vmem:[%s1027 + $0x30] sm:$0xff]
        %v1179 = vld [vmem:[%s1027 + $0x38] sm:$0xff]
        %v1180 = vld [vmem:[%s1027 + $0x40] sm:$0xff]
        %v1181 = vld [vmem:[%s1027 + $0x48] sm:$0xff]
        %v1182 = vld [vmem:[%s1027 + $0x50] sm:$0xff]
        %v1183 = vld [vmem:[%s1027 + $0x58] sm:$0xff]
        %v1184 = vld [vmem:[%s1027 + $0x60] sm:$0xff]
        %v1185 = vld [vmem:[%s1027 + $0x68] sm:$0xff]
        %v1186 = vld [vmem:[%s1027 + $0x70] sm:$0xff]
        %v1187 = vld [vmem:[%s1027 + $0x78] sm:$0xff]
        %v1188 = vld [vmem:[%s1027 + $0x80] sm:$0xff]
        %v1189 = vld [vmem:[%s1027 + $0x88] sm:$0xff]
        %v1190 = vld [vmem:[%s1027 + $0x90] sm:$0xff]
        %v1191 = vld [vmem:[%s1027 + $0x98] sm:$0xff]
        %v1192 = vld [vmem:[%s1027 + $0xa0] sm:$0xff]
        %v1193 = vld [vmem:[%s1027 + $0xa8] sm:$0xff]
        %v1194 = vld [vmem:[%s1027 + $0xb0] sm:$0xff]
        %v1195 = vld [vmem:[%s1027 + $0xb8] sm:$0xff]
        %v1196 = vld [vmem:[%s1027 + $0xc0] sm:$0xff]
        %v1197 = vld [vmem:[%s1027 + $0xc8] sm:$0xff]
        %v1198 = vld [vmem:[%s1027 + $0xd0] sm:$0xff]
        %v1199 = vld [vmem:[%s1027 + $0xd8] sm:$0xff]
        %v1200 = vld [vmem:[%s1027 + $0xe0] sm:$0xff]
        %v1201 = vld [vmem:[%s1027 + $0xe8] sm:$0xff]
        %v1202 = vld [vmem:[%s1027 + $0xf0] sm:$0xff]
        %v1203 = vld [vmem:[%s1027 + $0xf8] sm:$0xff]
        %v1204 = vld [vmem:[%s1027 + $0x100] sm:$0xff]
        %v1205 = vld [vmem:[%s1027 + $0x108] sm:$0xff]
        %v1206 = vld [vmem:[%s1027 + $0x110] sm:$0xff]
        %v1207 = vld [vmem:[%s1027 + $0x118] sm:$0xff]
        %v1208 = vld [vmem:[%s1027 + $0x120] sm:$0xff]
        %v1209 = vld [vmem:[%s1027 + $0x128] sm:$0xff]
        %v1210 = vld [vmem:[%s1027 + $0x130] sm:$0xff]
        %v1211 = vld [vmem:[%s1027 + $0x138] sm:$0xff]
        %v1212 = vld [vmem:[%s1027 + $0x140] sm:$0xff]
        %v1213 = vld [vmem:[%s1027 + $0x148] sm:$0xff]
        %v1214 = vld [vmem:[%s1027 + $0x150] sm:$0xff]
        %v1215 = vld [vmem:[%s1027 + $0x158] sm:$0xff]
        %v1216 = vld [vmem:[%s1027 + $0x160] sm:$0xff]
        %v1217 = vld [vmem:[%s1027 + $0x168] sm:$0xff]
        %v1218 = vld [vmem:[%s1027 + $0x170] sm:$0xff]
        %v1219 = vld [vmem:[%s1027 + $0x178] sm:$0xff]
        %s1220 = scalar_lea.vmem [#allocation8], 192
        %v1221 = vld [vmem:[%s1220] sm:$0xf]
        %v1222 = vld [vmem:[%s1220 + $0x4] sm:$0xf]
        %v1223 = vld [vmem:[%s1220 + $0x8] sm:$0xf]
        %v1224 = vld [vmem:[%s1220 + $0xc] sm:$0xf]
        %v1225 = vld [vmem:[%s1220 + $0x10] sm:$0xf]
        %v1226 = vld [vmem:[%s1220 + $0x14] sm:$0xf]
        %v1227 = vld [vmem:[%s1220 + $0x18] sm:$0xf]
        %v1228 = vld [vmem:[%s1220 + $0x1c] sm:$0xf]
        %v1229 = vld [vmem:[%s1220 + $0x20] sm:$0xf]
        %v1230 = vld [vmem:[%s1220 + $0x24] sm:$0xf]
        %v1231 = vld [vmem:[%s1220 + $0x28] sm:$0xf]
        %v1232 = vld [vmem:[%s1220 + $0x2c] sm:$0xf]
        %v1233 = vld [vmem:[%s1220 + $0x30] sm:$0xf]
        %v1234 = vld [vmem:[%s1220 + $0x34] sm:$0xf]
        %v1235 = vld [vmem:[%s1220 + $0x38] sm:$0xf]
        %v1236 = vld [vmem:[%s1220 + $0x3c] sm:$0xf]
        %v1237 = vld [vmem:[%s1220 + $0x40] sm:$0xf]
        %v1238 = vld [vmem:[%s1220 + $0x44] sm:$0xf]
        %v1239 = vld [vmem:[%s1220 + $0x48] sm:$0xf]
        %v1240 = vld [vmem:[%s1220 + $0x4c] sm:$0xf]
        %v1241 = vld [vmem:[%s1220 + $0x50] sm:$0xf]
        %v1242 = vld [vmem:[%s1220 + $0x54] sm:$0xf]
        %v1243 = vld [vmem:[%s1220 + $0x58] sm:$0xf]
        %v1244 = vld [vmem:[%s1220 + $0x5c] sm:$0xf]
        %v1245 = vld [vmem:[%s1220 + $0x60] sm:$0xf]
        %v1246 = vld [vmem:[%s1220 + $0x64] sm:$0xf]
        %v1247 = vld [vmem:[%s1220 + $0x68] sm:$0xf]
        %v1248 = vld [vmem:[%s1220 + $0x6c] sm:$0xf]
        %v1249 = vld [vmem:[%s1220 + $0x70] sm:$0xf]
        %v1250 = vld [vmem:[%s1220 + $0x74] sm:$0xf]
        %v1251 = vld [vmem:[%s1220 + $0x78] sm:$0xf]
        %v1252 = vld [vmem:[%s1220 + $0x7c] sm:$0xf]
        %v1253 = vld [vmem:[%s1220 + $0x80] sm:$0xf]
        %v1254 = vld [vmem:[%s1220 + $0x84] sm:$0xf]
        %v1255 = vld [vmem:[%s1220 + $0x88] sm:$0xf]
        %v1256 = vld [vmem:[%s1220 + $0x8c] sm:$0xf]
        %v1257 = vld [vmem:[%s1220 + $0x90] sm:$0xf]
        %v1258 = vld [vmem:[%s1220 + $0x94] sm:$0xf]
        %v1259 = vld [vmem:[%s1220 + $0x98] sm:$0xf]
        %v1260 = vld [vmem:[%s1220 + $0x9c] sm:$0xf]
        %v1261 = vld [vmem:[%s1220 + $0xa0] sm:$0xf]
        %v1262 = vld [vmem:[%s1220 + $0xa4] sm:$0xf]
        %v1263 = vld [vmem:[%s1220 + $0xa8] sm:$0xf]
        %v1264 = vld [vmem:[%s1220 + $0xac] sm:$0xf]
        %v1265 = vld [vmem:[%s1220 + $0xb0] sm:$0xf]
        %v1266 = vld [vmem:[%s1220 + $0xb4] sm:$0xf]
        %v1267 = vld [vmem:[%s1220 + $0xb8] sm:$0xf]
        %v1268 = vld [vmem:[%s1220 + $0xbc] sm:$0xf]
        %v1317 = vunpack.c.l.b16 %v1221
        %v1318 = vunpack.c.l.b16 %v1222
        %v1319 = vunpack.c.l.b16 %v1223
        %v1320 = vunpack.c.l.b16 %v1224
        %v1321 = vunpack.c.l.b16 %v1225
        %v1322 = vunpack.c.l.b16 %v1226
        %v1323 = vunpack.c.l.b16 %v1227
        %v1324 = vunpack.c.l.b16 %v1228
        %v1325 = vunpack.c.l.b16 %v1229
        %v1326 = vunpack.c.l.b16 %v1230
        %v1327 = vunpack.c.l.b16 %v1231
        %v1328 = vunpack.c.l.b16 %v1232
        %v1329 = vunpack.c.l.b16 %v1233
        %v1330 = vunpack.c.l.b16 %v1234
        %v1331 = vunpack.c.l.b16 %v1235
        %v1332 = vunpack.c.l.b16 %v1236
        %v1333 = vunpack.c.l.b16 %v1237
        %v1334 = vunpack.c.l.b16 %v1238
        %v1335 = vunpack.c.l.b16 %v1239
        %v1336 = vunpack.c.l.b16 %v1240
        %v1337 = vunpack.c.l.b16 %v1241
        %v1338 = vunpack.c.l.b16 %v1242
        %v1339 = vunpack.c.l.b16 %v1243
        %v1340 = vunpack.c.l.b16 %v1244
        %v1341 = vunpack.c.l.b16 %v1245
        %v1342 = vunpack.c.l.b16 %v1246
        %v1343 = vunpack.c.l.b16 %v1247
        %v1344 = vunpack.c.l.b16 %v1248
        %v1345 = vunpack.c.l.b16 %v1249
        %v1346 = vunpack.c.l.b16 %v1250
        %v1347 = vunpack.c.l.b16 %v1251
        %v1348 = vunpack.c.l.b16 %v1252
        %v1349 = vunpack.c.l.b16 %v1253
        %v1350 = vunpack.c.l.b16 %v1254
        %v1351 = vunpack.c.l.b16 %v1255
        %v1352 = vunpack.c.l.b16 %v1256
        %v1353 = vunpack.c.l.b16 %v1257
        %v1354 = vunpack.c.l.b16 %v1258
        %v1355 = vunpack.c.l.b16 %v1259
        %v1356 = vunpack.c.l.b16 %v1260
        %v1357 = vunpack.c.l.b16 %v1261
        %v1358 = vunpack.c.l.b16 %v1262
        %v1359 = vunpack.c.l.b16 %v1263
        %v1360 = vunpack.c.l.b16 %v1264
        %v1361 = vunpack.c.l.b16 %v1265
        %v1362 = vunpack.c.l.b16 %v1266
        %v1363 = vunpack.c.l.b16 %v1267
        %v1364 = vunpack.c.l.b16 %v1268
        %v1365 = vpack.c.b16 %v1318, %v1317
        %v1366 = vpack.c.b16 %v1320, %v1319
        %v1367 = vpack.c.b16 %v1322, %v1321
        %v1368 = vpack.c.b16 %v1324, %v1323
        %v1369 = vpack.c.b16 %v1326, %v1325
        %v1370 = vpack.c.b16 %v1328, %v1327
        %v1371 = vpack.c.b16 %v1330, %v1329
        %v1372 = vpack.c.b16 %v1332, %v1331
        %v1373 = vpack.c.b16 %v1334, %v1333
        %v1374 = vpack.c.b16 %v1336, %v1335
        %v1375 = vpack.c.b16 %v1338, %v1337
        %v1376 = vpack.c.b16 %v1340, %v1339
        %v1377 = vpack.c.b16 %v1342, %v1341
        %v1378 = vpack.c.b16 %v1344, %v1343
        %v1379 = vpack.c.b16 %v1346, %v1345
        %v1380 = vpack.c.b16 %v1348, %v1347
        %v1381 = vpack.c.b16 %v1350, %v1349
        %v1382 = vpack.c.b16 %v1352, %v1351
        %v1383 = vpack.c.b16 %v1354, %v1353
        %v1384 = vpack.c.b16 %v1356, %v1355
        %v1385 = vpack.c.b16 %v1358, %v1357
        %v1386 = vpack.c.b16 %v1360, %v1359
        %v1387 = vpack.c.b16 %v1362, %v1361
        %v1388 = vpack.c.b16 %v1364, %v1363
        %1413 = vmatprep.subr.bf16.mxu0 0
        %1414 = vmatpush1.bf16.msra.mxu0 %v1365
        %1415 = vmatprep.subr.bf16.mxu0 0
        %1416 = vmatpush1.bf16.msra.mxu0 %v1366
        %1417 = vmatprep.subr.bf16.mxu0 0
        %1418 = vmatpush1.bf16.msra.mxu0 %v1367
        %1419 = vmatprep.subr.bf16.mxu0 0
        %1420 = vmatpush1.bf16.msra.mxu0 %v1368
        %1421 = vmatprep.subr.bf16.mxu0 0
        %1422 = vmatpush1.bf16.msra.mxu0 %v1369
        %1423 = vmatprep.subr.bf16.mxu0 0
        %1424 = vmatpush1.bf16.msra.mxu0 %v1370
        %1425 = vmatprep.subr.bf16.mxu0 0
        %1426 = vmatpush1.bf16.msra.mxu0 %v1371
        %1427 = vmatprep.subr.bf16.mxu0 0
        %1428 = vmatpush1.bf16.msra.mxu0 %v1372
        %1429 = vmatprep.subr.bf16.mxu0 0
        %1430 = vmatpush1.bf16.msra.mxu0 %v1373
        %1431 = vmatprep.subr.bf16.mxu0 0
        %1432 = vmatpush1.bf16.msra.mxu0 %v1374
        %1433 = vmatprep.subr.bf16.mxu0 0
        %1434 = vmatpush1.bf16.msra.mxu0 %v1375
        %1435 = vmatprep.subr.bf16.mxu0 0
        %1436 = vmatpush1.bf16.msra.mxu0 %v1376
        %1437 = vmatprep.subr.bf16.mxu0 0
        %1438 = vmatpush1.bf16.msra.mxu0 %v1377
        %1439 = vmatprep.subr.bf16.mxu0 0
        %1440 = vmatpush1.bf16.msra.mxu0 %v1378
        %1441 = vmatprep.subr.bf16.mxu0 0
        %1442 = vmatpush1.bf16.msra.mxu0 %v1379
        %1443 = vmatprep.subr.bf16.mxu0 0
        %1444 = vmatpush1.bf16.msra.mxu0 %v1380
        %1445 = vmatprep.mubr.bf16.mxu0 %v1173
        %1446 = vmatmul.mubr.bf16.gmra.mrb[0].mxu0 %v1172
        %v1447 = vpop.f32.mrb[0].mxu0
        %v1448 = vadd.f32 0.0, %v1447
        %v1449 = vpop.f32.mrb[0].mxu0
        %v1450 = vpop.f32.mrb[0].mxu0
        %v1451 = vadd.f32 0.0, %v1450
        %v1452 = vpop.f32.mrb[0].mxu0
        %1453 = vmatprep.mubr.bf16.mxu0 %v1176
        %1454 = vmatmul.mubr.bf16.gmra.mrb[0].mxu0 %v1175
        %v1455 = vpop.f32.mrb[0].mxu0
        %v1456 = vadd.f32 0.0, %v1455
        %v1457 = vpop.f32.mrb[0].mxu0
        %v1458 = vpop.f32.mrb[0].mxu0
        %v1459 = vadd.f32 0.0, %v1458
        %v1460 = vpop.f32.mrb[0].mxu0
        %1461 = vmatprep.mubr.bf16.mxu0 %v1179
        %1462 = vmatmul.mubr.bf16.gmra.mrb[0].mxu0 %v1178
        %v1463 = vpop.f32.mrb[0].mxu0
        %v1464 = vadd.f32 0.0, %v1463
        %v1465 = vpop.f32.mrb[0].mxu0
        %v1466 = vpop.f32.mrb[0].mxu0
        %v1467 = vadd.f32 0.0, %v1466
        %v1468 = vpop.f32.mrb[0].mxu0
        %1469 = vmatprep.mubr.bf16.mxu0 %v1182
        %1470 = vmatmul.mubr.bf16.gmra.mrb[0].mxu0 %v1181
        %v1471 = vpop.f32.mrb[0].mxu0
        %v1472 = vadd.f32 0.0, %v1471
        %v1473 = vpop.f32.mrb[0].mxu0
        %v1474 = vpop.f32.mrb[0].mxu0
        %v1475 = vadd.f32 0.0, %v1474
        %v1476 = vpop.f32.mrb[0].mxu0
        %1477 = vmatprep.mubr.bf16.mxu0 %v1185
        %1478 = vmatmul.mubr.bf16.gmra.mrb[0].mxu0 %v1184
        %v1479 = vpop.f32.mrb[0].mxu0
        %v1480 = vadd.f32 0.0, %v1479
        %v1481 = vpop.f32.mrb[0].mxu0
        %v1482 = vpop.f32.mrb[0].mxu0
        %v1483 = vadd.f32 0.0, %v1482
        %v1484 = vpop.f32.mrb[0].mxu0
        %1485 = vmatprep.mubr.bf16.mxu0 %v1188
        %1486 = vmatmul.mubr.bf16.gmra.mrb[0].mxu0 %v1187
        %v1487 = vpop.f32.mrb[0].mxu0
        %v1488 = vadd.f32 0.0, %v1487
        %v1489 = vpop.f32.mrb[0].mxu0
        %v1490 = vpop.f32.mrb[0].mxu0
        %v1491 = vadd.f32 0.0, %v1490
        %v1492 = vpop.f32.mrb[0].mxu0
        %1493 = vmatprep.mubr.bf16.mxu0 %v1191
        %1494 = vmatmul.mubr.bf16.gmra.mrb[0].mxu0 %v1190
        %v1495 = vpop.f32.mrb[0].mxu0
        %v1496 = vadd.f32 0.0, %v1495
        %v1497 = vpop.f32.mrb[0].mxu0
        %v1498 = vpop.f32.mrb[0].mxu0
        %v1499 = vadd.f32 0.0, %v1498
        %v1500 = vpop.f32.mrb[0].mxu0
        %1501 = vmatprep.mubr.bf16.mxu0 %v1194
        %1502 = vmatmul.mubr.bf16.gmra.mrb[0].mxu0 %v1193
        %v1503 = vpop.f32.mrb[0].mxu0
        %v1504 = vadd.f32 0.0, %v1503
        %v1505 = vpop.f32.mrb[0].mxu0
        %v1506 = vpop.f32.mrb[0].mxu0
        %v1507 = vadd.f32 0.0, %v1506
        %v1508 = vpop.f32.mrb[0].mxu0
        %1509 = vmatprep.mubr.bf16.mxu0 %v1197
        %1510 = vmatmul.mubr.bf16.gmra.mrb[0].mxu0 %v1196
        %v1511 = vpop.f32.mrb[0].mxu0
        %v1512 = vadd.f32 0.0, %v1511
        %v1513 = vpop.f32.mrb[0].mxu0
        %v1514 = vpop.f32.mrb[0].mxu0
        %v1515 = vadd.f32 0.0, %v1514
        %v1516 = vpop.f32.mrb[0].mxu0
        %1517 = vmatprep.mubr.bf16.mxu0 %v1200
        %1518 = vmatmul.mubr.bf16.gmra.mrb[0].mxu0 %v1199
        %v1519 = vpop.f32.mrb[0].mxu0
        %v1520 = vadd.f32 0.0, %v1519
        %v1521 = vpop.f32.mrb[0].mxu0
        %v1522 = vpop.f32.mrb[0].mxu0
        %v1523 = vadd.f32 0.0, %v1522
        %v1524 = vpop.f32.mrb[0].mxu0
        %1525 = vmatprep.mubr.bf16.mxu0 %v1203
        %1526 = vmatmul.mubr.bf16.gmra.mrb[0].mxu0 %v1202
        %v1527 = vpop.f32.mrb[0].mxu0
        %v1528 = vadd.f32 0.0, %v1527
        %v1529 = vpop.f32.mrb[0].mxu0
        %v1530 = vpop.f32.mrb[0].mxu0
        %v1531 = vadd.f32 0.0, %v1530
        %v1532 = vpop.f32.mrb[0].mxu0
        %1533 = vmatprep.mubr.bf16.mxu0 %v1206
        %1534 = vmatmul.mubr.bf16.gmra.mrb[0].mxu0 %v1205
        %v1535 = vpop.f32.mrb[0].mxu0
        %v1536 = vadd.f32 0.0, %v1535
        %v1537 = vpop.f32.mrb[0].mxu0
        %v1538 = vpop.f32.mrb[0].mxu0
        %v1539 = vadd.f32 0.0, %v1538
        %v1540 = vpop.f32.mrb[0].mxu0
        %1541 = vmatprep.mubr.bf16.mxu0 %v1209
        %1542 = vmatmul.mubr.bf16.gmra.mrb[0].mxu0 %v1208
        %v1543 = vpop.f32.mrb[0].mxu0
        %v1544 = vadd.f32 0.0, %v1543
        %v1545 = vpop.f32.mrb[0].mxu0
        %v1546 = vpop.f32.mrb[0].mxu0
        %v1547 = vadd.f32 0.0, %v1546
        %v1548 = vpop.f32.mrb[0].mxu0
        %1549 = vmatprep.mubr.bf16.mxu0 %v1212
        %1550 = vmatmul.mubr.bf16.gmra.mrb[0].mxu0 %v1211
        %v1551 = vpop.f32.mrb[0].mxu0
        %v1552 = vadd.f32 0.0, %v1551
        %v1553 = vpop.f32.mrb[0].mxu0
        %v1554 = vpop.f32.mrb[0].mxu0
        %v1555 = vadd.f32 0.0, %v1554
        %v1556 = vpop.f32.mrb[0].mxu0
        %1557 = vmatprep.mubr.bf16.mxu0 %v1215
        %1558 = vmatmul.mubr.bf16.gmra.mrb[0].mxu0 %v1214
        %v1559 = vpop.f32.mrb[0].mxu0
        %v1560 = vadd.f32 0.0, %v1559
        %v1561 = vpop.f32.mrb[0].mxu0
        %v1562 = vpop.f32.mrb[0].mxu0
        %v1563 = vadd.f32 0.0, %v1562
        %v1564 = vpop.f32.mrb[0].mxu0
        %1565 = vmatprep.mubr.bf16.mxu0 %v1218
        %1566 = vmatmul.mubr.bf16.gmra.mrb[0].mxu0 %v1217
        %v1567 = vpop.f32.mrb[0].mxu0
        %v1568 = vadd.f32 0.0, %v1567
        %v1569 = vpop.f32.mrb[0].mxu0
        %v1570 = vpop.f32.mrb[0].mxu0
        %v1571 = vadd.f32 0.0, %v1570
        %v1572 = vpop.f32.mrb[0].mxu0
        %1573 = vdwg.mxu0
        %1574 = vmatprep.subr.bf16.mxu0 0
        %1575 = vmatpush1.bf16.msra.mxu0 %v1381
        %1576 = vmatprep.subr.bf16.mxu0 0
        %1577 = vmatpush1.bf16.msra.mxu0 %v1382
        %1578 = vmatprep.subr.bf16.mxu0 0
        %1579 = vmatpush1.bf16.msra.mxu0 %v1383
        %1580 = vmatprep.subr.bf16.mxu0 0
        %1581 = vmatpush1.bf16.msra.mxu0 %v1384
        %1582 = vmatprep.subr.bf16.mxu0 0
        %1583 = vmatpush1.bf16.msra.mxu0 %v1385
        %1584 = vmatprep.subr.bf16.mxu0 0
        %1585 = vmatpush1.bf16.msra.mxu0 %v1386
        %1586 = vmatprep.subr.bf16.mxu0 0
        %1587 = vmatpush1.bf16.msra.mxu0 %v1387
        %1588 = vmatprep.subr.bf16.mxu0 0
        %1589 = vmatpush1.bf16.msra.mxu0 %v1388
        %1590 = vmatprep.subr.bf16.mxu0 0
        %1591 = vmatpush1.bf16.msra.mxu0 0
        %1592 = vmatprep.subr.bf16.mxu0 0
        %1593 = vmatpush1.bf16.msra.mxu0 0
        %1594 = vmatprep.subr.bf16.mxu0 0
        %1595 = vmatpush1.bf16.msra.mxu0 0
        %1596 = vmatprep.subr.bf16.mxu0 0
        %1597 = vmatpush1.bf16.msra.mxu0 0
        %1598 = vmatprep.subr.bf16.mxu0 0
        %1599 = vmatpush1.bf16.msra.mxu0 0
        %1600 = vmatprep.subr.bf16.mxu0 0
        %1601 = vmatpush1.bf16.msra.mxu0 0
        %1602 = vmatprep.subr.bf16.mxu0 0
        %1603 = vmatpush1.bf16.msra.mxu0 0
        %1604 = vmatprep.subr.bf16.mxu0 0
        %1605 = vmatpush1.bf16.msra.mxu0 0
        %1606 = vmatprep.mubr.bf16.mxu0 0
        %1607 = vmatmul.mubr.bf16.gmra.mrb[0].mxu0 %v1174
        %v1608 = vpop.f32.mrb[0].mxu0
        %v1609 = vadd.f32 %v1448, %v1608
        %v1610 = vpop.f32.mrb[0].mxu0
        %v1611 = vpop.f32.mrb[0].mxu0
        %v1612 = vadd.f32 %v1451, %v1611
        %v1613 = vpop.f32.mrb[0].mxu0
        %1614 = vmatprep.mubr.bf16.mxu0 0
        %1615 = vmatmul.mubr.bf16.gmra.mrb[0].mxu0 %v1177
        %v1616 = vpop.f32.mrb[0].mxu0
        %v1617 = vadd.f32 %v1456, %v1616
        %v1618 = vpop.f32.mrb[0].mxu0
        %v1619 = vpop.f32.mrb[0].mxu0
        %v1620 = vadd.f32 %v1459, %v1619
        %v1621 = vpop.f32.mrb[0].mxu0
        %1622 = vmatprep.mubr.bf16.mxu0 0
        %1623 = vmatmul.mubr.bf16.gmra.mrb[0].mxu0 %v1180
        %v1624 = vpop.f32.mrb[0].mxu0
        %v1625 = vadd.f32 %v1464, %v1624
        %v1626 = vpop.f32.mrb[0].mxu0
        %v1627 = vpop.f32.mrb[0].mxu0
        %v1628 = vadd.f32 %v1467, %v1627
        %v1629 = vpop.f32.mrb[0].mxu0
        %1630 = vmatprep.mubr.bf16.mxu0 0
        %1631 = vmatmul.mubr.bf16.gmra.mrb[0].mxu0 %v1183
        %v1632 = vpop.f32.mrb[0].mxu0
        %v1633 = vadd.f32 %v1472, %v1632
        %v1634 = vpop.f32.mrb[0].mxu0
        %v1635 = vpop.f32.mrb[0].mxu0
        %v1636 = vadd.f32 %v1475, %v1635
        %v1637 = vpop.f32.mrb[0].mxu0
        %1638 = vmatprep.mubr.bf16.mxu0 0
        %1639 = vmatmul.mubr.bf16.gmra.mrb[0].mxu0 %v1186
        %v1640 = vpop.f32.mrb[0].mxu0
        %v1641 = vadd.f32 %v1480, %v1640
        %v1642 = vpop.f32.mrb[0].mxu0
        %v1643 = vpop.f32.mrb[0].mxu0
        %v1644 = vadd.f32 %v1483, %v1643
        %v1645 = vpop.f32.mrb[0].mxu0
        %1646 = vmatprep.mubr.bf16.mxu0 0
        %1647 = vmatmul.mubr.bf16.gmra.mrb[0].mxu0 %v1189
        %v1648 = vpop.f32.mrb[0].mxu0
        %v1649 = vadd.f32 %v1488, %v1648
        %v1650 = vpop.f32.mrb[0].mxu0
        %v1651 = vpop.f32.mrb[0].mxu0
        %v1652 = vadd.f32 %v1491, %v1651
        %v1653 = vpop.f32.mrb[0].mxu0
        %1654 = vmatprep.mubr.bf16.mxu0 0
        %1655 = vmatmul.mubr.bf16.gmra.mrb[0].mxu0 %v1192
        %v1656 = vpop.f32.mrb[0].mxu0
        %v1657 = vadd.f32 %v1496, %v1656
        %v1658 = vpop.f32.mrb[0].mxu0
        %v1659 = vpop.f32.mrb[0].mxu0
        %v1660 = vadd.f32 %v1499, %v1659
        %v1661 = vpop.f32.mrb[0].mxu0
        %1662 = vmatprep.mubr.bf16.mxu0 0
        %1663 = vmatmul.mubr.bf16.gmra.mrb[0].mxu0 %v1195
        %v1664 = vpop.f32.mrb[0].mxu0
        %v1665 = vadd.f32 %v1504, %v1664
        %v1666 = vpop.f32.mrb[0].mxu0
        %v1667 = vpop.f32.mrb[0].mxu0
        %v1668 = vadd.f32 %v1507, %v1667
        %v1669 = vpop.f32.mrb[0].mxu0
        %1670 = vmatprep.mubr.bf16.mxu0 0
        %1671 = vmatmul.mubr.bf16.gmra.mrb[0].mxu0 %v1198
        %v1672 = vpop.f32.mrb[0].mxu0
        %v1673 = vadd.f32 %v1512, %v1672
        %v1674 = vpop.f32.mrb[0].mxu0
        %v1675 = vpop.f32.mrb[0].mxu0
        %v1676 = vadd.f32 %v1515, %v1675
        %v1677 = vpop.f32.mrb[0].mxu0
        %1678 = vmatprep.mubr.bf16.mxu0 0
        %1679 = vmatmul.mubr.bf16.gmra.mrb[0].mxu0 %v1201
        %v1680 = vpop.f32.mrb[0].mxu0
        %v1681 = vadd.f32 %v1520, %v1680
        %v1682 = vpop.f32.mrb[0].mxu0
        %v1683 = vpop.f32.mrb[0].mxu0
        %v1684 = vadd.f32 %v1523, %v1683
        %v1685 = vpop.f32.mrb[0].mxu0
        %1686 = vmatprep.mubr.bf16.mxu0 0
        %1687 = vmatmul.mubr.bf16.gmra.mrb[0].mxu0 %v1204
        %v1688 = vpop.f32.mrb[0].mxu0
        %v1689 = vadd.f32 %v1528, %v1688
        %v1690 = vpop.f32.mrb[0].mxu0
        %v1691 = vpop.f32.mrb[0].mxu0
        %v1692 = vadd.f32 %v1531, %v1691
        %v1693 = vpop.f32.mrb[0].mxu0
        %1694 = vmatprep.mubr.bf16.mxu0 0
        %1695 = vmatmul.mubr.bf16.gmra.mrb[0].mxu0 %v1207
        %v1696 = vpop.f32.mrb[0].mxu0
        %v1697 = vadd.f32 %v1536, %v1696
        %v1698 = vpop.f32.mrb[0].mxu0
        %v1699 = vpop.f32.mrb[0].mxu0
        %v1700 = vadd.f32 %v1539, %v1699
        %v1701 = vpop.f32.mrb[0].mxu0
        %1702 = vmatprep.mubr.bf16.mxu0 0
        %1703 = vmatmul.mubr.bf16.gmra.mrb[0].mxu0 %v1210
        %v1704 = vpop.f32.mrb[0].mxu0
        %v1705 = vadd.f32 %v1544, %v1704
        %v1706 = vpop.f32.mrb[0].mxu0
        %v1707 = vpop.f32.mrb[0].mxu0
        %v1708 = vadd.f32 %v1547, %v1707
        %v1709 = vpop.f32.mrb[0].mxu0
        %1710 = vmatprep.mubr.bf16.mxu0 0
        %1711 = vmatmul.mubr.bf16.gmra.mrb[0].mxu0 %v1213
        %v1712 = vpop.f32.mrb[0].mxu0
        %v1713 = vadd.f32 %v1552, %v1712
        %v1714 = vpop.f32.mrb[0].mxu0
        %v1715 = vpop.f32.mrb[0].mxu0
        %v1716 = vadd.f32 %v1555, %v1715
        %v1717 = vpop.f32.mrb[0].mxu0
        %1718 = vmatprep.mubr.bf16.mxu0 0
        %1719 = vmatmul.mubr.bf16.gmra.mrb[0].mxu0 %v1216
        %v1720 = vpop.f32.mrb[0].mxu0
        %v1721 = vadd.f32 %v1560, %v1720
        %v1722 = vpop.f32.mrb[0].mxu0
        %v1723 = vpop.f32.mrb[0].mxu0
        %v1724 = vadd.f32 %v1563, %v1723
        %v1725 = vpop.f32.mrb[0].mxu0
        %1726 = vmatprep.mubr.bf16.mxu0 0
        %1727 = vmatmul.mubr.bf16.gmra.mrb[0].mxu0 %v1219
        %v1728 = vpop.f32.mrb[0].mxu0
        %v1729 = vadd.f32 %v1568, %v1728
        %v1730 = vpop.f32.mrb[0].mxu0
        %v1731 = vpop.f32.mrb[0].mxu0
        %v1732 = vadd.f32 %v1571, %v1731
        %v1733 = vpop.f32.mrb[0].mxu0
        %1734 = vdwg.mxu0
        %v1783 = vunpack.c.l.b16 %v1124
        %v1784 = vunpack.c.l.b16 %v1125
        %v1785 = vunpack.c.l.b16 %v1126
        %v1786 = vunpack.c.l.b16 %v1127
        %v1787 = vunpack.c.l.b16 %v1128
        %v1788 = vunpack.c.l.b16 %v1129
        %v1789 = vunpack.c.l.b16 %v1130
        %v1790 = vunpack.c.l.b16 %v1131
        %v1791 = vunpack.c.l.b16 %v1132
        %v1792 = vunpack.c.l.b16 %v1133
        %v1793 = vunpack.c.l.b16 %v1134
        %v1794 = vunpack.c.l.b16 %v1135
        %v1795 = vunpack.c.l.b16 %v1136
        %v1796 = vunpack.c.l.b16 %v1137
        %v1797 = vunpack.c.l.b16 %v1138
        %v1798 = vunpack.c.l.b16 %v1139
        %v1799 = vunpack.c.l.b16 %v1140
        %v1800 = vunpack.c.l.b16 %v1141
        %v1801 = vunpack.c.l.b16 %v1142
        %v1802 = vunpack.c.l.b16 %v1143
        %v1803 = vunpack.c.l.b16 %v1144
        %v1804 = vunpack.c.l.b16 %v1145
        %v1805 = vunpack.c.l.b16 %v1146
        %v1806 = vunpack.c.l.b16 %v1147
        %v1807 = vunpack.c.l.b16 %v1148
        %v1808 = vunpack.c.l.b16 %v1149
        %v1809 = vunpack.c.l.b16 %v1150
        %v1810 = vunpack.c.l.b16 %v1151
        %v1811 = vunpack.c.l.b16 %v1152
        %v1812 = vunpack.c.l.b16 %v1153
        %v1813 = vunpack.c.l.b16 %v1154
        %v1814 = vunpack.c.l.b16 %v1155
        %v1815 = vunpack.c.l.b16 %v1156
        %v1816 = vunpack.c.l.b16 %v1157
        %v1817 = vunpack.c.l.b16 %v1158
        %v1818 = vunpack.c.l.b16 %v1159
        %v1819 = vunpack.c.l.b16 %v1160
        %v1820 = vunpack.c.l.b16 %v1161
        %v1821 = vunpack.c.l.b16 %v1162
        %v1822 = vunpack.c.l.b16 %v1163
        %v1823 = vunpack.c.l.b16 %v1164
        %v1824 = vunpack.c.l.b16 %v1165
        %v1825 = vunpack.c.l.b16 %v1166
        %v1826 = vunpack.c.l.b16 %v1167
        %v1827 = vunpack.c.l.b16 %v1168
        %v1828 = vunpack.c.l.b16 %v1169
        %v1829 = vunpack.c.l.b16 %v1170
        %v1830 = vunpack.c.l.b16 %v1171
        %v1831 = vpack.c.b16 %v1784, %v1783
        %v1832 = vpack.c.b16 %v1786, %v1785
        %v1833 = vpack.c.b16 %v1788, %v1787
        %v1834 = vpack.c.b16 %v1790, %v1789
        %v1835 = vpack.c.b16 %v1792, %v1791
        %v1836 = vpack.c.b16 %v1794, %v1793
        %v1837 = vpack.c.b16 %v1796, %v1795
        %v1838 = vpack.c.b16 %v1798, %v1797
        %v1839 = vpack.c.b16 %v1800, %v1799
        %v1840 = vpack.c.b16 %v1802, %v1801
        %v1841 = vpack.c.b16 %v1804, %v1803
        %v1842 = vpack.c.b16 %v1806, %v1805
        %v1843 = vpack.c.b16 %v1808, %v1807
        %v1844 = vpack.c.b16 %v1810, %v1809
        %v1845 = vpack.c.b16 %v1812, %v1811
        %v1846 = vpack.c.b16 %v1814, %v1813
        %v1847 = vpack.c.b16 %v1816, %v1815
        %v1848 = vpack.c.b16 %v1818, %v1817
        %v1849 = vpack.c.b16 %v1820, %v1819
        %v1850 = vpack.c.b16 %v1822, %v1821
        %v1851 = vpack.c.b16 %v1824, %v1823
        %v1852 = vpack.c.b16 %v1826, %v1825
        %v1853 = vpack.c.b16 %v1828, %v1827
        %v1854 = vpack.c.b16 %v1830, %v1829
        %1879 = vmatprep.subr.bf16.mxu0 0
        %1880 = vmatpush1.bf16.msra.mxu0 %v1831
        %1881 = vmatprep.subr.bf16.mxu0 0
        %1882 = vmatpush1.bf16.msra.mxu0 %v1832
        %1883 = vmatprep.subr.bf16.mxu0 0
        %1884 = vmatpush1.bf16.msra.mxu0 %v1833
        %1885 = vmatprep.subr.bf16.mxu0 0
        %1886 = vmatpush1.bf16.msra.mxu0 %v1834
        %1887 = vmatprep.subr.bf16.mxu0 0
        %1888 = vmatpush1.bf16.msra.mxu0 %v1835
        %1889 = vmatprep.subr.bf16.mxu0 0
        %1890 = vmatpush1.bf16.msra.mxu0 %v1836
        %1891 = vmatprep.subr.bf16.mxu0 0
        %1892 = vmatpush1.bf16.msra.mxu0 %v1837
        %1893 = vmatprep.subr.bf16.mxu0 0
        %1894 = vmatpush1.bf16.msra.mxu0 %v1838
        %1895 = vmatprep.subr.bf16.mxu0 0
        %1896 = vmatpush1.bf16.msra.mxu0 %v1839
        %1897 = vmatprep.subr.bf16.mxu0 0
        %1898 = vmatpush1.bf16.msra.mxu0 %v1840
        %1899 = vmatprep.subr.bf16.mxu0 0
        %1900 = vmatpush1.bf16.msra.mxu0 %v1841
        %1901 = vmatprep.subr.bf16.mxu0 0
        %1902 = vmatpush1.bf16.msra.mxu0 %v1842
        %1903 = vmatprep.subr.bf16.mxu0 0
        %1904 = vmatpush1.bf16.msra.mxu0 %v1843
        %1905 = vmatprep.subr.bf16.mxu0 0
        %1906 = vmatpush1.bf16.msra.mxu0 %v1844
        %1907 = vmatprep.subr.bf16.mxu0 0
        %1908 = vmatpush1.bf16.msra.mxu0 %v1845
        %1909 = vmatprep.subr.bf16.mxu0 0
        %1910 = vmatpush1.bf16.msra.mxu0 %v1846
        %1911 = vmatprep.mubr.bf16.mxu0 %v1077
        %1912 = vmatmul.mubr.bf16.gmra.mrb[0].mxu0 %v1076
        %v1913 = vpop.f32.mrb[0].mxu0
        %v1914 = vadd.f32 %v1609, %v1913
        %v1915 = vpop.f32.mrb[0].mxu0
        %v1916 = vpop.f32.mrb[0].mxu0
        %v1917 = vadd.f32 %v1612, %v1916
        %v1918 = vpop.f32.mrb[0].mxu0
        %1919 = vmatprep.mubr.bf16.mxu0 %v1080
        %1920 = vmatmul.mubr.bf16.gmra.mrb[0].mxu0 %v1079
        %v1921 = vpop.f32.mrb[0].mxu0
        %v1922 = vadd.f32 %v1617, %v1921
        %v1923 = vpop.f32.mrb[0].mxu0
        %v1924 = vpop.f32.mrb[0].mxu0
        %v1925 = vadd.f32 %v1620, %v1924
        %v1926 = vpop.f32.mrb[0].mxu0
        %1927 = vmatprep.mubr.bf16.mxu0 %v1083
        %1928 = vmatmul.mubr.bf16.gmra.mrb[0].mxu0 %v1082
        %v1929 = vpop.f32.mrb[0].mxu0
        %v1930 = vadd.f32 %v1625, %v1929
        %v1931 = vpop.f32.mrb[0].mxu0
        %v1932 = vpop.f32.mrb[0].mxu0
        %v1933 = vadd.f32 %v1628, %v1932
        %v1934 = vpop.f32.mrb[0].mxu0
        %1935 = vmatprep.mubr.bf16.mxu0 %v1086
        %1936 = vmatmul.mubr.bf16.gmra.mrb[0].mxu0 %v1085
        %v1937 = vpop.f32.mrb[0].mxu0
        %v1938 = vadd.f32 %v1633, %v1937
        %v1939 = vpop.f32.mrb[0].mxu0
        %v1940 = vpop.f32.mrb[0].mxu0
        %v1941 = vadd.f32 %v1636, %v1940
        %v1942 = vpop.f32.mrb[0].mxu0
        %1943 = vmatprep.mubr.bf16.mxu0 %v1089
        %1944 = vmatmul.mubr.bf16.gmra.mrb[0].mxu0 %v1088
        %v1945 = vpop.f32.mrb[0].mxu0
        %v1946 = vadd.f32 %v1641, %v1945
        %v1947 = vpop.f32.mrb[0].mxu0
        %v1948 = vpop.f32.mrb[0].mxu0
        %v1949 = vadd.f32 %v1644, %v1948
        %v1950 = vpop.f32.mrb[0].mxu0
        %1951 = vmatprep.mubr.bf16.mxu0 %v1092
        %1952 = vmatmul.mubr.bf16.gmra.mrb[0].mxu0 %v1091
        %v1953 = vpop.f32.mrb[0].mxu0
        %v1954 = vadd.f32 %v1649, %v1953
        %v1955 = vpop.f32.mrb[0].mxu0
        %v1956 = vpop.f32.mrb[0].mxu0
        %v1957 = vadd.f32 %v1652, %v1956
        %v1958 = vpop.f32.mrb[0].mxu0
        %1959 = vmatprep.mubr.bf16.mxu0 %v1095
        %1960 = vmatmul.mubr.bf16.gmra.mrb[0].mxu0 %v1094
        %v1961 = vpop.f32.mrb[0].mxu0
        %v1962 = vadd.f32 %v1657, %v1961
        %v1963 = vpop.f32.mrb[0].mxu0
        %v1964 = vpop.f32.mrb[0].mxu0
        %v1965 = vadd.f32 %v1660, %v1964
        %v1966 = vpop.f32.mrb[0].mxu0
        %1967 = vmatprep.mubr.bf16.mxu0 %v1098
        %1968 = vmatmul.mubr.bf16.gmra.mrb[0].mxu0 %v1097
        %v1969 = vpop.f32.mrb[0].mxu0
        %v1970 = vadd.f32 %v1665, %v1969
        %v1971 = vpop.f32.mrb[0].mxu0
        %v1972 = vpop.f32.mrb[0].mxu0
        %v1973 = vadd.f32 %v1668, %v1972
        %v1974 = vpop.f32.mrb[0].mxu0
        %1975 = vmatprep.mubr.bf16.mxu0 %v1101
        %1976 = vmatmul.mubr.bf16.gmra.mrb[0].mxu0 %v1100
        %v1977 = vpop.f32.mrb[0].mxu0
        %v1978 = vadd.f32 %v1673, %v1977
        %v1979 = vpop.f32.mrb[0].mxu0
        %v1980 = vpop.f32.mrb[0].mxu0
        %v1981 = vadd.f32 %v1676, %v1980
        %v1982 = vpop.f32.mrb[0].mxu0
        %1983 = vmatprep.mubr.bf16.mxu0 %v1104
        %1984 = vmatmul.mubr.bf16.gmra.mrb[0].mxu0 %v1103
        %v1985 = vpop.f32.mrb[0].mxu0
        %v1986 = vadd.f32 %v1681, %v1985
        %v1987 = vpop.f32.mrb[0].mxu0
        %v1988 = vpop.f32.mrb[0].mxu0
        %v1989 = vadd.f32 %v1684, %v1988
        %v1990 = vpop.f32.mrb[0].mxu0
        %1991 = vmatprep.mubr.bf16.mxu0 %v1107
        %1992 = vmatmul.mubr.bf16.gmra.mrb[0].mxu0 %v1106
        %v1993 = vpop.f32.mrb[0].mxu0
        %v1994 = vadd.f32 %v1689, %v1993
        %v1995 = vpop.f32.mrb[0].mxu0
        %v1996 = vpop.f32.mrb[0].mxu0
        %v1997 = vadd.f32 %v1692, %v1996
        %v1998 = vpop.f32.mrb[0].mxu0
        %1999 = vmatprep.mubr.bf16.mxu0 %v1110
        %2000 = vmatmul.mubr.bf16.gmra.mrb[0].mxu0 %v1109
        %v2001 = vpop.f32.mrb[0].mxu0
        %v2002 = vadd.f32 %v1697, %v2001
        %v2003 = vpop.f32.mrb[0].mxu0
        %v2004 = vpop.f32.mrb[0].mxu0
        %v2005 = vadd.f32 %v1700, %v2004
        %v2006 = vpop.f32.mrb[0].mxu0
        %2007 = vmatprep.mubr.bf16.mxu0 %v1113
        %2008 = vmatmul.mubr.bf16.gmra.mrb[0].mxu0 %v1112
        %v2009 = vpop.f32.mrb[0].mxu0
        %v2010 = vadd.f32 %v1705, %v2009
        %v2011 = vpop.f32.mrb[0].mxu0
        %v2012 = vpop.f32.mrb[0].mxu0
        %v2013 = vadd.f32 %v1708, %v2012
        %v2014 = vpop.f32.mrb[0].mxu0
        %2015 = vmatprep.mubr.bf16.mxu0 %v1116
        %2016 = vmatmul.mubr.bf16.gmra.mrb[0].mxu0 %v1115
        %v2017 = vpop.f32.mrb[0].mxu0
        %v2018 = vadd.f32 %v1713, %v2017
        %v2019 = vpop.f32.mrb[0].mxu0
        %v2020 = vpop.f32.mrb[0].mxu0
        %v2021 = vadd.f32 %v1716, %v2020
        %v2022 = vpop.f32.mrb[0].mxu0
        %2023 = vmatprep.mubr.bf16.mxu0 %v1119
        %2024 = vmatmul.mubr.bf16.gmra.mrb[0].mxu0 %v1118
        %v2025 = vpop.f32.mrb[0].mxu0
        %v2026 = vadd.f32 %v1721, %v2025
        %v2027 = vpop.f32.mrb[0].mxu0
        %v2028 = vpop.f32.mrb[0].mxu0
        %v2029 = vadd.f32 %v1724, %v2028
        %v2030 = vpop.f32.mrb[0].mxu0
        %2031 = vmatprep.mubr.bf16.mxu0 %v1122
        %2032 = vmatmul.mubr.bf16.gmra.mrb[0].mxu0 %v1121
        %v2033 = vpop.f32.mrb[0].mxu0
        %v2034 = vadd.f32 %v1729, %v2033
        %v2035 = vpop.f32.mrb[0].mxu0
        %v2036 = vpop.f32.mrb[0].mxu0
        %v2037 = vadd.f32 %v1732, %v2036
        %v2038 = vpop.f32.mrb[0].mxu0
        %2039 = vdwg.mxu0
        %2040 = vmatprep.subr.bf16.mxu0 0
        %2041 = vmatpush1.bf16.msra.mxu0 %v1847
        %2042 = vmatprep.subr.bf16.mxu0 0
        %2043 = vmatpush1.bf16.msra.mxu0 %v1848
        %2044 = vmatprep.subr.bf16.mxu0 0
        %2045 = vmatpush1.bf16.msra.mxu0 %v1849
        %2046 = vmatprep.subr.bf16.mxu0 0
        %2047 = vmatpush1.bf16.msra.mxu0 %v1850
        %2048 = vmatprep.subr.bf16.mxu0 0
        %2049 = vmatpush1.bf16.msra.mxu0 %v1851
        %2050 = vmatprep.subr.bf16.mxu0 0
        %2051 = vmatpush1.bf16.msra.mxu0 %v1852
        %2052 = vmatprep.subr.bf16.mxu0 0
        %2053 = vmatpush1.bf16.msra.mxu0 %v1853
        %2054 = vmatprep.subr.bf16.mxu0 0
        %2055 = vmatpush1.bf16.msra.mxu0 %v1854
        %2056 = vmatprep.subr.bf16.mxu0 0
        %2057 = vmatpush1.bf16.msra.mxu0 0
        %2058 = vmatprep.subr.bf16.mxu0 0
        %2059 = vmatpush1.bf16.msra.mxu0 0
        %2060 = vmatprep.subr.bf16.mxu0 0
        %2061 = vmatpush1.bf16.msra.mxu0 0
        %2062 = vmatprep.subr.bf16.mxu0 0
        %2063 = vmatpush1.bf16.msra.mxu0 0
        %2064 = vmatprep.subr.bf16.mxu0 0
        %2065 = vmatpush1.bf16.msra.mxu0 0
        %2066 = vmatprep.subr.bf16.mxu0 0
        %2067 = vmatpush1.bf16.msra.mxu0 0
        %2068 = vmatprep.subr.bf16.mxu0 0
        %2069 = vmatpush1.bf16.msra.mxu0 0
        %2070 = vmatprep.subr.bf16.mxu0 0
        %2071 = vmatpush1.bf16.msra.mxu0 0
        %2072 = vmatprep.mubr.bf16.mxu0 0
        %2073 = vmatmul.mubr.bf16.gmra.mrb[0].mxu0 %v1078
        %v2074 = vpop.f32.mrb[0].mxu0
        %v2075 = vadd.f32 %v1914, %v2074
        %v2076 = vpop.f32.mrb[0].mxu0
        %v2077 = vpop.f32.mrb[0].mxu0
        %v2078 = vadd.f32 %v1917, %v2077
        %v2079 = vpop.f32.mrb[0].mxu0
        %2080 = vmatprep.mubr.bf16.mxu0 0
        %2081 = vmatmul.mubr.bf16.gmra.mrb[0].mxu0 %v1081
        %v2082 = vpop.f32.mrb[0].mxu0
        %v2083 = vadd.f32 %v1922, %v2082
        %v2084 = vpop.f32.mrb[0].mxu0
        %v2085 = vpop.f32.mrb[0].mxu0
        %v2086 = vadd.f32 %v1925, %v2085
        %v2087 = vpop.f32.mrb[0].mxu0
        %2088 = vmatprep.mubr.bf16.mxu0 0
        %2089 = vmatmul.mubr.bf16.gmra.mrb[0].mxu0 %v1084
        %v2090 = vpop.f32.mrb[0].mxu0
        %v2091 = vadd.f32 %v1930, %v2090
        %v2092 = vpop.f32.mrb[0].mxu0
        %v2093 = vpop.f32.mrb[0].mxu0
        %v2094 = vadd.f32 %v1933, %v2093
        %v2095 = vpop.f32.mrb[0].mxu0
        %2096 = vmatprep.mubr.bf16.mxu0 0
        %2097 = vmatmul.mubr.bf16.gmra.mrb[0].mxu0 %v1087
        %v2098 = vpop.f32.mrb[0].mxu0
        %v2099 = vadd.f32 %v1938, %v2098
        %v2100 = vpop.f32.mrb[0].mxu0
        %v2101 = vpop.f32.mrb[0].mxu0
        %v2102 = vadd.f32 %v1941, %v2101
        %v2103 = vpop.f32.mrb[0].mxu0
        %2104 = vmatprep.mubr.bf16.mxu0 0
        %2105 = vmatmul.mubr.bf16.gmra.mrb[0].mxu0 %v1090
        %v2106 = vpop.f32.mrb[0].mxu0
        %v2107 = vadd.f32 %v1946, %v2106
        %v2108 = vpop.f32.mrb[0].mxu0
        %v2109 = vpop.f32.mrb[0].mxu0
        %v2110 = vadd.f32 %v1949, %v2109
        %v2111 = vpop.f32.mrb[0].mxu0
        %2112 = vmatprep.mubr.bf16.mxu0 0
        %2113 = vmatmul.mubr.bf16.gmra.mrb[0].mxu0 %v1093
        %v2114 = vpop.f32.mrb[0].mxu0
        %v2115 = vadd.f32 %v1954, %v2114
        %v2116 = vpop.f32.mrb[0].mxu0
        %v2117 = vpop.f32.mrb[0].mxu0
        %v2118 = vadd.f32 %v1957, %v2117
        %v2119 = vpop.f32.mrb[0].mxu0
        %2120 = vmatprep.mubr.bf16.mxu0 0
        %2121 = vmatmul.mubr.bf16.gmra.mrb[0].mxu0 %v1096
        %v2122 = vpop.f32.mrb[0].mxu0
        %v2123 = vadd.f32 %v1962, %v2122
        %v2124 = vpop.f32.mrb[0].mxu0
        %v2125 = vpop.f32.mrb[0].mxu0
        %v2126 = vadd.f32 %v1965, %v2125
        %v2127 = vpop.f32.mrb[0].mxu0
        %2128 = vmatprep.mubr.bf16.mxu0 0
        %2129 = vmatmul.mubr.bf16.gmra.mrb[0].mxu0 %v1099
        %v2130 = vpop.f32.mrb[0].mxu0
        %v2131 = vadd.f32 %v1970, %v2130
        %v2132 = vpop.f32.mrb[0].mxu0
        %v2133 = vpop.f32.mrb[0].mxu0
        %v2134 = vadd.f32 %v1973, %v2133
        %v2135 = vpop.f32.mrb[0].mxu0
        %2136 = vmatprep.mubr.bf16.mxu0 0
        %2137 = vmatmul.mubr.bf16.gmra.mrb[0].mxu0 %v1102
        %v2138 = vpop.f32.mrb[0].mxu0
        %v2139 = vadd.f32 %v1978, %v2138
        %v2140 = vpop.f32.mrb[0].mxu0
        %v2141 = vpop.f32.mrb[0].mxu0
        %v2142 = vadd.f32 %v1981, %v2141
        %v2143 = vpop.f32.mrb[0].mxu0
        %2144 = vmatprep.mubr.bf16.mxu0 0
        %2145 = vmatmul.mubr.bf16.gmra.mrb[0].mxu0 %v1105
        %v2146 = vpop.f32.mrb[0].mxu0
        %v2147 = vadd.f32 %v1986, %v2146
        %v2148 = vpop.f32.mrb[0].mxu0
        %v2149 = vpop.f32.mrb[0].mxu0
        %v2150 = vadd.f32 %v1989, %v2149
        %v2151 = vpop.f32.mrb[0].mxu0
        %2152 = vmatprep.mubr.bf16.mxu0 0
        %2153 = vmatmul.mubr.bf16.gmra.mrb[0].mxu0 %v1108
        %v2154 = vpop.f32.mrb[0].mxu0
        %v2155 = vadd.f32 %v1994, %v2154
        %v2156 = vpop.f32.mrb[0].mxu0
        %v2157 = vpop.f32.mrb[0].mxu0
        %v2158 = vadd.f32 %v1997, %v2157
        %v2159 = vpop.f32.mrb[0].mxu0
        %2160 = vmatprep.mubr.bf16.mxu0 0
        %2161 = vmatmul.mubr.bf16.gmra.mrb[0].mxu0 %v1111
        %v2162 = vpop.f32.mrb[0].mxu0
        %v2163 = vadd.f32 %v2002, %v2162
        %v2164 = vpop.f32.mrb[0].mxu0
        %v2165 = vpop.f32.mrb[0].mxu0
        %v2166 = vadd.f32 %v2005, %v2165
        %v2167 = vpop.f32.mrb[0].mxu0
        %2168 = vmatprep.mubr.bf16.mxu0 0
        %2169 = vmatmul.mubr.bf16.gmra.mrb[0].mxu0 %v1114
        %v2170 = vpop.f32.mrb[0].mxu0
        %v2171 = vadd.f32 %v2010, %v2170
        %v2172 = vpop.f32.mrb[0].mxu0
        %v2173 = vpop.f32.mrb[0].mxu0
        %v2174 = vadd.f32 %v2013, %v2173
        %v2175 = vpop.f32.mrb[0].mxu0
        %2176 = vmatprep.mubr.bf16.mxu0 0
        %2177 = vmatmul.mubr.bf16.gmra.mrb[0].mxu0 %v1117
        %v2178 = vpop.f32.mrb[0].mxu0
        %v2179 = vadd.f32 %v2018, %v2178
        %v2180 = vpop.f32.mrb[0].mxu0
        %v2181 = vpop.f32.mrb[0].mxu0
        %v2182 = vadd.f32 %v2021, %v2181
        %v2183 = vpop.f32.mrb[0].mxu0
        %2184 = vmatprep.mubr.bf16.mxu0 0
        %2185 = vmatmul.mubr.bf16.gmra.mrb[0].mxu0 %v1120
        %v2186 = vpop.f32.mrb[0].mxu0
        %v2187 = vadd.f32 %v2026, %v2186
        %v2188 = vpop.f32.mrb[0].mxu0
        %v2189 = vpop.f32.mrb[0].mxu0
        %v2190 = vadd.f32 %v2029, %v2189
        %v2191 = vpop.f32.mrb[0].mxu0
        %2192 = vmatprep.mubr.bf16.mxu0 0
        %2193 = vmatmul.mubr.bf16.gmra.mrb[0].mxu0 %v1123
        %v2194 = vpop.f32.mrb[0].mxu0
        %v2195 = vadd.f32 %v2034, %v2194
        %v2196 = vpop.f32.mrb[0].mxu0
        %v2197 = vpop.f32.mrb[0].mxu0
        %v2198 = vadd.f32 %v2037, %v2197
        %v2199 = vpop.f32.mrb[0].mxu0
        %2200 = vdwg.mxu0
        %s2201 = scalar_lea.vmem [#allocation2], 48
        %v2202 = vld [vmem:[%s2201] sm:$0xff]
        %v2203 = vld [vmem:[%s2201 + $0x8] sm:$0xff]
        %v2204 = vld [vmem:[%s2201 + $0x10] sm:$0xff]
        %v2205 = vld [vmem:[%s2201 + $0x18] sm:$0xff]
        %v2206 = vld [vmem:[%s2201 + $0x20] sm:$0xff]
        %v2207 = vld [vmem:[%s2201 + $0x28] sm:$0xff]
        %v2208 = vld [vmem:[%s2201 + $0x30] sm:$0xff]
        %v2209 = vld [vmem:[%s2201 + $0x38] sm:$0xff]
        %v2210 = vld [vmem:[%s2201 + $0x40] sm:$0xff]
        %v2211 = vld [vmem:[%s2201 + $0x48] sm:$0xff]
        %v2212 = vld [vmem:[%s2201 + $0x50] sm:$0xff]
        %v2213 = vld [vmem:[%s2201 + $0x58] sm:$0xff]
        %v2214 = vld [vmem:[%s2201 + $0x60] sm:$0xff]
        %v2215 = vld [vmem:[%s2201 + $0x68] sm:$0xff]
        %v2216 = vld [vmem:[%s2201 + $0x70] sm:$0xff]
        %v2217 = vld [vmem:[%s2201 + $0x78] sm:$0xff]
        %v2218 = vld [vmem:[%s2201 + $0x80] sm:$0xff]
        %v2219 = vld [vmem:[%s2201 + $0x88] sm:$0xff]
        %v2220 = vld [vmem:[%s2201 + $0x90] sm:$0xff]
        %v2221 = vld [vmem:[%s2201 + $0x98] sm:$0xff]
        %v2222 = vld [vmem:[%s2201 + $0xa0] sm:$0xff]
        %v2223 = vld [vmem:[%s2201 + $0xa8] sm:$0xff]
        %v2224 = vld [vmem:[%s2201 + $0xb0] sm:$0xff]
        %v2225 = vld [vmem:[%s2201 + $0xb8] sm:$0xff]
        %v2226 = vld [vmem:[%s2201 + $0xc0] sm:$0xff]
        %v2227 = vld [vmem:[%s2201 + $0xc8] sm:$0xff]
        %v2228 = vld [vmem:[%s2201 + $0xd0] sm:$0xff]
        %v2229 = vld [vmem:[%s2201 + $0xd8] sm:$0xff]
        %v2230 = vld [vmem:[%s2201 + $0xe0] sm:$0xff]
        %v2231 = vld [vmem:[%s2201 + $0xe8] sm:$0xff]
        %v2232 = vld [vmem:[%s2201 + $0xf0] sm:$0xff]
        %v2233 = vld [vmem:[%s2201 + $0xf8] sm:$0xff]
        %v2234 = vld [vmem:[%s2201 + $0x100] sm:$0xff]
        %v2235 = vld [vmem:[%s2201 + $0x108] sm:$0xff]
        %v2236 = vld [vmem:[%s2201 + $0x110] sm:$0xff]
        %v2237 = vld [vmem:[%s2201 + $0x118] sm:$0xff]
        %v2238 = vld [vmem:[%s2201 + $0x120] sm:$0xff]
        %v2239 = vld [vmem:[%s2201 + $0x128] sm:$0xff]
        %v2240 = vld [vmem:[%s2201 + $0x130] sm:$0xff]
        %v2241 = vld [vmem:[%s2201 + $0x138] sm:$0xff]
        %v2242 = vld [vmem:[%s2201 + $0x140] sm:$0xff]
        %v2243 = vld [vmem:[%s2201 + $0x148] sm:$0xff]
        %v2244 = vld [vmem:[%s2201 + $0x150] sm:$0xff]
        %v2245 = vld [vmem:[%s2201 + $0x158] sm:$0xff]
        %v2246 = vld [vmem:[%s2201 + $0x160] sm:$0xff]
        %v2247 = vld [vmem:[%s2201 + $0x168] sm:$0xff]
        %v2248 = vld [vmem:[%s2201 + $0x170] sm:$0xff]
        %v2249 = vld [vmem:[%s2201 + $0x178] sm:$0xff]
        %s2250 = scalar_lea.vmem [#allocation8], 384
        %v2251 = vld [vmem:[%s2250] sm:$0xf]
        %v2252 = vld [vmem:[%s2250 + $0x4] sm:$0xf]
        %v2253 = vld [vmem:[%s2250 + $0x8] sm:$0xf]
        %v2254 = vld [vmem:[%s2250 + $0xc] sm:$0xf]
        %v2255 = vld [vmem:[%s2250 + $0x10] sm:$0xf]
        %v2256 = vld [vmem:[%s2250 + $0x14] sm:$0xf]
        %v2257 = vld [vmem:[%s2250 + $0x18] sm:$0xf]
        %v2258 = vld [vmem:[%s2250 + $0x1c] sm:$0xf]
        %v2259 = vld [vmem:[%s2250 + $0x20] sm:$0xf]
        %v2260 = vld [vmem:[%s2250 + $0x24] sm:$0xf]
        %v2261 = vld [vmem:[%s2250 + $0x28] sm:$0xf]
        %v2262 = vld [vmem:[%s2250 + $0x2c] sm:$0xf]
        %v2263 = vld [vmem:[%s2250 + $0x30] sm:$0xf]
        %v2264 = vld [vmem:[%s2250 + $0x34] sm:$0xf]
        %v2265 = vld [vmem:[%s2250 + $0x38] sm:$0xf]
        %v2266 = vld [vmem:[%s2250 + $0x3c] sm:$0xf]
        %v2267 = vld [vmem:[%s2250 + $0x40] sm:$0xf]
        %v2268 = vld [vmem:[%s2250 + $0x44] sm:$0xf]
        %v2269 = vld [vmem:[%s2250 + $0x48] sm:$0xf]
        %v2270 = vld [vmem:[%s2250 + $0x4c] sm:$0xf]
        %v2271 = vld [vmem:[%s2250 + $0x50] sm:$0xf]
        %v2272 = vld [vmem:[%s2250 + $0x54] sm:$0xf]
        %v2273 = vld [vmem:[%s2250 + $0x58] sm:$0xf]
        %v2274 = vld [vmem:[%s2250 + $0x5c] sm:$0xf]
        %v2275 = vld [vmem:[%s2250 + $0x60] sm:$0xf]
        %v2276 = vld [vmem:[%s2250 + $0x64] sm:$0xf]
        %v2277 = vld [vmem:[%s2250 + $0x68] sm:$0xf]
        %v2278 = vld [vmem:[%s2250 + $0x6c] sm:$0xf]
        %v2279 = vld [vmem:[%s2250 + $0x70] sm:$0xf]
        %v2280 = vld [vmem:[%s2250 + $0x74] sm:$0xf]
        %v2281 = vld [vmem:[%s2250 + $0x78] sm:$0xf]
        %v2282 = vld [vmem:[%s2250 + $0x7c] sm:$0xf]
        %v2283 = vld [vmem:[%s2250 + $0x80] sm:$0xf]
        %v2284 = vld [vmem:[%s2250 + $0x84] sm:$0xf]
        %v2285 = vld [vmem:[%s2250 + $0x88] sm:$0xf]
        %v2286 = vld [vmem:[%s2250 + $0x8c] sm:$0xf]
        %v2287 = vld [vmem:[%s2250 + $0x90] sm:$0xf]
        %v2288 = vld [vmem:[%s2250 + $0x94] sm:$0xf]
        %v2289 = vld [vmem:[%s2250 + $0x98] sm:$0xf]
        %v2290 = vld [vmem:[%s2250 + $0x9c] sm:$0xf]
        %v2291 = vld [vmem:[%s2250 + $0xa0] sm:$0xf]
        %v2292 = vld [vmem:[%s2250 + $0xa4] sm:$0xf]
        %v2293 = vld [vmem:[%s2250 + $0xa8] sm:$0xf]
        %v2294 = vld [vmem:[%s2250 + $0xac] sm:$0xf]
        %v2295 = vld [vmem:[%s2250 + $0xb0] sm:$0xf]
        %v2296 = vld [vmem:[%s2250 + $0xb4] sm:$0xf]
        %v2297 = vld [vmem:[%s2250 + $0xb8] sm:$0xf]
        %v2298 = vld [vmem:[%s2250 + $0xbc] sm:$0xf]
        %v2347 = vunpack.c.l.b16 %v2251
        %v2348 = vunpack.c.l.b16 %v2252
        %v2349 = vunpack.c.l.b16 %v2253
        %v2350 = vunpack.c.l.b16 %v2254
        %v2351 = vunpack.c.l.b16 %v2255
        %v2352 = vunpack.c.l.b16 %v2256
        %v2353 = vunpack.c.l.b16 %v2257
        %v2354 = vunpack.c.l.b16 %v2258
        %v2355 = vunpack.c.l.b16 %v2259
        %v2356 = vunpack.c.l.b16 %v2260
        %v2357 = vunpack.c.l.b16 %v2261
        %v2358 = vunpack.c.l.b16 %v2262
        %v2359 = vunpack.c.l.b16 %v2263
        %v2360 = vunpack.c.l.b16 %v2264
        %v2361 = vunpack.c.l.b16 %v2265
        %v2362 = vunpack.c.l.b16 %v2266
        %v2363 = vunpack.c.l.b16 %v2267
        %v2364 = vunpack.c.l.b16 %v2268
        %v2365 = vunpack.c.l.b16 %v2269
        %v2366 = vunpack.c.l.b16 %v2270
        %v2367 = vunpack.c.l.b16 %v2271
        %v2368 = vunpack.c.l.b16 %v2272
        %v2369 = vunpack.c.l.b16 %v2273
        %v2370 = vunpack.c.l.b16 %v2274
        %v2371 = vunpack.c.l.b16 %v2275
        %v2372 = vunpack.c.l.b16 %v2276
        %v2373 = vunpack.c.l.b16 %v2277
        %v2374 = vunpack.c.l.b16 %v2278
        %v2375 = vunpack.c.l.b16 %v2279
        %v2376 = vunpack.c.l.b16 %v2280
        %v2377 = vunpack.c.l.b16 %v2281
        %v2378 = vunpack.c.l.b16 %v2282
        %v2379 = vunpack.c.l.b16 %v2283
        %v2380 = vunpack.c.l.b16 %v2284
        %v2381 = vunpack.c.l.b16 %v2285
        %v2382 = vunpack.c.l.b16 %v2286
        %v2383 = vunpack.c.l.b16 %v2287
        %v2384 = vunpack.c.l.b16 %v2288
        %v2385 = vunpack.c.l.b16 %v2289
        %v2386 = vunpack.c.l.b16 %v2290
        %v2387 = vunpack.c.l.b16 %v2291
        %v2388 = vunpack.c.l.b16 %v2292
        %v2389 = vunpack.c.l.b16 %v2293
        %v2390 = vunpack.c.l.b16 %v2294
        %v2391 = vunpack.c.l.b16 %v2295
        %v2392 = vunpack.c.l.b16 %v2296
        %v2393 = vunpack.c.l.b16 %v2297
        %v2394 = vunpack.c.l.b16 %v2298
        %v2395 = vpack.c.b16 %v2348, %v2347
        %v2396 = vpack.c.b16 %v2350, %v2349
        %v2397 = vpack.c.b16 %v2352, %v2351
        %v2398 = vpack.c.b16 %v2354, %v2353
        %v2399 = vpack.c.b16 %v2356, %v2355
        %v2400 = vpack.c.b16 %v2358, %v2357
        %v2401 = vpack.c.b16 %v2360, %v2359
        %v2402 = vpack.c.b16 %v2362, %v2361
        %v2403 = vpack.c.b16 %v2364, %v2363
        %v2404 = vpack.c.b16 %v2366, %v2365
        %v2405 = vpack.c.b16 %v2368, %v2367
        %v2406 = vpack.c.b16 %v2370, %v2369
        %v2407 = vpack.c.b16 %v2372, %v2371
        %v2408 = vpack.c.b16 %v2374, %v2373
        %v2409 = vpack.c.b16 %v2376, %v2375
        %v2410 = vpack.c.b16 %v2378, %v2377
        %v2411 = vpack.c.b16 %v2380, %v2379
        %v2412 = vpack.c.b16 %v2382, %v2381
        %v2413 = vpack.c.b16 %v2384, %v2383
        %v2414 = vpack.c.b16 %v2386, %v2385
        %v2415 = vpack.c.b16 %v2388, %v2387
        %v2416 = vpack.c.b16 %v2390, %v2389
        %v2417 = vpack.c.b16 %v2392, %v2391
        %v2418 = vpack.c.b16 %v2394, %v2393
        %2443 = vmatprep.subr.bf16.mxu0 0
        %2444 = vmatpush1.bf16.msra.mxu0 %v2395
        %2445 = vmatprep.subr.bf16.mxu0 0
        %2446 = vmatpush1.bf16.msra.mxu0 %v2396
        %2447 = vmatprep.subr.bf16.mxu0 0
        %2448 = vmatpush1.bf16.msra.mxu0 %v2397
        %2449 = vmatprep.subr.bf16.mxu0 0
        %2450 = vmatpush1.bf16.msra.mxu0 %v2398
        %2451 = vmatprep.subr.bf16.mxu0 0
        %2452 = vmatpush1.bf16.msra.mxu0 %v2399
        %2453 = vmatprep.subr.bf16.mxu0 0
        %2454 = vmatpush1.bf16.msra.mxu0 %v2400
        %2455 = vmatprep.subr.bf16.mxu0 0
        %2456 = vmatpush1.bf16.msra.mxu0 %v2401
        %2457 = vmatprep.subr.bf16.mxu0 0
        %2458 = vmatpush1.bf16.msra.mxu0 %v2402
        %2459 = vmatprep.subr.bf16.mxu0 0
        %2460 = vmatpush1.bf16.msra.mxu0 %v2403
        %2461 = vmatprep.subr.bf16.mxu0 0
        %2462 = vmatpush1.bf16.msra.mxu0 %v2404
        %2463 = vmatprep.subr.bf16.mxu0 0
        %2464 = vmatpush1.bf16.msra.mxu0 %v2405
        %2465 = vmatprep.subr.bf16.mxu0 0
        %2466 = vmatpush1.bf16.msra.mxu0 %v2406
        %2467 = vmatprep.subr.bf16.mxu0 0
        %2468 = vmatpush1.bf16.msra.mxu0 %v2407
        %2469 = vmatprep.subr.bf16.mxu0 0
        %2470 = vmatpush1.bf16.msra.mxu0 %v2408
        %2471 = vmatprep.subr.bf16.mxu0 0
        %2472 = vmatpush1.bf16.msra.mxu0 %v2409
        %2473 = vmatprep.subr.bf16.mxu0 0
        %2474 = vmatpush1.bf16.msra.mxu0 %v2410
        %2475 = vmatprep.mubr.bf16.mxu0 %v2203
        %2476 = vmatmul.mubr.bf16.gmra.mrb[0].mxu0 %v2202
        %v2477 = vpop.f32.mrb[0].mxu0
        %v2478 = vadd.f32 0.0, %v2477
        %v2479 = vpop.f32.mrb[0].mxu0
        %v2480 = vpop.f32.mrb[0].mxu0
        %v2481 = vadd.f32 0.0, %v2480
        %v2482 = vpop.f32.mrb[0].mxu0
        %2483 = vmatprep.mubr.bf16.mxu0 %v2206
        %2484 = vmatmul.mubr.bf16.gmra.mrb[0].mxu0 %v2205
        %v2485 = vpop.f32.mrb[0].mxu0
        %v2486 = vadd.f32 0.0, %v2485
        %v2487 = vpop.f32.mrb[0].mxu0
        %v2488 = vpop.f32.mrb[0].mxu0
        %v2489 = vadd.f32 0.0, %v2488
        %v2490 = vpop.f32.mrb[0].mxu0
        %2491 = vmatprep.mubr.bf16.mxu0 %v2209
        %2492 = vmatmul.mubr.bf16.gmra.mrb[0].mxu0 %v2208
        %v2493 = vpop.f32.mrb[0].mxu0
        %v2494 = vadd.f32 0.0, %v2493
        %v2495 = vpop.f32.mrb[0].mxu0
        %v2496 = vpop.f32.mrb[0].mxu0
        %v2497 = vadd.f32 0.0, %v2496
        %v2498 = vpop.f32.mrb[0].mxu0
        %2499 = vmatprep.mubr.bf16.mxu0 %v2212
        %2500 = vmatmul.mubr.bf16.gmra.mrb[0].mxu0 %v2211
        %v2501 = vpop.f32.mrb[0].mxu0
        %v2502 = vadd.f32 0.0, %v2501
        %v2503 = vpop.f32.mrb[0].mxu0
        %v2504 = vpop.f32.mrb[0].mxu0
        %v2505 = vadd.f32 0.0, %v2504
        %v2506 = vpop.f32.mrb[0].mxu0
        %2507 = vmatprep.mubr.bf16.mxu0 %v2215
        %2508 = vmatmul.mubr.bf16.gmra.mrb[0].mxu0 %v2214
        %v2509 = vpop.f32.mrb[0].mxu0
        %v2510 = vadd.f32 0.0, %v2509
        %v2511 = vpop.f32.mrb[0].mxu0
        %v2512 = vpop.f32.mrb[0].mxu0
        %v2513 = vadd.f32 0.0, %v2512
        %v2514 = vpop.f32.mrb[0].mxu0
        %2515 = vmatprep.mubr.bf16.mxu0 %v2218
        %2516 = vmatmul.mubr.bf16.gmra.mrb[0].mxu0 %v2217
        %v2517 = vpop.f32.mrb[0].mxu0
        %v2518 = vadd.f32 0.0, %v2517
        %v2519 = vpop.f32.mrb[0].mxu0
        %v2520 = vpop.f32.mrb[0].mxu0
        %v2521 = vadd.f32 0.0, %v2520
        %v2522 = vpop.f32.mrb[0].mxu0
        %2523 = vmatprep.mubr.bf16.mxu0 %v2221
        %2524 = vmatmul.mubr.bf16.gmra.mrb[0].mxu0 %v2220
        %v2525 = vpop.f32.mrb[0].mxu0
        %v2526 = vadd.f32 0.0, %v2525
        %v2527 = vpop.f32.mrb[0].mxu0
        %v2528 = vpop.f32.mrb[0].mxu0
        %v2529 = vadd.f32 0.0, %v2528
        %v2530 = vpop.f32.mrb[0].mxu0
        %2531 = vmatprep.mubr.bf16.mxu0 %v2224
        %2532 = vmatmul.mubr.bf16.gmra.mrb[0].mxu0 %v2223
        %v2533 = vpop.f32.mrb[0].mxu0
        %v2534 = vadd.f32 0.0, %v2533
        %v2535 = vpop.f32.mrb[0].mxu0
        %v2536 = vpop.f32.mrb[0].mxu0
        %v2537 = vadd.f32 0.0, %v2536
        %v2538 = vpop.f32.mrb[0].mxu0
        %2539 = vmatprep.mubr.bf16.mxu0 %v2227
        %2540 = vmatmul.mubr.bf16.gmra.mrb[0].mxu0 %v2226
        %v2541 = vpop.f32.mrb[0].mxu0
        %v2542 = vadd.f32 0.0, %v2541
        %v2543 = vpop.f32.mrb[0].mxu0
        %v2544 = vpop.f32.mrb[0].mxu0
        %v2545 = vadd.f32 0.0, %v2544
        %v2546 = vpop.f32.mrb[0].mxu0
        %2547 = vmatprep.mubr.bf16.mxu0 %v2230
        %2548 = vmatmul.mubr.bf16.gmra.mrb[0].mxu0 %v2229
        %v2549 = vpop.f32.mrb[0].mxu0
        %v2550 = vadd.f32 0.0, %v2549
        %v2551 = vpop.f32.mrb[0].mxu0
        %v2552 = vpop.f32.mrb[0].mxu0
        %v2553 = vadd.f32 0.0, %v2552
        %v2554 = vpop.f32.mrb[0].mxu0
        %2555 = vmatprep.mubr.bf16.mxu0 %v2233
        %2556 = vmatmul.mubr.bf16.gmra.mrb[0].mxu0 %v2232
        %v2557 = vpop.f32.mrb[0].mxu0
        %v2558 = vadd.f32 0.0, %v2557
        %v2559 = vpop.f32.mrb[0].mxu0
        %v2560 = vpop.f32.mrb[0].mxu0
        %v2561 = vadd.f32 0.0, %v2560
        %v2562 = vpop.f32.mrb[0].mxu0
        %2563 = vmatprep.mubr.bf16.mxu0 %v2236
        %2564 = vmatmul.mubr.bf16.gmra.mrb[0].mxu0 %v2235
        %v2565 = vpop.f32.mrb[0].mxu0
        %v2566 = vadd.f32 0.0, %v2565
        %v2567 = vpop.f32.mrb[0].mxu0
        %v2568 = vpop.f32.mrb[0].mxu0
        %v2569 = vadd.f32 0.0, %v2568
        %v2570 = vpop.f32.mrb[0].mxu0
        %2571 = vmatprep.mubr.bf16.mxu0 %v2239
        %2572 = vmatmul.mubr.bf16.gmra.mrb[0].mxu0 %v2238
        %v2573 = vpop.f32.mrb[0].mxu0
        %v2574 = vadd.f32 0.0, %v2573
        %v2575 = vpop.f32.mrb[0].mxu0
        %v2576 = vpop.f32.mrb[0].mxu0
        %v2577 = vadd.f32 0.0, %v2576
        %v2578 = vpop.f32.mrb[0].mxu0
        %2579 = vmatprep.mubr.bf16.mxu0 %v2242
        %2580 = vmatmul.mubr.bf16.gmra.mrb[0].mxu0 %v2241
        %v2581 = vpop.f32.mrb[0].mxu0
        %v2582 = vadd.f32 0.0, %v2581
        %v2583 = vpop.f32.mrb[0].mxu0
        %v2584 = vpop.f32.mrb[0].mxu0
        %v2585 = vadd.f32 0.0, %v2584
        %v2586 = vpop.f32.mrb[0].mxu0
        %2587 = vmatprep.mubr.bf16.mxu0 %v2245
        %2588 = vmatmul.mubr.bf16.gmra.mrb[0].mxu0 %v2244
        %v2589 = vpop.f32.mrb[0].mxu0
        %v2590 = vadd.f32 0.0, %v2589
        %v2591 = vpop.f32.mrb[0].mxu0
        %v2592 = vpop.f32.mrb[0].mxu0
        %v2593 = vadd.f32 0.0, %v2592
        %v2594 = vpop.f32.mrb[0].mxu0
        %2595 = vmatprep.mubr.bf16.mxu0 %v2248
        %2596 = vmatmul.mubr.bf16.gmra.mrb[0].mxu0 %v2247
        %v2597 = vpop.f32.mrb[0].mxu0
        %v2598 = vadd.f32 0.0, %v2597
        %v2599 = vpop.f32.mrb[0].mxu0
        %v2600 = vpop.f32.mrb[0].mxu0
        %v2601 = vadd.f32 0.0, %v2600
        %v2602 = vpop.f32.mrb[0].mxu0
        %2603 = vdwg.mxu0
        %2604 = vmatprep.subr.bf16.mxu0 0
        %2605 = vmatpush1.bf16.msra.mxu0 %v2411
        %2606 = vmatprep.subr.bf16.mxu0 0
        %2607 = vmatpush1.bf16.msra.mxu0 %v2412
        %2608 = vmatprep.subr.bf16.mxu0 0
        %2609 = vmatpush1.bf16.msra.mxu0 %v2413
        %2610 = vmatprep.subr.bf16.mxu0 0
        %2611 = vmatpush1.bf16.msra.mxu0 %v2414
        %2612 = vmatprep.subr.bf16.mxu0 0
        %2613 = vmatpush1.bf16.msra.mxu0 %v2415
        %2614 = vmatprep.subr.bf16.mxu0 0
        %2615 = vmatpush1.bf16.msra.mxu0 %v2416
        %2616 = vmatprep.subr.bf16.mxu0 0
        %2617 = vmatpush1.bf16.msra.mxu0 %v2417
        %2618 = vmatprep.subr.bf16.mxu0 0
        %2619 = vmatpush1.bf16.msra.mxu0 %v2418
        %2620 = vmatprep.subr.bf16.mxu0 0
        %2621 = vmatpush1.bf16.msra.mxu0 0
        %2622 = vmatprep.subr.bf16.mxu0 0
        %2623 = vmatpush1.bf16.msra.mxu0 0
        %2624 = vmatprep.subr.bf16.mxu0 0
        %2625 = vmatpush1.bf16.msra.mxu0 0
        %2626 = vmatprep.subr.bf16.mxu0 0
        %2627 = vmatpush1.bf16.msra.mxu0 0
        %2628 = vmatprep.subr.bf16.mxu0 0
        %2629 = vmatpush1.bf16.msra.mxu0 0
        %2630 = vmatprep.subr.bf16.mxu0 0
        %2631 = vmatpush1.bf16.msra.mxu0 0
        %2632 = vmatprep.subr.bf16.mxu0 0
        %2633 = vmatpush1.bf16.msra.mxu0 0
        %2634 = vmatprep.subr.bf16.mxu0 0
        %2635 = vmatpush1.bf16.msra.mxu0 0
        %2636 = vmatprep.mubr.bf16.mxu0 0
        %2637 = vmatmul.mubr.bf16.gmra.mrb[0].mxu0 %v2204
        %v2638 = vpop.f32.mrb[0].mxu0
        %v2639 = vadd.f32 %v2478, %v2638
        %v2640 = vpop.f32.mrb[0].mxu0
        %v2641 = vpop.f32.mrb[0].mxu0
        %v2642 = vadd.f32 %v2481, %v2641
        %v2643 = vpop.f32.mrb[0].mxu0
        %2644 = vmatprep.mubr.bf16.mxu0 0
        %2645 = vmatmul.mubr.bf16.gmra.mrb[0].mxu0 %v2207
        %v2646 = vpop.f32.mrb[0].mxu0
        %v2647 = vadd.f32 %v2486, %v2646
        %v2648 = vpop.f32.mrb[0].mxu0
        %v2649 = vpop.f32.mrb[0].mxu0
        %v2650 = vadd.f32 %v2489, %v2649
        %v2651 = vpop.f32.mrb[0].mxu0
        %2652 = vmatprep.mubr.bf16.mxu0 0
        %2653 = vmatmul.mubr.bf16.gmra.mrb[0].mxu0 %v2210
        %v2654 = vpop.f32.mrb[0].mxu0
        %v2655 = vadd.f32 %v2494, %v2654
        %v2656 = vpop.f32.mrb[0].mxu0
        %v2657 = vpop.f32.mrb[0].mxu0
        %v2658 = vadd.f32 %v2497, %v2657
        %v2659 = vpop.f32.mrb[0].mxu0
        %2660 = vmatprep.mubr.bf16.mxu0 0
        %2661 = vmatmul.mubr.bf16.gmra.mrb[0].mxu0 %v2213
        %v2662 = vpop.f32.mrb[0].mxu0
        %v2663 = vadd.f32 %v2502, %v2662
        %v2664 = vpop.f32.mrb[0].mxu0
        %v2665 = vpop.f32.mrb[0].mxu0
        %v2666 = vadd.f32 %v2505, %v2665
        %v2667 = vpop.f32.mrb[0].mxu0
        %2668 = vmatprep.mubr.bf16.mxu0 0
        %2669 = vmatmul.mubr.bf16.gmra.mrb[0].mxu0 %v2216
        %v2670 = vpop.f32.mrb[0].mxu0
        %v2671 = vadd.f32 %v2510, %v2670
        %v2672 = vpop.f32.mrb[0].mxu0
        %v2673 = vpop.f32.mrb[0].mxu0
        %v2674 = vadd.f32 %v2513, %v2673
        %v2675 = vpop.f32.mrb[0].mxu0
        %2676 = vmatprep.mubr.bf16.mxu0 0
        %2677 = vmatmul.mubr.bf16.gmra.mrb[0].mxu0 %v2219
        %v2678 = vpop.f32.mrb[0].mxu0
        %v2679 = vadd.f32 %v2518, %v2678
        %v2680 = vpop.f32.mrb[0].mxu0
        %v2681 = vpop.f32.mrb[0].mxu0
        %v2682 = vadd.f32 %v2521, %v2681
        %v2683 = vpop.f32.mrb[0].mxu0
        %2684 = vmatprep.mubr.bf16.mxu0 0
        %2685 = vmatmul.mubr.bf16.gmra.mrb[0].mxu0 %v2222
        %v2686 = vpop.f32.mrb[0].mxu0
        %v2687 = vadd.f32 %v2526, %v2686
        %v2688 = vpop.f32.mrb[0].mxu0
        %v2689 = vpop.f32.mrb[0].mxu0
        %v2690 = vadd.f32 %v2529, %v2689
        %v2691 = vpop.f32.mrb[0].mxu0
        %2692 = vmatprep.mubr.bf16.mxu0 0
        %2693 = vmatmul.mubr.bf16.gmra.mrb[0].mxu0 %v2225
        %v2694 = vpop.f32.mrb[0].mxu0
        %v2695 = vadd.f32 %v2534, %v2694
        %v2696 = vpop.f32.mrb[0].mxu0
        %v2697 = vpop.f32.mrb[0].mxu0
        %v2698 = vadd.f32 %v2537, %v2697
        %v2699 = vpop.f32.mrb[0].mxu0
        %2700 = vmatprep.mubr.bf16.mxu0 0
        %2701 = vmatmul.mubr.bf16.gmra.mrb[0].mxu0 %v2228
        %v2702 = vpop.f32.mrb[0].mxu0
        %v2703 = vadd.f32 %v2542, %v2702
        %v2704 = vpop.f32.mrb[0].mxu0
        %v2705 = vpop.f32.mrb[0].mxu0
        %v2706 = vadd.f32 %v2545, %v2705
        %v2707 = vpop.f32.mrb[0].mxu0
        %2708 = vmatprep.mubr.bf16.mxu0 0
        %2709 = vmatmul.mubr.bf16.gmra.mrb[0].mxu0 %v2231
        %v2710 = vpop.f32.mrb[0].mxu0
        %v2711 = vadd.f32 %v2550, %v2710
        %v2712 = vpop.f32.mrb[0].mxu0
        %v2713 = vpop.f32.mrb[0].mxu0
        %v2714 = vadd.f32 %v2553, %v2713
        %v2715 = vpop.f32.mrb[0].mxu0
        %2716 = vmatprep.mubr.bf16.mxu0 0
        %2717 = vmatmul.mubr.bf16.gmra.mrb[0].mxu0 %v2234
        %v2718 = vpop.f32.mrb[0].mxu0
        %v2719 = vadd.f32 %v2558, %v2718
        %v2720 = vpop.f32.mrb[0].mxu0
        %v2721 = vpop.f32.mrb[0].mxu0
        %v2722 = vadd.f32 %v2561, %v2721
        %v2723 = vpop.f32.mrb[0].mxu0
        %2724 = vmatprep.mubr.bf16.mxu0 0
        %2725 = vmatmul.mubr.bf16.gmra.mrb[0].mxu0 %v2237
        %v2726 = vpop.f32.mrb[0].mxu0
        %v2727 = vadd.f32 %v2566, %v2726
        %v2728 = vpop.f32.mrb[0].mxu0
        %v2729 = vpop.f32.mrb[0].mxu0
        %v2730 = vadd.f32 %v2569, %v2729
        %v2731 = vpop.f32.mrb[0].mxu0
        %2732 = vmatprep.mubr.bf16.mxu0 0
        %2733 = vmatmul.mubr.bf16.gmra.mrb[0].mxu0 %v2240
        %v2734 = vpop.f32.mrb[0].mxu0
        %v2735 = vadd.f32 %v2574, %v2734
        %v2736 = vpop.f32.mrb[0].mxu0
        %v2737 = vpop.f32.mrb[0].mxu0
        %v2738 = vadd.f32 %v2577, %v2737
        %v2739 = vpop.f32.mrb[0].mxu0
        %2740 = vmatprep.mubr.bf16.mxu0 0
        %2741 = vmatmul.mubr.bf16.gmra.mrb[0].mxu0 %v2243
        %v2742 = vpop.f32.mrb[0].mxu0
        %v2743 = vadd.f32 %v2582, %v2742
        %v2744 = vpop.f32.mrb[0].mxu0
        %v2745 = vpop.f32.mrb[0].mxu0
        %v2746 = vadd.f32 %v2585, %v2745
        %v2747 = vpop.f32.mrb[0].mxu0
        %2748 = vmatprep.mubr.bf16.mxu0 0
        %2749 = vmatmul.mubr.bf16.gmra.mrb[0].mxu0 %v2246
        %v2750 = vpop.f32.mrb[0].mxu0
        %v2751 = vadd.f32 %v2590, %v2750
        %v2752 = vpop.f32.mrb[0].mxu0
        %v2753 = vpop.f32.mrb[0].mxu0
        %v2754 = vadd.f32 %v2593, %v2753
        %v2755 = vpop.f32.mrb[0].mxu0
        %2756 = vmatprep.mubr.bf16.mxu0 0
        %2757 = vmatmul.mubr.bf16.gmra.mrb[0].mxu0 %v2249
        %v2758 = vpop.f32.mrb[0].mxu0
        %v2759 = vadd.f32 %v2598, %v2758
        %v2760 = vpop.f32.mrb[0].mxu0
        %v2761 = vpop.f32.mrb[0].mxu0
        %v2762 = vadd.f32 %v2601, %v2761
        %v2763 = vpop.f32.mrb[0].mxu0
        %2764 = vdwg.mxu0
        %v2765 = vadd.f32 %v2075, %v2639
        %v2766 = vadd.f32 %v2078, %v2642
        %v2767 = vadd.f32 %v2083, %v2647
        %v2768 = vadd.f32 %v2086, %v2650
        %v2769 = vadd.f32 %v2091, %v2655
        %v2770 = vadd.f32 %v2094, %v2658
        %v2771 = vadd.f32 %v2099, %v2663
        %v2772 = vadd.f32 %v2102, %v2666
        %v2773 = vadd.f32 %v2107, %v2671
        %v2774 = vadd.f32 %v2110, %v2674
        %v2775 = vadd.f32 %v2115, %v2679
        %v2776 = vadd.f32 %v2118, %v2682
        %v2777 = vadd.f32 %v2123, %v2687
        %v2778 = vadd.f32 %v2126, %v2690
        %v2779 = vadd.f32 %v2131, %v2695
        %v2780 = vadd.f32 %v2134, %v2698
        %v2781 = vadd.f32 %v2139, %v2703
        %v2782 = vadd.f32 %v2142, %v2706
        %v2783 = vadd.f32 %v2147, %v2711
        %v2784 = vadd.f32 %v2150, %v2714
        %v2785 = vadd.f32 %v2155, %v2719
        %v2786 = vadd.f32 %v2158, %v2722
        %v2787 = vadd.f32 %v2163, %v2727
        %v2788 = vadd.f32 %v2166, %v2730
        %v2789 = vadd.f32 %v2171, %v2735
        %v2790 = vadd.f32 %v2174, %v2738
        %v2791 = vadd.f32 %v2179, %v2743
        %v2792 = vadd.f32 %v2182, %v2746
        %v2793 = vadd.f32 %v2187, %v2751
        %v2794 = vadd.f32 %v2190, %v2754
        %v2795 = vadd.f32 %v2195, %v2759
        %v2796 = vadd.f32 %v2198, %v2762
        %v2797 = vld [vmem:[%s5] sm:$0x1]
        %v2799 = vlaneseq
        %v2800 = vshrl.u32 %v2799, 7
        %v2801 = vsub.s32 0, %v2800
        %v2802 = vrot.slane %v2797, %v2801
        %v2804 = vmul.f32 %v2765, %v2802
        %v2805 = vmul.f32 %v2766, %v2802
        %v2806 = vmul.f32 %v2767, %v2802
        %v2807 = vmul.f32 %v2768, %v2802
        %v2808 = vmul.f32 %v2769, %v2802
        %v2809 = vmul.f32 %v2770, %v2802
        %v2810 = vmul.f32 %v2771, %v2802
        %v2811 = vmul.f32 %v2772, %v2802
        %v2812 = vmul.f32 %v2773, %v2802
        %v2813 = vmul.f32 %v2774, %v2802
        %v2814 = vmul.f32 %v2775, %v2802
        %v2815 = vmul.f32 %v2776, %v2802
        %v2816 = vmul.f32 %v2777, %v2802
        %v2817 = vmul.f32 %v2778, %v2802
        %v2818 = vmul.f32 %v2779, %v2802
        %v2819 = vmul.f32 %v2780, %v2802
        %v2820 = vmul.f32 %v2781, %v2802
        %v2821 = vmul.f32 %v2782, %v2802
        %v2822 = vmul.f32 %v2783, %v2802
        %v2823 = vmul.f32 %v2784, %v2802
        %v2824 = vmul.f32 %v2785, %v2802
        %v2825 = vmul.f32 %v2786, %v2802
        %v2826 = vmul.f32 %v2787, %v2802
        %v2827 = vmul.f32 %v2788, %v2802
        %v2828 = vmul.f32 %v2789, %v2802
        %v2829 = vmul.f32 %v2790, %v2802
        %v2830 = vmul.f32 %v2791, %v2802
        %v2831 = vmul.f32 %v2792, %v2802
        %v2832 = vmul.f32 %v2793, %v2802
        %v2833 = vmul.f32 %v2794, %v2802
        %v2834 = vmul.f32 %v2795, %v2802
        %v2835 = vmul.f32 %v2796, %v2802
        %v2836 = vld [vmem:[%s6] sm:$0x1]
        %v2838 = vlaneseq
        %v2839 = vshrl.u32 %v2838, 7
        %v2840 = vsub.s32 0, %v2839
        %v2841 = vrot.slane %v2836, %v2840
        %v2843 = vadd.f32 %v2804, %v2841
        %v2844 = vadd.f32 %v2805, %v2841
        %v2845 = vadd.f32 %v2806, %v2841
        %v2846 = vadd.f32 %v2807, %v2841
        %v2847 = vadd.f32 %v2808, %v2841
        %v2848 = vadd.f32 %v2809, %v2841
        %v2849 = vadd.f32 %v2810, %v2841
        %v2850 = vadd.f32 %v2811, %v2841
        %v2851 = vadd.f32 %v2812, %v2841
        %v2852 = vadd.f32 %v2813, %v2841
        %v2853 = vadd.f32 %v2814, %v2841
        %v2854 = vadd.f32 %v2815, %v2841
        %v2855 = vadd.f32 %v2816, %v2841
        %v2856 = vadd.f32 %v2817, %v2841
        %v2857 = vadd.f32 %v2818, %v2841
        %v2858 = vadd.f32 %v2819, %v2841
        %v2859 = vadd.f32 %v2820, %v2841
        %v2860 = vadd.f32 %v2821, %v2841
        %v2861 = vadd.f32 %v2822, %v2841
        %v2862 = vadd.f32 %v2823, %v2841
        %v2863 = vadd.f32 %v2824, %v2841
        %v2864 = vadd.f32 %v2825, %v2841
        %v2865 = vadd.f32 %v2826, %v2841
        %v2866 = vadd.f32 %v2827, %v2841
        %v2867 = vadd.f32 %v2828, %v2841
        %v2868 = vadd.f32 %v2829, %v2841
        %v2869 = vadd.f32 %v2830, %v2841
        %v2870 = vadd.f32 %v2831, %v2841
        %v2871 = vadd.f32 %v2832, %v2841
        %v2872 = vadd.f32 %v2833, %v2841
        %v2873 = vadd.f32 %v2834, %v2841
        %v2874 = vadd.f32 %v2835, %v2841
        %v2875 = vmax.f32 %v2843, 0.0
        %v2876 = vmax.f32 %v2844, 0.0
        %v2877 = vmax.f32 %v2845, 0.0
        %v2878 = vmax.f32 %v2846, 0.0
        %v2879 = vmax.f32 %v2847, 0.0
        %v2880 = vmax.f32 %v2848, 0.0
        %v2881 = vmax.f32 %v2849, 0.0
        %v2882 = vmax.f32 %v2850, 0.0
        %v2883 = vmax.f32 %v2851, 0.0
        %v2884 = vmax.f32 %v2852, 0.0
        %v2885 = vmax.f32 %v2853, 0.0
        %v2886 = vmax.f32 %v2854, 0.0
        %v2887 = vmax.f32 %v2855, 0.0
        %v2888 = vmax.f32 %v2856, 0.0
        %v2889 = vmax.f32 %v2857, 0.0
        %v2890 = vmax.f32 %v2858, 0.0
        %v2891 = vmax.f32 %v2859, 0.0
        %v2892 = vmax.f32 %v2860, 0.0
        %v2893 = vmax.f32 %v2861, 0.0
        %v2894 = vmax.f32 %v2862, 0.0
        %v2895 = vmax.f32 %v2863, 0.0
        %v2896 = vmax.f32 %v2864, 0.0
        %v2897 = vmax.f32 %v2865, 0.0
        %v2898 = vmax.f32 %v2866, 0.0
        %v2899 = vmax.f32 %v2867, 0.0
        %v2900 = vmax.f32 %v2868, 0.0
        %v2901 = vmax.f32 %v2869, 0.0
        %v2902 = vmax.f32 %v2870, 0.0
        %v2903 = vmax.f32 %v2871, 0.0
        %v2904 = vmax.f32 %v2872, 0.0
        %v2905 = vmax.f32 %v2873, 0.0
        %v2906 = vmax.f32 %v2874, 0.0
        %v2907 = vpack.c.bf16 %v2876, %v2875
        %v2908 = vpack.c.bf16 %v2878, %v2877
        %v2909 = vpack.c.bf16 %v2880, %v2879
        %v2910 = vpack.c.bf16 %v2882, %v2881
        %v2911 = vpack.c.bf16 %v2884, %v2883
        %v2912 = vpack.c.bf16 %v2886, %v2885
        %v2913 = vpack.c.bf16 %v2888, %v2887
        %v2914 = vpack.c.bf16 %v2890, %v2889
        %v2915 = vpack.c.bf16 %v2892, %v2891
        %v2916 = vpack.c.bf16 %v2894, %v2893
        %v2917 = vpack.c.bf16 %v2896, %v2895
        %v2918 = vpack.c.bf16 %v2898, %v2897
        %v2919 = vpack.c.bf16 %v2900, %v2899
        %v2920 = vpack.c.bf16 %v2902, %v2901
        %v2921 = vpack.c.bf16 %v2904, %v2903
        %v2922 = vpack.c.bf16 %v2906, %v2905
        %v2939 = vunpack.c.l.b16 %v2907
        %v2940 = vunpack.c.h.b16 %v2907
        %v2941 = vunpack.c.l.b16 %v2908
        %v2942 = vunpack.c.h.b16 %v2908
        %v2943 = vunpack.c.l.b16 %v2909
        %v2944 = vunpack.c.h.b16 %v2909
        %v2945 = vunpack.c.l.b16 %v2910
        %v2946 = vunpack.c.h.b16 %v2910
        %v2947 = vunpack.c.l.b16 %v2911
        %v2948 = vunpack.c.h.b16 %v2911
        %v2949 = vunpack.c.l.b16 %v2912
        %v2950 = vunpack.c.h.b16 %v2912
        %v2951 = vunpack.c.l.b16 %v2913
        %v2952 = vunpack.c.h.b16 %v2913
        %v2953 = vunpack.c.l.b16 %v2914
        %v2954 = vunpack.c.h.b16 %v2914
        %v2955 = vunpack.c.l.b16 %v2915
        %v2956 = vunpack.c.h.b16 %v2915
        %v2957 = vunpack.c.l.b16 %v2916
        %v2958 = vunpack.c.h.b16 %v2916
        %v2959 = vunpack.c.l.b16 %v2917
        %v2960 = vunpack.c.h.b16 %v2917
        %v2961 = vunpack.c.l.b16 %v2918
        %v2962 = vunpack.c.h.b16 %v2918
        %v2963 = vunpack.c.l.b16 %v2919
        %v2964 = vunpack.c.h.b16 %v2919
        %v2965 = vunpack.c.l.b16 %v2920
        %v2966 = vunpack.c.h.b16 %v2920
        %v2967 = vunpack.c.l.b16 %v2921
        %v2968 = vunpack.c.h.b16 %v2921
        %v2969 = vunpack.c.l.b16 %v2922
        %v2970 = vunpack.c.h.b16 %v2922
        %v2971 = vpack.c.b16 %v2939, %v2939
        %v2972 = vpack.c.b16 %v2940, %v2940
        %v2973 = vpack.c.b16 %v2941, %v2941
        %v2974 = vpack.c.b16 %v2942, %v2942
        %v2975 = vpack.c.b16 %v2943, %v2943
        %v2976 = vpack.c.b16 %v2944, %v2944
        %v2977 = vpack.c.b16 %v2945, %v2945
        %v2978 = vpack.c.b16 %v2946, %v2946
        %v2979 = vpack.c.b16 %v2947, %v2947
        %v2980 = vpack.c.b16 %v2948, %v2948
        %v2981 = vpack.c.b16 %v2949, %v2949
        %v2982 = vpack.c.b16 %v2950, %v2950
        %v2983 = vpack.c.b16 %v2951, %v2951
        %v2984 = vpack.c.b16 %v2952, %v2952
        %v2985 = vpack.c.b16 %v2953, %v2953
        %v2986 = vpack.c.b16 %v2954, %v2954
        %v2987 = vpack.c.b16 %v2955, %v2955
        %v2988 = vpack.c.b16 %v2956, %v2956
        %v2989 = vpack.c.b16 %v2957, %v2957
        %v2990 = vpack.c.b16 %v2958, %v2958
        %v2991 = vpack.c.b16 %v2959, %v2959
        %v2992 = vpack.c.b16 %v2960, %v2960
        %v2993 = vpack.c.b16 %v2961, %v2961
        %v2994 = vpack.c.b16 %v2962, %v2962
        %v2995 = vpack.c.b16 %v2963, %v2963
        %v2996 = vpack.c.b16 %v2964, %v2964
        %v2997 = vpack.c.b16 %v2965, %v2965
        %v2998 = vpack.c.b16 %v2966, %v2966
        %v2999 = vpack.c.b16 %v2967, %v2967
        %v3000 = vpack.c.b16 %v2968, %v2968
        %v3001 = vpack.c.b16 %v2969, %v2969
        %v3002 = vpack.c.b16 %v2970, %v2970
        %3035 = vst [vmem:[%s325] sm:$0xf] %v2971
        %3036 = vst [vmem:[%s325 + $0x4] sm:$0xf] %v2972
        %3037 = vst [vmem:[%s325 + $0x8] sm:$0xf] %v2973
        %3038 = vst [vmem:[%s325 + $0xc] sm:$0xf] %v2974
        %3039 = vst [vmem:[%s325 + $0x10] sm:$0xf] %v2975
        %3040 = vst [vmem:[%s325 + $0x14] sm:$0xf] %v2976
        %3041 = vst [vmem:[%s325 + $0x18] sm:$0xf] %v2977
        %3042 = vst [vmem:[%s325 + $0x1c] sm:$0xf] %v2978
        %3043 = vst [vmem:[%s325 + $0x20] sm:$0xf] %v2979
        %3044 = vst [vmem:[%s325 + $0x24] sm:$0xf] %v2980
        %3045 = vst [vmem:[%s325 + $0x28] sm:$0xf] %v2981
        %3046 = vst [vmem:[%s325 + $0x2c] sm:$0xf] %v2982
        %3047 = vst [vmem:[%s325 + $0x30] sm:$0xf] %v2983
        %3048 = vst [vmem:[%s325 + $0x34] sm:$0xf] %v2984
        %3049 = vst [vmem:[%s325 + $0x38] sm:$0xf] %v2985
        %3050 = vst [vmem:[%s325 + $0x3c] sm:$0xf] %v2986
        %3051 = vst [vmem:[%s325 + $0x40] sm:$0xf] %v2987
        %3052 = vst [vmem:[%s325 + $0x44] sm:$0xf] %v2988
        %3053 = vst [vmem:[%s325 + $0x48] sm:$0xf] %v2989
        %3054 = vst [vmem:[%s325 + $0x4c] sm:$0xf] %v2990
        %3055 = vst [vmem:[%s325 + $0x50] sm:$0xf] %v2991
        %3056 = vst [vmem:[%s325 + $0x54] sm:$0xf] %v2992
        %3057 = vst [vmem:[%s325 + $0x58] sm:$0xf] %v2993
        %3058 = vst [vmem:[%s325 + $0x5c] sm:$0xf] %v2994
        %3059 = vst [vmem:[%s325 + $0x60] sm:$0xf] %v2995
        %3060 = vst [vmem:[%s325 + $0x64] sm:$0xf] %v2996
        %3061 = vst [vmem:[%s325 + $0x68] sm:$0xf] %v2997
        %3062 = vst [vmem:[%s325 + $0x6c] sm:$0xf] %v2998
        %3063 = vst [vmem:[%s325 + $0x70] sm:$0xf] %v2999
        %3064 = vst [vmem:[%s325 + $0x74] sm:$0xf] %v3000
        %3065 = vst [vmem:[%s325 + $0x78] sm:$0xf] %v3001
        %3066 = vst [vmem:[%s325 + $0x7c] sm:$0xf] %v3002
        %s3067 = sand.u32 %s185, 1
        %s3068 = scalar_lea.sflag [#allocation5], %s3067
        %s3069 = sand.u32 %s185, 1
        %s3070 = smul.addr %s3069, 128
        %s3071 = scalar_lea.vmem [#allocation9], %s3070
        // Predicated region
        $region61: #{tpu_custom_call.1} parent=47 // pred_check
          %p3072 = pneg %p195
        $region62: #{tpu_custom_call.1} parent=47 // pred_check_branch
          %3074 = sbr.rel (%p3072) target = $region64
        $region63: #{tpu_custom_call.1} parent=47 // pred_region
          %s3076 = ssub.s32 2048, 2048
          %3077 = vsyncadd %s3068, %s3076
          %s3078 = smul.addr %s25, 32
          %s3079 = smul.addr %s3078, 64
          %s3080 = scalar_lea.hbm %s7, %s3079
          %s3081 = sshll.u32 %s3071, 4
          %s3082 = int_to_ptr.vmem [resolvable:$true] %s3081
          %3087 = dma.vmem_to_hbm [thread:$0]  %s3082, 2048, %s3080, %s3068, 64, 64, 4
        $region64: #{tpu_custom_call.1} parent=47 // pred_fallthru
          _
      $region48: #{tpu_custom_call.1} parent=5 // pred_fallthru
        _
      %p3088 = scmp.le.s32.totalorder 2, %s20
      // Predicated region
      $region65: #{tpu_custom_call.1} parent=5 // pred_check
        %p3089 = pneg %p3088
      $region66: #{tpu_custom_call.1} parent=5 // pred_check_branch
        %3091 = sbr.rel (%p3089) target = $region68
      $region67: #{tpu_custom_call.1} parent=5 // pred_region
        %s3092 = ssub.s32 %s20, 2
        // Predicated region
        $region69: #{tpu_custom_call.1} parent=67 // pred_check
          %p3093 = pneg %p201
        $region70: #{tpu_custom_call.1} parent=67 // pred_check_branch
          %3095 = sbr.rel (%p3093) target = $region72
        $region71: #{tpu_custom_call.1} parent=67 // pred_region
          %s3096 = sand.u32 %s186, 1
          %s3097 = scalar_lea.sflag [#allocation5], %s3096
          %s3098 = sand.u32 %s186, 1
          %s3099 = smul.addr %s3098, 128
          %s3100 = scalar_lea.vmem [#allocation9], %s3099
          %3101 = dma.done %s3097, 2048
        $region72: #{tpu_custom_call.1} parent=67 // pred_fallthru
          _
      $region68: #{tpu_custom_call.1} parent=5 // pred_fallthru
        _
    $region6: #{tpu_custom_call.1} parent=1 // loop_footer
      %s24 = sadd.s32 1, %s20
    $region7: #{tpu_custom_call.1} parent=1 // loop_footer_branch
      %19 = sbr.rel target = $region3
    $region8: #{tpu_custom_call.1} parent=1 // loop_exit
      _
    %3102 = vsyncpa [#allocation4], 1
    %s3103 = scalar_lea.sflag [#allocation4], 1
    %3104 = vsyncpa %s3103, 1
    %3105 = vsyncpa [#allocation7], 1
    %3106 = vsyncpa [#allocation5], 1
    %s3107 = scalar_lea.sflag [#allocation5], 1
    %3108 = vsyncpa %s3107, 1

</llo_original>
